<compile_context>
chip_gen: v6e
topology: v6e:2x2x1
jax: 0.10.0
libtpu: 0.0.40
codegen_flags: <defaults>
</compile_context>

<pallas_src>
import functools

import jax
import jax.numpy as jnp
import numpy as np
from jax.experimental import pallas as pl
from jax.experimental.pallas import tpu as pltpu

# ---- synthetic "BERT" config (small, deterministic; no checkpoint load) ----
T = 8            # n_tokens_per_concept
H = 64           # hidden size
NH = 2           # attention heads
DH = H // NH     # head dim
F = 128          # FFN intermediate size
L = 2            # transformer layers
VOCAB = 128
EPS = 1e-12


def _layernorm(x, g, b, eps):
    mu = jnp.mean(x, axis=-1, keepdims=True)
    var = jnp.mean((x - mu) ** 2, axis=-1, keepdims=True)
    return (x - mu) * jax.lax.rsqrt(var + eps) * g + b


def _encoder_kernel(ids_ref, bias_ref, wemb_ref, posty_ref, lne_ref,
                    wqkv_ref, bqkv_ref, wo_ref, w1_ref, b1_ref, w2_ref,
                    vec_ref, out_ref, *, n_layers, n_heads, head_dim, eps):
    f32 = jnp.float32
    bf16 = jnp.bfloat16

    ids = ids_ref[0]                        # (M, 1) int32, M = TB*T token rows
    bias = bias_ref[0]                      # (TB, 1, T) additive mask bias
    tb = bias.shape[0]
    t = bias.shape[2]
    m = ids.shape[0]
    vocab, hdim = wemb_ref.shape

    # in-kernel embedding lookup: exact one-hot matmul on the MXU
    vocab_iota = jax.lax.broadcasted_iota(jnp.int32, (m, vocab), 1)
    onehot = (ids == vocab_iota).astype(f32)                        # (M, VOCAB)
    x = jnp.dot(onehot, wemb_ref[...], preferred_element_type=f32)  # (M, H)
    x = x + posty_ref[...]                  # position + token-type, pre-tiled

    lne = lne_ref[...]
    x = _layernorm(x, lne[0:1], lne[1:2], eps)

    scale = 1.0 / float(head_dim) ** 0.5

    for l in range(n_layers):               # static unrolled layer loop
        v6 = vec_ref[l]                     # (6, H): bo, ln1g, ln1b, b2, ln2g, ln2b
        bo, ln1g, ln1b = v6[0:1], v6[1:2], v6[2:3]
        b2, ln2g, ln2b = v6[3:4], v6[4:5], v6[5:6]
        wo_l = wo_ref[l]                    # (H, H) bf16

        # fused QKV projection: one (M, H) @ (H, 3H) matmul
        qkv = jnp.dot(x.astype(bf16), wqkv_ref[l],
                      preferred_element_type=f32) + bqkv_ref[l]     # (M, 3H)
        qkv3 = qkv.reshape(tb, t, 3 * hdim)

        attn = None
        for h in range(n_heads):            # static; batched over TB concepts
            lo = h * head_dim
            qh = qkv3[:, :, lo:lo + head_dim].astype(bf16)
            kh = qkv3[:, :, hdim + lo:hdim + lo + head_dim].astype(bf16)
            vh = qkv3[:, :, 2 * hdim + lo:2 * hdim + lo + head_dim].astype(bf16)

            s = jnp.einsum("btd,bsd->bts", qh, kh,
                           preferred_element_type=f32) * scale + bias
            s = s - jnp.max(s, axis=-1, keepdims=True)
            p = jnp.exp(s)
            p = p * pl.reciprocal(jnp.sum(p, axis=-1, keepdims=True), approx=True)
            ctx = jnp.einsum("bts,bsd->btd", p.astype(bf16), vh,
                             preferred_element_type=f32)            # (TB, T, DH)

            # fold head back through its slice of W_O (no lane concatenate)
            contrib = jnp.dot(ctx.reshape(m, head_dim).astype(bf16),
                              wo_l[lo:lo + head_dim, :],
                              preferred_element_type=f32)           # (M, H)
            attn = contrib if attn is None else attn + contrib

        x = _layernorm(x + attn + bo, ln1g, ln1b, eps)

        hmid = jnp.dot(x.astype(bf16), w1_ref[l],
                       preferred_element_type=f32) + b1_ref[l]      # (M, F)
        hmid = jax.nn.gelu(hmid)
        ffn = jnp.dot(hmid.astype(bf16), w2_ref[l],
                      preferred_element_type=f32) + b2               # (M, H)
        x = _layernorm(x + ffn, ln2g, ln2b, eps)

    # last_hidden_state.mean(dim=-2): mean over the T tokens of each concept
    out_ref[0] = jnp.mean(x.reshape(tb, t, hdim), axis=1).astype(out_ref.dtype)


def init_params(key):
    ks = jax.random.split(key, 16)
    s = 0.02
    return {
        "word_emb": jax.random.normal(ks[0], (VOCAB, H), jnp.float32) * s,
        "pos_emb": jax.random.normal(ks[1], (T, H), jnp.float32) * s,
        "type_emb": jax.random.normal(ks[2], (1, H), jnp.float32) * s,
        "lne_g": jnp.ones((1, H), jnp.float32),
        "lne_b": jnp.zeros((1, H), jnp.float32),
        "wq": jax.random.normal(ks[3], (L, H, H), jnp.float32) * s,
        "bq": jnp.zeros((L, 1, H), jnp.float32),
        "wk": jax.random.normal(ks[4], (L, H, H), jnp.float32) * s,
        "bk": jnp.zeros((L, 1, H), jnp.float32),
        "wv": jax.random.normal(ks[5], (L, H, H), jnp.float32) * s,
        "bv": jnp.zeros((L, 1, H), jnp.float32),
        "wo": jax.random.normal(ks[6], (L, H, H), jnp.float32) * s,
        "bo": jnp.zeros((L, 1, H), jnp.float32),
        "ln1g": jnp.ones((L, 1, H), jnp.float32),
        "ln1b": jnp.zeros((L, 1, H), jnp.float32),
        "w1": jax.random.normal(ks[7], (L, H, F), jnp.float32) * s,
        "b1": jnp.zeros((L, 1, F), jnp.float32),
        "w2": jax.random.normal(ks[8], (L, F, H), jnp.float32) * s,
        "b2": jnp.zeros((L, 1, H), jnp.float32),
        "ln2g": jnp.ones((L, 1, H), jnp.float32),
        "ln2b": jnp.zeros((L, 1, H), jnp.float32),
    }


def encode_tokens(tokens, attention_mask, params, n_tokens_per_concept=T,
                  block_rows=None):
    """Mirrors Encoder.encode_tokens / _encode (encode_in_single_concept=False)."""
    if tokens.ndim == 1:
        tokens = tokens[None]
    if attention_mask is None:
        attention_mask = jnp.ones_like(tokens)
    original_shape = tokens.shape
    B, S = tokens.shape
    tpc = n_tokens_per_concept

    # pad seq length to a multiple of n_tokens_per_concept (pad_token_id = 0)
    rem = S % tpc
    if rem != 0:
        pad = tpc - rem
        tokens = jnp.concatenate(
            [tokens, jnp.zeros((B, pad), tokens.dtype)], axis=1)
        attention_mask = jnp.concatenate(
            [attention_mask, jnp.zeros((B, pad), attention_mask.dtype)], axis=1)

    ids = tokens.reshape(-1, tpc).astype(jnp.int32)            # (N, T)
    mask = attention_mask.reshape(-1, tpc)                     # (N, T)
    N = ids.shape[0]

    # rows per grid step: fill the MXU (TB*T ~ 256) but keep >= 2 grid steps
    # when possible so work still splits across cores (v7x megacore).
    if block_rows is None:
        tb = max(1, 256 // tpc)
        while tb > 1 and -(-N // tb) < 2:
            tb //= 2
    else:
        tb = block_rows
    G = -(-N // tb)
    Np = G * tb
    if Np != N:                                    # pad concept rows; dropped later
        ids = jnp.concatenate([ids, jnp.zeros((Np - N, tpc), ids.dtype)], 0)
        mask = jnp.concatenate([mask, jnp.zeros((Np - N, tpc), mask.dtype)], 0)
    M = tb * tpc

    ids_blk = ids.reshape(G, M, 1)
    bias_blk = ((1.0 - mask.astype(jnp.float32)) * -1e9).reshape(G, tb, 1, tpc)

    # consolidated / pre-packed parameters
    bf = jnp.bfloat16
    word_emb = params["word_emb"].astype(jnp.float32)
    posty = (params["pos_emb"] + params["type_emb"]).astype(jnp.float32)   # (T, H)
    posty_tiled = jnp.tile(posty, (tb, 1))                                 # (M, H)
    lne = jnp.concatenate([params["lne_g"], params["lne_b"]], 0)           # (2, H)
    wqkv = jnp.concatenate([params["wq"], params["wk"], params["wv"]], -1).astype(bf)
    bqkv = jnp.concatenate([params["bq"], params["bk"], params["bv"]], -1)
    wo = params["wo"].astype(bf)
    w1 = params["w1"].astype(bf)
    w2 = params["w2"].astype(bf)
    b1 = params["b1"]
    vec6 = jnp.concatenate([params["bo"], params["ln1g"], params["ln1b"],
                            params["b2"], params["ln2g"], params["ln2b"]], 1)  # (L,6,H)

    kernel = functools.partial(_encoder_kernel, n_layers=L, n_heads=NH,
                               head_dim=DH, eps=EPS)

    def full(a):
        nd = a.ndim
        return pl.BlockSpec(a.shape, lambda i, _n=nd: (0,) * _n)

    out = pl.pallas_call(
        kernel,
        grid=(G,),
        in_specs=[
            pl.BlockSpec((1, M, 1), lambda i: (i, 0, 0)),          # ids
            pl.BlockSpec((1, tb, 1, tpc), lambda i: (i, 0, 0, 0)), # mask bias
            full(word_emb), full(posty_tiled), full(lne),
            full(wqkv), full(bqkv), full(wo),
            full(w1), full(b1), full(w2), full(vec6),
        ],
        out_specs=pl.BlockSpec((1, tb, H), lambda i: (i, 0, 0)),
        out_shape=jax.ShapeDtypeStruct((G, tb, H), jnp.float32),
        compiler_params=pltpu.CompilerParams(dimension_semantics=("parallel",)),
    )(ids_blk, bias_blk, word_emb, posty_tiled, lne,
      wqkv, bqkv, wo, w1, b1, w2, vec6)

    out = out.reshape(Np, H)[:N]
    # output.reshape(*original_shape[:-1], -1, H)
    return out.reshape(*original_shape[:-1], -1, H)
    # TODO(synk): encode_in_single_concept=True path (whole sequence as one
    # concept) not wired here; kernel is specialized to T tokens per concept.


def reference(ids, mask, params):
    """Pure-JAX f32 reference of the same synthetic BERT for correctness check."""
    x = (params["word_emb"][ids] + params["pos_emb"][None]
         + params["type_emb"][None]).astype(jnp.float32)
    x = _layernorm(x, params["lne_g"], params["lne_b"], EPS)
    bias = (1.0 - mask.astype(jnp.float32))[:, None, :] * -1e9
    for l in range(L):
        q = x @ params["wq"][l] + params["bq"][l]
        k = x @ params["wk"][l] + params["bk"][l]
        v = x @ params["wv"][l] + params["bv"][l]
        N, Tn, _ = q.shape
        qh = q.reshape(N, Tn, NH, DH).transpose(0, 2, 1, 3)
        kh = k.reshape(N, Tn, NH, DH).transpose(0, 2, 1, 3)
        vh = v.reshape(N, Tn, NH, DH).transpose(0, 2, 1, 3)
        s = jnp.einsum("nhqd,nhkd->nhqk", qh, kh) / jnp.sqrt(float(DH))
        s = s + bias[:, None]
        p = jax.nn.softmax(s, axis=-1)
        ctx = jnp.einsum("nhqk,nhkd->nhqd", p, vh)
        ctx = ctx.transpose(0, 2, 1, 3).reshape(N, Tn, H)
        x = _layernorm(x + ctx @ params["wo"][l] + params["bo"][l],
                       params["ln1g"][l], params["ln1b"][l], EPS)
        hmid = jax.nn.gelu(x @ params["w1"][l] + params["b1"][l])
        x = _layernorm(x + hmid @ params["w2"][l] + params["b2"][l],
                       params["ln2g"][l], params["ln2b"][l], EPS)
    return x.mean(axis=1)   # (N, H) == last_hidden_state.mean(dim=-2)


if __name__ == "__main__":
    key = jax.random.PRNGKey(0)
    pkey, tkey = jax.random.split(key)
    params = init_params(pkey)

    B, S = 2, 16                       # 2 concepts of T=8 tokens per example
    tokens = jax.random.randint(tkey, (B, S), 0, VOCAB, dtype=jnp.int32)
    attention_mask = jnp.ones((B, S), jnp.int32)

    out = encode_tokens(tokens, attention_mask, params)
    out = jax.block_until_ready(out)
    assert out.shape == (B, S // T, H), out.shape

    ids = tokens.reshape(-1, T)
    mask = attention_mask.reshape(-1, T)
    ref = reference(ids, mask, params).reshape(B, -1, H)
    # bf16 MXU inputs (f32 accumulation) -> loosened tolerance vs f32 reference
    np.testing.assert_allclose(np.asarray(out), np.asarray(ref),
                               rtol=2e-2, atol=2e-2)
    print("KERNEL_OK")
</pallas_src>

<mosaic_0001>
module attributes {stable_mosaic.version = 11 : i64} {
  func.func @_encoder_kernel(%arg0: i32, %arg1: memref<1x16x1xi32, #tpu.memory_space<vmem>>, %arg2: memref<1x2x1x8xf32, #tpu.memory_space<vmem>>, %arg3: memref<128x64xf32, #tpu.memory_space<vmem>>, %arg4: memref<16x64xf32, #tpu.memory_space<vmem>>, %arg5: memref<2x64xf32, #tpu.memory_space<vmem>>, %arg6: memref<2x64x192xbf16, #tpu.memory_space<vmem>>, %arg7: memref<2x1x192xf32, #tpu.memory_space<vmem>>, %arg8: memref<2x64x64xbf16, #tpu.memory_space<vmem>>, %arg9: memref<2x64x128xbf16, #tpu.memory_space<vmem>>, %arg10: memref<2x1x128xf32, #tpu.memory_space<vmem>>, %arg11: memref<2x128x64xbf16, #tpu.memory_space<vmem>>, %arg12: memref<2x6x64xf32, #tpu.memory_space<vmem>>, %arg13: memref<1x2x64xf32, #tpu.memory_space<vmem>>) attributes {dimension_semantics = [#tpu.dimension_semantics<parallel>], iteration_bounds = array<i64: 2>, scalar_prefetch = 0 : i64, scratch_operands = 0 : i64, tpu.core_type = #tpu.core_type<tc>, window_params = [{transform_indices = @transform_0, window_bounds = array<i64: 1, 16, 1>}, {transform_indices = @transform_1, window_bounds = array<i64: 1, 2, 1, 8>}, {pipeline_mode = #tpu.pipeline_mode<synchronous>, transform_indices = @transform_2, window_bounds = array<i64: 128, 64>}, {pipeline_mode = #tpu.pipeline_mode<synchronous>, transform_indices = @transform_3, window_bounds = array<i64: 16, 64>}, {pipeline_mode = #tpu.pipeline_mode<synchronous>, transform_indices = @transform_4, window_bounds = array<i64: 2, 64>}, {pipeline_mode = #tpu.pipeline_mode<synchronous>, transform_indices = @transform_5, window_bounds = array<i64: 2, 64, 192>}, {pipeline_mode = #tpu.pipeline_mode<synchronous>, transform_indices = @transform_6, window_bounds = array<i64: 2, 1, 192>}, {pipeline_mode = #tpu.pipeline_mode<synchronous>, transform_indices = @transform_7, window_bounds = array<i64: 2, 64, 64>}, {pipeline_mode = #tpu.pipeline_mode<synchronous>, transform_indices = @transform_8, window_bounds = array<i64: 2, 64, 128>}, {pipeline_mode = #tpu.pipeline_mode<synchronous>, transform_indices = @transform_9, window_bounds = array<i64: 2, 1, 128>}, {pipeline_mode = #tpu.pipeline_mode<synchronous>, transform_indices = @transform_10, window_bounds = array<i64: 2, 128, 64>}, {pipeline_mode = #tpu.pipeline_mode<synchronous>, transform_indices = @transform_11, window_bounds = array<i64: 2, 6, 64>}, {transform_indices = @transform_12, window_bounds = array<i64: 1, 2, 64>}]} {
    %c0 = arith.constant 0 : index
    %c0_0 = arith.constant 0 : index
    %c0_1 = arith.constant 0 : index
    %0 = vector.load %arg1[%c0, %c0_0, %c0_1] : memref<1x16x1xi32, #tpu.memory_space<vmem>>, vector<1x16x1xi32>
    %1 = vector.shape_cast %0 : vector<1x16x1xi32> to vector<16x1xi32>
    %c0_2 = arith.constant 0 : index
    %c0_3 = arith.constant 0 : index
    %c0_4 = arith.constant 0 : index
    %c0_5 = arith.constant 0 : index
    %2 = vector.load %arg2[%c0_2, %c0_3, %c0_4, %c0_5] : memref<1x2x1x8xf32, #tpu.memory_space<vmem>>, vector<1x2x1x8xf32>
    %3 = vector.shape_cast %2 : vector<1x2x1x8xf32> to vector<2x1x8xf32>
    %4 = tpu.iota {dimensions = array<i32: 1>} : vector<16x128xi32>
    %5 = vector.broadcast %1 : vector<16x1xi32> to vector<16x128xi32>
    %6 = arith.cmpi eq, %5, %4 : vector<16x128xi32>
    %7 = arith.extui %6 : vector<16x128xi1> to vector<16x128xi32>
    %8 = arith.sitofp %7 : vector<16x128xi32> to vector<16x128xf32>
    %c0_6 = arith.constant 0 : index
    %c0_7 = arith.constant 0 : index
    %9 = vector.load %arg3[%c0_6, %c0_7] : memref<128x64xf32, #tpu.memory_space<vmem>>, vector<128x64xf32>
    %cst = arith.constant dense<0.000000e+00> : vector<16x64xf32>
    %10 = tpu.matmul %8, %9, %cst {dimension_numbers = #tpu.dot_dimension_numbers<[1], [0], [0], [1], [0, 0, 1, 1], [], []>} : vector<16x128xf32>, vector<128x64xf32>, vector<16x64xf32> -> vector<16x64xf32>
    %c0_8 = arith.constant 0 : index
    %c0_9 = arith.constant 0 : index
    %11 = vector.load %arg4[%c0_8, %c0_9] : memref<16x64xf32, #tpu.memory_space<vmem>>, vector<16x64xf32>
    %12 = arith.addf %10, %11 : vector<16x64xf32>
    %c0_10 = arith.constant 0 : index
    %c0_11 = arith.constant 0 : index
    %13 = vector.load %arg5[%c0_10, %c0_11] : memref<2x64xf32, #tpu.memory_space<vmem>>, vector<2x64xf32>
    %14 = vector.extract_strided_slice %13 {offsets = [0, 0], sizes = [1, 64], strides = [1, 1]} : vector<2x64xf32> to vector<1x64xf32>
    %15 = vector.extract_strided_slice %13 {offsets = [1, 0], sizes = [1, 64], strides = [1, 1]} : vector<2x64xf32> to vector<1x64xf32>
    %cst_12 = arith.constant dense<0.000000e+00> : vector<16xf32>
    %16 = vector.multi_reduction <add>, %12, %cst_12 [1] : vector<16x64xf32> to vector<16xf32>
    %17 = vector.shape_cast %16 : vector<16xf32> to vector<16x1xf32>
    %cst_13 = arith.constant 6.400000e+01 : f32
    %18 = vector.broadcast %cst_13 : f32 to vector<16x1xf32>
    %19 = arith.divf %17, %18 : vector<16x1xf32>
    %20 = vector.broadcast %19 : vector<16x1xf32> to vector<16x64xf32>
    %21 = arith.subf %12, %20 : vector<16x64xf32>
    %22 = arith.mulf %21, %21 : vector<16x64xf32>
    %cst_14 = arith.constant dense<0.000000e+00> : vector<16xf32>
    %23 = vector.multi_reduction <add>, %22, %cst_14 [1] : vector<16x64xf32> to vector<16xf32>
    %24 = vector.shape_cast %23 : vector<16xf32> to vector<16x1xf32>
    %cst_15 = arith.constant 6.400000e+01 : f32
    %25 = vector.broadcast %cst_15 : f32 to vector<16x1xf32>
    %26 = arith.divf %24, %25 : vector<16x1xf32>
    %27 = vector.broadcast %19 : vector<16x1xf32> to vector<16x64xf32>
    %28 = arith.subf %12, %27 : vector<16x64xf32>
    %cst_16 = arith.constant 9.99999996E-13 : f32
    %29 = vector.broadcast %cst_16 : f32 to vector<16x1xf32>
    %30 = arith.addf %26, %29 : vector<16x1xf32>
    %31 = math.rsqrt %30 : vector<16x1xf32>
    %32 = vector.broadcast %31 : vector<16x1xf32> to vector<16x64xf32>
    %33 = arith.mulf %28, %32 : vector<16x64xf32>
    %34 = vector.broadcast %14 : vector<1x64xf32> to vector<16x64xf32>
    %35 = arith.mulf %33, %34 : vector<16x64xf32>
    %36 = vector.broadcast %15 : vector<1x64xf32> to vector<16x64xf32>
    %37 = arith.addf %35, %36 : vector<16x64xf32>
    %c0_17 = arith.constant 0 : index
    %c0_18 = arith.constant 0 : index
    %c0_19 = arith.constant 0 : index
    %38 = vector.load %arg12[%c0_17, %c0_18, %c0_19] : memref<2x6x64xf32, #tpu.memory_space<vmem>>, vector<1x6x64xf32>
    %39 = vector.shape_cast %38 : vector<1x6x64xf32> to vector<6x64xf32>
    %40 = vector.extract_strided_slice %39 {offsets = [0, 0], sizes = [1, 64], strides = [1, 1]} : vector<6x64xf32> to vector<1x64xf32>
    %41 = vector.extract_strided_slice %39 {offsets = [1, 0], sizes = [1, 64], strides = [1, 1]} : vector<6x64xf32> to vector<1x64xf32>
    %42 = vector.extract_strided_slice %39 {offsets = [2, 0], sizes = [1, 64], strides = [1, 1]} : vector<6x64xf32> to vector<1x64xf32>
    %43 = vector.extract_strided_slice %39 {offsets = [3, 0], sizes = [1, 64], strides = [1, 1]} : vector<6x64xf32> to vector<1x64xf32>
    %44 = vector.extract_strided_slice %39 {offsets = [4, 0], sizes = [1, 64], strides = [1, 1]} : vector<6x64xf32> to vector<1x64xf32>
    %45 = vector.extract_strided_slice %39 {offsets = [5, 0], sizes = [1, 64], strides = [1, 1]} : vector<6x64xf32> to vector<1x64xf32>
    %c0_20 = arith.constant 0 : index
    %c0_21 = arith.constant 0 : index
    %c0_22 = arith.constant 0 : index
    %46 = vector.load %arg8[%c0_20, %c0_21, %c0_22] : memref<2x64x64xbf16, #tpu.memory_space<vmem>>, vector<1x64x64xbf16>
    %47 = vector.shape_cast %46 : vector<1x64x64xbf16> to vector<64x64xbf16>
    %48 = arith.truncf %37 : vector<16x64xf32> to vector<16x64xbf16>
    %c0_23 = arith.constant 0 : index
    %c0_24 = arith.constant 0 : index
    %c0_25 = arith.constant 0 : index
    %49 = vector.load %arg6[%c0_23, %c0_24, %c0_25] : memref<2x64x192xbf16, #tpu.memory_space<vmem>>, vector<1x64x192xbf16>
    %50 = vector.shape_cast %49 : vector<1x64x192xbf16> to vector<64x192xbf16>
    %cst_26 = arith.constant dense<0.000000e+00> : vector<16x192xf32>
    %51 = tpu.matmul %48, %50, %cst_26 {dimension_numbers = #tpu.dot_dimension_numbers<[1], [0], [0], [1], [0, 0, 1, 1], [], []>} : vector<16x64xbf16>, vector<64x192xbf16>, vector<16x192xf32> -> vector<16x192xf32>
    %c0_27 = arith.constant 0 : index
    %c0_28 = arith.constant 0 : index
    %c0_29 = arith.constant 0 : index
    %52 = vector.load %arg7[%c0_27, %c0_28, %c0_29] : memref<2x1x192xf32, #tpu.memory_space<vmem>>, vector<1x1x192xf32>
    %53 = vector.shape_cast %52 : vector<1x1x192xf32> to vector<1x192xf32>
    %54 = vector.broadcast %53 : vector<1x192xf32> to vector<16x192xf32>
    %55 = arith.addf %51, %54 : vector<16x192xf32>
    %56 = vector.shape_cast %55 : vector<16x192xf32> to vector<2x8x192xf32>
    %57 = vector.extract_strided_slice %56 {offsets = [0, 0, 0], sizes = [2, 8, 32], strides = [1, 1, 1]} : vector<2x8x192xf32> to vector<2x8x32xf32>
    %58 = arith.truncf %57 : vector<2x8x32xf32> to vector<2x8x32xbf16>
    %59 = vector.extract_strided_slice %56 {offsets = [0, 0, 64], sizes = [2, 8, 32], strides = [1, 1, 1]} : vector<2x8x192xf32> to vector<2x8x32xf32>
    %60 = arith.truncf %59 : vector<2x8x32xf32> to vector<2x8x32xbf16>
    %61 = vector.extract_strided_slice %56 {offsets = [0, 0, 128], sizes = [2, 8, 32], strides = [1, 1, 1]} : vector<2x8x192xf32> to vector<2x8x32xf32>
    %62 = arith.truncf %61 : vector<2x8x32xf32> to vector<2x8x32xbf16>
    "tpu.trace_start"() <{level = 10 : i32, message = "btd,bsd->bts"}> : () -> ()
    %cst_30 = arith.constant dense<0.000000e+00> : vector<2x8x8xf32>
    %63 = tpu.matmul %58, %60, %cst_30 {dimension_numbers = #tpu.dot_dimension_numbers<[2], [2], [1], [1], [0, 0, 0, 1, 1, 1], [0], [0]>} : vector<2x8x32xbf16>, vector<2x8x32xbf16>, vector<2x8x8xf32> -> vector<2x8x8xf32>
    "tpu.trace_stop"() : () -> ()
    %cst_31 = arith.constant 0.176776692 : f32
    %64 = vector.broadcast %cst_31 : f32 to vector<2x8x8xf32>
    %65 = arith.mulf %63, %64 : vector<2x8x8xf32>
    %66 = vector.broadcast %3 : vector<2x1x8xf32> to vector<2x8x8xf32>
    %67 = arith.addf %65, %66 : vector<2x8x8xf32>
    %cst_32 = arith.constant dense<0xFF800000> : vector<2x8xf32>
    %68 = vector.multi_reduction <maximumf>, %67, %cst_32 [2] : vector<2x8x8xf32> to vector<2x8xf32>
    %69 = vector.shape_cast %68 : vector<2x8xf32> to vector<2x8x1xf32>
    %70 = vector.broadcast %69 : vector<2x8x1xf32> to vector<2x8x8xf32>
    %71 = arith.subf %67, %70 : vector<2x8x8xf32>
    %72 = math.exp %71 : vector<2x8x8xf32>
    %cst_33 = arith.constant dense<0.000000e+00> : vector<2x8xf32>
    %73 = vector.multi_reduction <add>, %72, %cst_33 [2] : vector<2x8x8xf32> to vector<2x8xf32>
    %74 = vector.shape_cast %73 : vector<2x8xf32> to vector<2x8x1xf32>
    %75 = tpu.reciprocal %74 {approx = true} : vector<2x8x1xf32> -> vector<2x8x1xf32>
    %76 = vector.broadcast %75 : vector<2x8x1xf32> to vector<2x8x8xf32>
    %77 = arith.mulf %72, %76 : vector<2x8x8xf32>
    %78 = arith.truncf %77 : vector<2x8x8xf32> to vector<2x8x8xbf16>
    "tpu.trace_start"() <{level = 10 : i32, message = "bts,bsd->btd"}> : () -> ()
    %cst_34 = arith.constant dense<0.000000e+00> : vector<2x8x32xf32>
    %79 = tpu.matmul %78, %62, %cst_34 {dimension_numbers = #tpu.dot_dimension_numbers<[2], [1], [1], [2], [0, 0, 0, 1, 1, 2], [0], [0]>} : vector<2x8x8xbf16>, vector<2x8x32xbf16>, vector<2x8x32xf32> -> vector<2x8x32xf32>
    "tpu.trace_stop"() : () -> ()
    %80 = vector.shape_cast %79 : vector<2x8x32xf32> to vector<16x32xf32>
    %81 = arith.truncf %80 : vector<16x32xf32> to vector<16x32xbf16>
    %82 = vector.extract_strided_slice %47 {offsets = [0, 0], sizes = [32, 64], strides = [1, 1]} : vector<64x64xbf16> to vector<32x64xbf16>
    %cst_35 = arith.constant dense<0.000000e+00> : vector<16x64xf32>
    %83 = tpu.matmul %81, %82, %cst_35 {dimension_numbers = #tpu.dot_dimension_numbers<[1], [0], [0], [1], [0, 0, 1, 1], [], []>} : vector<16x32xbf16>, vector<32x64xbf16>, vector<16x64xf32> -> vector<16x64xf32>
    %84 = vector.extract_strided_slice %56 {offsets = [0, 0, 32], sizes = [2, 8, 32], strides = [1, 1, 1]} : vector<2x8x192xf32> to vector<2x8x32xf32>
    %85 = arith.truncf %84 : vector<2x8x32xf32> to vector<2x8x32xbf16>
    %86 = vector.extract_strided_slice %56 {offsets = [0, 0, 96], sizes = [2, 8, 32], strides = [1, 1, 1]} : vector<2x8x192xf32> to vector<2x8x32xf32>
    %87 = arith.truncf %86 : vector<2x8x32xf32> to vector<2x8x32xbf16>
    %88 = vector.extract_strided_slice %56 {offsets = [0, 0, 160], sizes = [2, 8, 32], strides = [1, 1, 1]} : vector<2x8x192xf32> to vector<2x8x32xf32>
    %89 = arith.truncf %88 : vector<2x8x32xf32> to vector<2x8x32xbf16>
    "tpu.trace_start"() <{level = 10 : i32, message = "btd,bsd->bts"}> : () -> ()
    %cst_36 = arith.constant dense<0.000000e+00> : vector<2x8x8xf32>
    %90 = tpu.matmul %85, %87, %cst_36 {dimension_numbers = #tpu.dot_dimension_numbers<[2], [2], [1], [1], [0, 0, 0, 1, 1, 1], [0], [0]>} : vector<2x8x32xbf16>, vector<2x8x32xbf16>, vector<2x8x8xf32> -> vector<2x8x8xf32>
    "tpu.trace_stop"() : () -> ()
    %cst_37 = arith.constant 0.176776692 : f32
    %91 = vector.broadcast %cst_37 : f32 to vector<2x8x8xf32>
    %92 = arith.mulf %90, %91 : vector<2x8x8xf32>
    %93 = vector.broadcast %3 : vector<2x1x8xf32> to vector<2x8x8xf32>
    %94 = arith.addf %92, %93 : vector<2x8x8xf32>
    %cst_38 = arith.constant dense<0xFF800000> : vector<2x8xf32>
    %95 = vector.multi_reduction <maximumf>, %94, %cst_38 [2] : vector<2x8x8xf32> to vector<2x8xf32>
    %96 = vector.shape_cast %95 : vector<2x8xf32> to vector<2x8x1xf32>
    %97 = vector.broadcast %96 : vector<2x8x1xf32> to vector<2x8x8xf32>
    %98 = arith.subf %94, %97 : vector<2x8x8xf32>
    %99 = math.exp %98 : vector<2x8x8xf32>
    %cst_39 = arith.constant dense<0.000000e+00> : vector<2x8xf32>
    %100 = vector.multi_reduction <add>, %99, %cst_39 [2] : vector<2x8x8xf32> to vector<2x8xf32>
    %101 = vector.shape_cast %100 : vector<2x8xf32> to vector<2x8x1xf32>
    %102 = tpu.reciprocal %101 {approx = true} : vector<2x8x1xf32> -> vector<2x8x1xf32>
    %103 = vector.broadcast %102 : vector<2x8x1xf32> to vector<2x8x8xf32>
    %104 = arith.mulf %99, %103 : vector<2x8x8xf32>
    %105 = arith.truncf %104 : vector<2x8x8xf32> to vector<2x8x8xbf16>
    "tpu.trace_start"() <{level = 10 : i32, message = "bts,bsd->btd"}> : () -> ()
    %cst_40 = arith.constant dense<0.000000e+00> : vector<2x8x32xf32>
    %106 = tpu.matmul %105, %89, %cst_40 {dimension_numbers = #tpu.dot_dimension_numbers<[2], [1], [1], [2], [0, 0, 0, 1, 1, 2], [0], [0]>} : vector<2x8x8xbf16>, vector<2x8x32xbf16>, vector<2x8x32xf32> -> vector<2x8x32xf32>
    "tpu.trace_stop"() : () -> ()
    %107 = vector.shape_cast %106 : vector<2x8x32xf32> to vector<16x32xf32>
    %108 = arith.truncf %107 : vector<16x32xf32> to vector<16x32xbf16>
    %109 = vector.extract_strided_slice %47 {offsets = [32, 0], sizes = [32, 64], strides = [1, 1]} : vector<64x64xbf16> to vector<32x64xbf16>
    %cst_41 = arith.constant dense<0.000000e+00> : vector<16x64xf32>
    %110 = tpu.matmul %108, %109, %cst_41 {dimension_numbers = #tpu.dot_dimension_numbers<[1], [0], [0], [1], [0, 0, 1, 1], [], []>} : vector<16x32xbf16>, vector<32x64xbf16>, vector<16x64xf32> -> vector<16x64xf32>
    %111 = arith.addf %83, %110 : vector<16x64xf32>
    %112 = arith.addf %37, %111 : vector<16x64xf32>
    %113 = vector.broadcast %40 : vector<1x64xf32> to vector<16x64xf32>
    %114 = arith.addf %112, %113 : vector<16x64xf32>
    %cst_42 = arith.constant dense<0.000000e+00> : vector<16xf32>
    %115 = vector.multi_reduction <add>, %114, %cst_42 [1] : vector<16x64xf32> to vector<16xf32>
    %116 = vector.shape_cast %115 : vector<16xf32> to vector<16x1xf32>
    %cst_43 = arith.constant 6.400000e+01 : f32
    %117 = vector.broadcast %cst_43 : f32 to vector<16x1xf32>
    %118 = arith.divf %116, %117 : vector<16x1xf32>
    %119 = vector.broadcast %118 : vector<16x1xf32> to vector<16x64xf32>
    %120 = arith.subf %114, %119 : vector<16x64xf32>
    %121 = arith.mulf %120, %120 : vector<16x64xf32>
    %cst_44 = arith.constant dense<0.000000e+00> : vector<16xf32>
    %122 = vector.multi_reduction <add>, %121, %cst_44 [1] : vector<16x64xf32> to vector<16xf32>
    %123 = vector.shape_cast %122 : vector<16xf32> to vector<16x1xf32>
    %cst_45 = arith.constant 6.400000e+01 : f32
    %124 = vector.broadcast %cst_45 : f32 to vector<16x1xf32>
    %125 = arith.divf %123, %124 : vector<16x1xf32>
    %126 = vector.broadcast %118 : vector<16x1xf32> to vector<16x64xf32>
    %127 = arith.subf %114, %126 : vector<16x64xf32>
    %cst_46 = arith.constant 9.99999996E-13 : f32
    %128 = vector.broadcast %cst_46 : f32 to vector<16x1xf32>
    %129 = arith.addf %125, %128 : vector<16x1xf32>
    %130 = math.rsqrt %129 : vector<16x1xf32>
    %131 = vector.broadcast %130 : vector<16x1xf32> to vector<16x64xf32>
    %132 = arith.mulf %127, %131 : vector<16x64xf32>
    %133 = vector.broadcast %41 : vector<1x64xf32> to vector<16x64xf32>
    %134 = arith.mulf %132, %133 : vector<16x64xf32>
    %135 = vector.broadcast %42 : vector<1x64xf32> to vector<16x64xf32>
    %136 = arith.addf %134, %135 : vector<16x64xf32>
    %137 = arith.truncf %136 : vector<16x64xf32> to vector<16x64xbf16>
    %c0_47 = arith.constant 0 : index
    %c0_48 = arith.constant 0 : index
    %c0_49 = arith.constant 0 : index
    %138 = vector.load %arg9[%c0_47, %c0_48, %c0_49] : memref<2x64x128xbf16, #tpu.memory_space<vmem>>, vector<1x64x128xbf16>
    %139 = vector.shape_cast %138 : vector<1x64x128xbf16> to vector<64x128xbf16>
    %cst_50 = arith.constant dense<0.000000e+00> : vector<16x128xf32>
    %140 = tpu.matmul %137, %139, %cst_50 {dimension_numbers = #tpu.dot_dimension_numbers<[1], [0], [0], [1], [0, 0, 1, 1], [], []>} : vector<16x64xbf16>, vector<64x128xbf16>, vector<16x128xf32> -> vector<16x128xf32>
    %c0_51 = arith.constant 0 : index
    %c0_52 = arith.constant 0 : index
    %c0_53 = arith.constant 0 : index
    %141 = vector.load %arg10[%c0_51, %c0_52, %c0_53] : memref<2x1x128xf32, #tpu.memory_space<vmem>>, vector<1x1x128xf32>
    %142 = vector.shape_cast %141 : vector<1x1x128xf32> to vector<1x128xf32>
    %143 = vector.broadcast %142 : vector<1x128xf32> to vector<16x128xf32>
    %144 = arith.addf %140, %143 : vector<16x128xf32>
    %145 = arith.mulf %144, %144 : vector<16x128xf32>
    %146 = arith.mulf %144, %145 : vector<16x128xf32>
    %cst_54 = arith.constant 4.471500e-02 : f32
    %147 = vector.broadcast %cst_54 : f32 to vector<16x128xf32>
    %148 = arith.mulf %147, %146 : vector<16x128xf32>
    %149 = arith.addf %144, %148 : vector<16x128xf32>
    %cst_55 = arith.constant 0.797884583 : f32
    %150 = vector.broadcast %cst_55 : f32 to vector<16x128xf32>
    %151 = arith.mulf %150, %149 : vector<16x128xf32>
    %152 = math.tanh %151 : vector<16x128xf32>
    %cst_56 = arith.constant 1.000000e+00 : f32
    %153 = vector.broadcast %cst_56 : f32 to vector<16x128xf32>
    %154 = arith.addf %153, %152 : vector<16x128xf32>
    %cst_57 = arith.constant 5.000000e-01 : f32
    %155 = vector.broadcast %cst_57 : f32 to vector<16x128xf32>
    %156 = arith.mulf %155, %154 : vector<16x128xf32>
    %157 = arith.mulf %144, %156 : vector<16x128xf32>
    %158 = arith.truncf %157 : vector<16x128xf32> to vector<16x128xbf16>
    %c0_58 = arith.constant 0 : index
    %c0_59 = arith.constant 0 : index
    %c0_60 = arith.constant 0 : index
    %159 = vector.load %arg11[%c0_58, %c0_59, %c0_60] : memref<2x128x64xbf16, #tpu.memory_space<vmem>>, vector<1x128x64xbf16>
    %160 = vector.shape_cast %159 : vector<1x128x64xbf16> to vector<128x64xbf16>
    %cst_61 = arith.constant dense<0.000000e+00> : vector<16x64xf32>
    %161 = tpu.matmul %158, %160, %cst_61 {dimension_numbers = #tpu.dot_dimension_numbers<[1], [0], [0], [1], [0, 0, 1, 1], [], []>} : vector<16x128xbf16>, vector<128x64xbf16>, vector<16x64xf32> -> vector<16x64xf32>
    %162 = vector.broadcast %43 : vector<1x64xf32> to vector<16x64xf32>
    %163 = arith.addf %161, %162 : vector<16x64xf32>
    %164 = arith.addf %136, %163 : vector<16x64xf32>
    %cst_62 = arith.constant dense<0.000000e+00> : vector<16xf32>
    %165 = vector.multi_reduction <add>, %164, %cst_62 [1] : vector<16x64xf32> to vector<16xf32>
    %166 = vector.shape_cast %165 : vector<16xf32> to vector<16x1xf32>
    %cst_63 = arith.constant 6.400000e+01 : f32
    %167 = vector.broadcast %cst_63 : f32 to vector<16x1xf32>
    %168 = arith.divf %166, %167 : vector<16x1xf32>
    %169 = vector.broadcast %168 : vector<16x1xf32> to vector<16x64xf32>
    %170 = arith.subf %164, %169 : vector<16x64xf32>
    %171 = arith.mulf %170, %170 : vector<16x64xf32>
    %cst_64 = arith.constant dense<0.000000e+00> : vector<16xf32>
    %172 = vector.multi_reduction <add>, %171, %cst_64 [1] : vector<16x64xf32> to vector<16xf32>
    %173 = vector.shape_cast %172 : vector<16xf32> to vector<16x1xf32>
    %cst_65 = arith.constant 6.400000e+01 : f32
    %174 = vector.broadcast %cst_65 : f32 to vector<16x1xf32>
    %175 = arith.divf %173, %174 : vector<16x1xf32>
    %176 = vector.broadcast %168 : vector<16x1xf32> to vector<16x64xf32>
    %177 = arith.subf %164, %176 : vector<16x64xf32>
    %cst_66 = arith.constant 9.99999996E-13 : f32
    %178 = vector.broadcast %cst_66 : f32 to vector<16x1xf32>
    %179 = arith.addf %175, %178 : vector<16x1xf32>
    %180 = math.rsqrt %179 : vector<16x1xf32>
    %181 = vector.broadcast %180 : vector<16x1xf32> to vector<16x64xf32>
    %182 = arith.mulf %177, %181 : vector<16x64xf32>
    %183 = vector.broadcast %44 : vector<1x64xf32> to vector<16x64xf32>
    %184 = arith.mulf %182, %183 : vector<16x64xf32>
    %185 = vector.broadcast %45 : vector<1x64xf32> to vector<16x64xf32>
    %186 = arith.addf %184, %185 : vector<16x64xf32>
    %c1 = arith.constant 1 : index
    %c0_67 = arith.constant 0 : index
    %c0_68 = arith.constant 0 : index
    %187 = vector.load %arg12[%c1, %c0_67, %c0_68] : memref<2x6x64xf32, #tpu.memory_space<vmem>>, vector<1x6x64xf32>
    %188 = vector.shape_cast %187 : vector<1x6x64xf32> to vector<6x64xf32>
    %189 = vector.extract_strided_slice %188 {offsets = [0, 0], sizes = [1, 64], strides = [1, 1]} : vector<6x64xf32> to vector<1x64xf32>
    %190 = vector.extract_strided_slice %188 {offsets = [1, 0], sizes = [1, 64], strides = [1, 1]} : vector<6x64xf32> to vector<1x64xf32>
    %191 = vector.extract_strided_slice %188 {offsets = [2, 0], sizes = [1, 64], strides = [1, 1]} : vector<6x64xf32> to vector<1x64xf32>
    %192 = vector.extract_strided_slice %188 {offsets = [3, 0], sizes = [1, 64], strides = [1, 1]} : vector<6x64xf32> to vector<1x64xf32>
    %193 = vector.extract_strided_slice %188 {offsets = [4, 0], sizes = [1, 64], strides = [1, 1]} : vector<6x64xf32> to vector<1x64xf32>
    %194 = vector.extract_strided_slice %188 {offsets = [5, 0], sizes = [1, 64], strides = [1, 1]} : vector<6x64xf32> to vector<1x64xf32>
    %c1_69 = arith.constant 1 : index
    %c0_70 = arith.constant 0 : index
    %c0_71 = arith.constant 0 : index
    %195 = vector.load %arg8[%c1_69, %c0_70, %c0_71] : memref<2x64x64xbf16, #tpu.memory_space<vmem>>, vector<1x64x64xbf16>
    %196 = vector.shape_cast %195 : vector<1x64x64xbf16> to vector<64x64xbf16>
    %197 = arith.truncf %186 : vector<16x64xf32> to vector<16x64xbf16>
    %c1_72 = arith.constant 1 : index
    %c0_73 = arith.constant 0 : index
    %c0_74 = arith.constant 0 : index
    %198 = vector.load %arg6[%c1_72, %c0_73, %c0_74] : memref<2x64x192xbf16, #tpu.memory_space<vmem>>, vector<1x64x192xbf16>
    %199 = vector.shape_cast %198 : vector<1x64x192xbf16> to vector<64x192xbf16>
    %cst_75 = arith.constant dense<0.000000e+00> : vector<16x192xf32>
    %200 = tpu.matmul %197, %199, %cst_75 {dimension_numbers = #tpu.dot_dimension_numbers<[1], [0], [0], [1], [0, 0, 1, 1], [], []>} : vector<16x64xbf16>, vector<64x192xbf16>, vector<16x192xf32> -> vector<16x192xf32>
    %c1_76 = arith.constant 1 : index
    %c0_77 = arith.constant 0 : index
    %c0_78 = arith.constant 0 : index
    %201 = vector.load %arg7[%c1_76, %c0_77, %c0_78] : memref<2x1x192xf32, #tpu.memory_space<vmem>>, vector<1x1x192xf32>
    %202 = vector.shape_cast %201 : vector<1x1x192xf32> to vector<1x192xf32>
    %203 = vector.broadcast %202 : vector<1x192xf32> to vector<16x192xf32>
    %204 = arith.addf %200, %203 : vector<16x192xf32>
    %205 = vector.shape_cast %204 : vector<16x192xf32> to vector<2x8x192xf32>
    %206 = vector.extract_strided_slice %205 {offsets = [0, 0, 0], sizes = [2, 8, 32], strides = [1, 1, 1]} : vector<2x8x192xf32> to vector<2x8x32xf32>
    %207 = arith.truncf %206 : vector<2x8x32xf32> to vector<2x8x32xbf16>
    %208 = vector.extract_strided_slice %205 {offsets = [0, 0, 64], sizes = [2, 8, 32], strides = [1, 1, 1]} : vector<2x8x192xf32> to vector<2x8x32xf32>
    %209 = arith.truncf %208 : vector<2x8x32xf32> to vector<2x8x32xbf16>
    %210 = vector.extract_strided_slice %205 {offsets = [0, 0, 128], sizes = [2, 8, 32], strides = [1, 1, 1]} : vector<2x8x192xf32> to vector<2x8x32xf32>
    %211 = arith.truncf %210 : vector<2x8x32xf32> to vector<2x8x32xbf16>
    "tpu.trace_start"() <{level = 10 : i32, message = "btd,bsd->bts"}> : () -> ()
    %cst_79 = arith.constant dense<0.000000e+00> : vector<2x8x8xf32>
    %212 = tpu.matmul %207, %209, %cst_79 {dimension_numbers = #tpu.dot_dimension_numbers<[2], [2], [1], [1], [0, 0, 0, 1, 1, 1], [0], [0]>} : vector<2x8x32xbf16>, vector<2x8x32xbf16>, vector<2x8x8xf32> -> vector<2x8x8xf32>
    "tpu.trace_stop"() : () -> ()
    %cst_80 = arith.constant 0.176776692 : f32
    %213 = vector.broadcast %cst_80 : f32 to vector<2x8x8xf32>
    %214 = arith.mulf %212, %213 : vector<2x8x8xf32>
    %215 = vector.broadcast %3 : vector<2x1x8xf32> to vector<2x8x8xf32>
    %216 = arith.addf %214, %215 : vector<2x8x8xf32>
    %cst_81 = arith.constant dense<0xFF800000> : vector<2x8xf32>
    %217 = vector.multi_reduction <maximumf>, %216, %cst_81 [2] : vector<2x8x8xf32> to vector<2x8xf32>
    %218 = vector.shape_cast %217 : vector<2x8xf32> to vector<2x8x1xf32>
    %219 = vector.broadcast %218 : vector<2x8x1xf32> to vector<2x8x8xf32>
    %220 = arith.subf %216, %219 : vector<2x8x8xf32>
    %221 = math.exp %220 : vector<2x8x8xf32>
    %cst_82 = arith.constant dense<0.000000e+00> : vector<2x8xf32>
    %222 = vector.multi_reduction <add>, %221, %cst_82 [2] : vector<2x8x8xf32> to vector<2x8xf32>
    %223 = vector.shape_cast %222 : vector<2x8xf32> to vector<2x8x1xf32>
    %224 = tpu.reciprocal %223 {approx = true} : vector<2x8x1xf32> -> vector<2x8x1xf32>
    %225 = vector.broadcast %224 : vector<2x8x1xf32> to vector<2x8x8xf32>
    %226 = arith.mulf %221, %225 : vector<2x8x8xf32>
    %227 = arith.truncf %226 : vector<2x8x8xf32> to vector<2x8x8xbf16>
    "tpu.trace_start"() <{level = 10 : i32, message = "bts,bsd->btd"}> : () -> ()
    %cst_83 = arith.constant dense<0.000000e+00> : vector<2x8x32xf32>
    %228 = tpu.matmul %227, %211, %cst_83 {dimension_numbers = #tpu.dot_dimension_numbers<[2], [1], [1], [2], [0, 0, 0, 1, 1, 2], [0], [0]>} : vector<2x8x8xbf16>, vector<2x8x32xbf16>, vector<2x8x32xf32> -> vector<2x8x32xf32>
    "tpu.trace_stop"() : () -> ()
    %229 = vector.shape_cast %228 : vector<2x8x32xf32> to vector<16x32xf32>
    %230 = arith.truncf %229 : vector<16x32xf32> to vector<16x32xbf16>
    %231 = vector.extract_strided_slice %196 {offsets = [0, 0], sizes = [32, 64], strides = [1, 1]} : vector<64x64xbf16> to vector<32x64xbf16>
    %cst_84 = arith.constant dense<0.000000e+00> : vector<16x64xf32>
    %232 = tpu.matmul %230, %231, %cst_84 {dimension_numbers = #tpu.dot_dimension_numbers<[1], [0], [0], [1], [0, 0, 1, 1], [], []>} : vector<16x32xbf16>, vector<32x64xbf16>, vector<16x64xf32> -> vector<16x64xf32>
    %233 = vector.extract_strided_slice %205 {offsets = [0, 0, 32], sizes = [2, 8, 32], strides = [1, 1, 1]} : vector<2x8x192xf32> to vector<2x8x32xf32>
    %234 = arith.truncf %233 : vector<2x8x32xf32> to vector<2x8x32xbf16>
    %235 = vector.extract_strided_slice %205 {offsets = [0, 0, 96], sizes = [2, 8, 32], strides = [1, 1, 1]} : vector<2x8x192xf32> to vector<2x8x32xf32>
    %236 = arith.truncf %235 : vector<2x8x32xf32> to vector<2x8x32xbf16>
    %237 = vector.extract_strided_slice %205 {offsets = [0, 0, 160], sizes = [2, 8, 32], strides = [1, 1, 1]} : vector<2x8x192xf32> to vector<2x8x32xf32>
    %238 = arith.truncf %237 : vector<2x8x32xf32> to vector<2x8x32xbf16>
    "tpu.trace_start"() <{level = 10 : i32, message = "btd,bsd->bts"}> : () -> ()
    %cst_85 = arith.constant dense<0.000000e+00> : vector<2x8x8xf32>
    %239 = tpu.matmul %234, %236, %cst_85 {dimension_numbers = #tpu.dot_dimension_numbers<[2], [2], [1], [1], [0, 0, 0, 1, 1, 1], [0], [0]>} : vector<2x8x32xbf16>, vector<2x8x32xbf16>, vector<2x8x8xf32> -> vector<2x8x8xf32>
    "tpu.trace_stop"() : () -> ()
    %cst_86 = arith.constant 0.176776692 : f32
    %240 = vector.broadcast %cst_86 : f32 to vector<2x8x8xf32>
    %241 = arith.mulf %239, %240 : vector<2x8x8xf32>
    %242 = vector.broadcast %3 : vector<2x1x8xf32> to vector<2x8x8xf32>
    %243 = arith.addf %241, %242 : vector<2x8x8xf32>
    %cst_87 = arith.constant dense<0xFF800000> : vector<2x8xf32>
    %244 = vector.multi_reduction <maximumf>, %243, %cst_87 [2] : vector<2x8x8xf32> to vector<2x8xf32>
    %245 = vector.shape_cast %244 : vector<2x8xf32> to vector<2x8x1xf32>
    %246 = vector.broadcast %245 : vector<2x8x1xf32> to vector<2x8x8xf32>
    %247 = arith.subf %243, %246 : vector<2x8x8xf32>
    %248 = math.exp %247 : vector<2x8x8xf32>
    %cst_88 = arith.constant dense<0.000000e+00> : vector<2x8xf32>
    %249 = vector.multi_reduction <add>, %248, %cst_88 [2] : vector<2x8x8xf32> to vector<2x8xf32>
    %250 = vector.shape_cast %249 : vector<2x8xf32> to vector<2x8x1xf32>
    %251 = tpu.reciprocal %250 {approx = true} : vector<2x8x1xf32> -> vector<2x8x1xf32>
    %252 = vector.broadcast %251 : vector<2x8x1xf32> to vector<2x8x8xf32>
    %253 = arith.mulf %248, %252 : vector<2x8x8xf32>
    %254 = arith.truncf %253 : vector<2x8x8xf32> to vector<2x8x8xbf16>
    "tpu.trace_start"() <{level = 10 : i32, message = "bts,bsd->btd"}> : () -> ()
    %cst_89 = arith.constant dense<0.000000e+00> : vector<2x8x32xf32>
    %255 = tpu.matmul %254, %238, %cst_89 {dimension_numbers = #tpu.dot_dimension_numbers<[2], [1], [1], [2], [0, 0, 0, 1, 1, 2], [0], [0]>} : vector<2x8x8xbf16>, vector<2x8x32xbf16>, vector<2x8x32xf32> -> vector<2x8x32xf32>
    "tpu.trace_stop"() : () -> ()
    %256 = vector.shape_cast %255 : vector<2x8x32xf32> to vector<16x32xf32>
    %257 = arith.truncf %256 : vector<16x32xf32> to vector<16x32xbf16>
    %258 = vector.extract_strided_slice %196 {offsets = [32, 0], sizes = [32, 64], strides = [1, 1]} : vector<64x64xbf16> to vector<32x64xbf16>
    %cst_90 = arith.constant dense<0.000000e+00> : vector<16x64xf32>
    %259 = tpu.matmul %257, %258, %cst_90 {dimension_numbers = #tpu.dot_dimension_numbers<[1], [0], [0], [1], [0, 0, 1, 1], [], []>} : vector<16x32xbf16>, vector<32x64xbf16>, vector<16x64xf32> -> vector<16x64xf32>
    %260 = arith.addf %232, %259 : vector<16x64xf32>
    %261 = arith.addf %186, %260 : vector<16x64xf32>
    %262 = vector.broadcast %189 : vector<1x64xf32> to vector<16x64xf32>
    %263 = arith.addf %261, %262 : vector<16x64xf32>
    %cst_91 = arith.constant dense<0.000000e+00> : vector<16xf32>
    %264 = vector.multi_reduction <add>, %263, %cst_91 [1] : vector<16x64xf32> to vector<16xf32>
    %265 = vector.shape_cast %264 : vector<16xf32> to vector<16x1xf32>
    %cst_92 = arith.constant 6.400000e+01 : f32
    %266 = vector.broadcast %cst_92 : f32 to vector<16x1xf32>
    %267 = arith.divf %265, %266 : vector<16x1xf32>
    %268 = vector.broadcast %267 : vector<16x1xf32> to vector<16x64xf32>
    %269 = arith.subf %263, %268 : vector<16x64xf32>
    %270 = arith.mulf %269, %269 : vector<16x64xf32>
    %cst_93 = arith.constant dense<0.000000e+00> : vector<16xf32>
    %271 = vector.multi_reduction <add>, %270, %cst_93 [1] : vector<16x64xf32> to vector<16xf32>
    %272 = vector.shape_cast %271 : vector<16xf32> to vector<16x1xf32>
    %cst_94 = arith.constant 6.400000e+01 : f32
    %273 = vector.broadcast %cst_94 : f32 to vector<16x1xf32>
    %274 = arith.divf %272, %273 : vector<16x1xf32>
    %275 = vector.broadcast %267 : vector<16x1xf32> to vector<16x64xf32>
    %276 = arith.subf %263, %275 : vector<16x64xf32>
    %cst_95 = arith.constant 9.99999996E-13 : f32
    %277 = vector.broadcast %cst_95 : f32 to vector<16x1xf32>
    %278 = arith.addf %274, %277 : vector<16x1xf32>
    %279 = math.rsqrt %278 : vector<16x1xf32>
    %280 = vector.broadcast %279 : vector<16x1xf32> to vector<16x64xf32>
    %281 = arith.mulf %276, %280 : vector<16x64xf32>
    %282 = vector.broadcast %190 : vector<1x64xf32> to vector<16x64xf32>
    %283 = arith.mulf %281, %282 : vector<16x64xf32>
    %284 = vector.broadcast %191 : vector<1x64xf32> to vector<16x64xf32>
    %285 = arith.addf %283, %284 : vector<16x64xf32>
    %286 = arith.truncf %285 : vector<16x64xf32> to vector<16x64xbf16>
    %c1_96 = arith.constant 1 : index
    %c0_97 = arith.constant 0 : index
    %c0_98 = arith.constant 0 : index
    %287 = vector.load %arg9[%c1_96, %c0_97, %c0_98] : memref<2x64x128xbf16, #tpu.memory_space<vmem>>, vector<1x64x128xbf16>
    %288 = vector.shape_cast %287 : vector<1x64x128xbf16> to vector<64x128xbf16>
    %cst_99 = arith.constant dense<0.000000e+00> : vector<16x128xf32>
    %289 = tpu.matmul %286, %288, %cst_99 {dimension_numbers = #tpu.dot_dimension_numbers<[1], [0], [0], [1], [0, 0, 1, 1], [], []>} : vector<16x64xbf16>, vector<64x128xbf16>, vector<16x128xf32> -> vector<16x128xf32>
    %c1_100 = arith.constant 1 : index
    %c0_101 = arith.constant 0 : index
    %c0_102 = arith.constant 0 : index
    %290 = vector.load %arg10[%c1_100, %c0_101, %c0_102] : memref<2x1x128xf32, #tpu.memory_space<vmem>>, vector<1x1x128xf32>
    %291 = vector.shape_cast %290 : vector<1x1x128xf32> to vector<1x128xf32>
    %292 = vector.broadcast %291 : vector<1x128xf32> to vector<16x128xf32>
    %293 = arith.addf %289, %292 : vector<16x128xf32>
    %294 = arith.mulf %293, %293 : vector<16x128xf32>
    %295 = arith.mulf %293, %294 : vector<16x128xf32>
    %cst_103 = arith.constant 4.471500e-02 : f32
    %296 = vector.broadcast %cst_103 : f32 to vector<16x128xf32>
    %297 = arith.mulf %296, %295 : vector<16x128xf32>
    %298 = arith.addf %293, %297 : vector<16x128xf32>
    %cst_104 = arith.constant 0.797884583 : f32
    %299 = vector.broadcast %cst_104 : f32 to vector<16x128xf32>
    %300 = arith.mulf %299, %298 : vector<16x128xf32>
    %301 = math.tanh %300 : vector<16x128xf32>
    %cst_105 = arith.constant 1.000000e+00 : f32
    %302 = vector.broadcast %cst_105 : f32 to vector<16x128xf32>
    %303 = arith.addf %302, %301 : vector<16x128xf32>
    %cst_106 = arith.constant 5.000000e-01 : f32
    %304 = vector.broadcast %cst_106 : f32 to vector<16x128xf32>
    %305 = arith.mulf %304, %303 : vector<16x128xf32>
    %306 = arith.mulf %293, %305 : vector<16x128xf32>
    %307 = arith.truncf %306 : vector<16x128xf32> to vector<16x128xbf16>
    %c1_107 = arith.constant 1 : index
    %c0_108 = arith.constant 0 : index
    %c0_109 = arith.constant 0 : index
    %308 = vector.load %arg11[%c1_107, %c0_108, %c0_109] : memref<2x128x64xbf16, #tpu.memory_space<vmem>>, vector<1x128x64xbf16>
    %309 = vector.shape_cast %308 : vector<1x128x64xbf16> to vector<128x64xbf16>
    %cst_110 = arith.constant dense<0.000000e+00> : vector<16x64xf32>
    %310 = tpu.matmul %307, %309, %cst_110 {dimension_numbers = #tpu.dot_dimension_numbers<[1], [0], [0], [1], [0, 0, 1, 1], [], []>} : vector<16x128xbf16>, vector<128x64xbf16>, vector<16x64xf32> -> vector<16x64xf32>
    %311 = vector.broadcast %192 : vector<1x64xf32> to vector<16x64xf32>
    %312 = arith.addf %310, %311 : vector<16x64xf32>
    %313 = arith.addf %285, %312 : vector<16x64xf32>
    %cst_111 = arith.constant dense<0.000000e+00> : vector<16xf32>
    %314 = vector.multi_reduction <add>, %313, %cst_111 [1] : vector<16x64xf32> to vector<16xf32>
    %315 = vector.shape_cast %314 : vector<16xf32> to vector<16x1xf32>
    %cst_112 = arith.constant 6.400000e+01 : f32
    %316 = vector.broadcast %cst_112 : f32 to vector<16x1xf32>
    %317 = arith.divf %315, %316 : vector<16x1xf32>
    %318 = vector.broadcast %317 : vector<16x1xf32> to vector<16x64xf32>
    %319 = arith.subf %313, %318 : vector<16x64xf32>
    %320 = arith.mulf %319, %319 : vector<16x64xf32>
    %cst_113 = arith.constant dense<0.000000e+00> : vector<16xf32>
    %321 = vector.multi_reduction <add>, %320, %cst_113 [1] : vector<16x64xf32> to vector<16xf32>
    %322 = vector.shape_cast %321 : vector<16xf32> to vector<16x1xf32>
    %cst_114 = arith.constant 6.400000e+01 : f32
    %323 = vector.broadcast %cst_114 : f32 to vector<16x1xf32>
    %324 = arith.divf %322, %323 : vector<16x1xf32>
    %325 = vector.broadcast %317 : vector<16x1xf32> to vector<16x64xf32>
    %326 = arith.subf %313, %325 : vector<16x64xf32>
    %cst_115 = arith.constant 9.99999996E-13 : f32
    %327 = vector.broadcast %cst_115 : f32 to vector<16x1xf32>
    %328 = arith.addf %324, %327 : vector<16x1xf32>
    %329 = math.rsqrt %328 : vector<16x1xf32>
    %330 = vector.broadcast %329 : vector<16x1xf32> to vector<16x64xf32>
    %331 = arith.mulf %326, %330 : vector<16x64xf32>
    %332 = vector.broadcast %193 : vector<1x64xf32> to vector<16x64xf32>
    %333 = arith.mulf %331, %332 : vector<16x64xf32>
    %334 = vector.broadcast %194 : vector<1x64xf32> to vector<16x64xf32>
    %335 = arith.addf %333, %334 : vector<16x64xf32>
    %336 = vector.shape_cast %335 : vector<16x64xf32> to vector<2x8x64xf32>
    %cst_116 = arith.constant dense<0.000000e+00> : vector<2x64xf32>
    %337 = vector.multi_reduction <add>, %336, %cst_116 [1] : vector<2x8x64xf32> to vector<2x64xf32>
    %cst_117 = arith.constant 8.000000e+00 : f32
    %338 = vector.broadcast %cst_117 : f32 to vector<2x64xf32>
    %339 = arith.divf %337, %338 : vector<2x64xf32>
    %c0_118 = arith.constant 0 : index
    %c0_119 = arith.constant 0 : index
    %c0_120 = arith.constant 0 : index
    %340 = vector.load %arg13[%c0_118, %c0_119, %c0_120] : memref<1x2x64xf32, #tpu.memory_space<vmem>>, vector<1x2x64xf32>
    %341 = vector.shape_cast %340 : vector<1x2x64xf32> to vector<2x64xf32>
    %342 = vector.shape_cast %339 : vector<2x64xf32> to vector<1x2x64xf32>
    tpu.vector_store %arg13[%c0_118, %c0_119, %c0_120], %342 {strides = array<i32>} : memref<1x2x64xf32, #tpu.memory_space<vmem>>, vector<1x2x64xf32>,
    return
  }
  func.func @transform_0(%arg0: i32) -> (i32, i32, i32) {
    %c0_i32 = arith.constant 0 : i32
    %c0_i32_0 = arith.constant 0 : i32
    %c0_i32_1 = arith.constant 0 : i32
    return %arg0, %c0_i32, %c0_i32_0 : i32, i32, i32
  }
  func.func @transform_1(%arg0: i32) -> (i32, i32, i32, i32) {
    %c0_i32 = arith.constant 0 : i32
    %c0_i32_0 = arith.constant 0 : i32
    %c0_i32_1 = arith.constant 0 : i32
    %c0_i32_2 = arith.constant 0 : i32
    return %arg0, %c0_i32, %c0_i32_0, %c0_i32_1 : i32, i32, i32, i32
  }
  func.func @transform_2(%arg0: i32) -> (i32, i32) {
    %c0_i32 = arith.constant 0 : i32
    %c0_i32_0 = arith.constant 0 : i32
    %c0_i32_1 = arith.constant 0 : i32
    return %c0_i32, %c0_i32_0 : i32, i32
  }
  func.func @transform_3(%arg0: i32) -> (i32, i32) {
    %c0_i32 = arith.constant 0 : i32
    %c0_i32_0 = arith.constant 0 : i32
    %c0_i32_1 = arith.constant 0 : i32
    return %c0_i32, %c0_i32_0 : i32, i32
  }
  func.func @transform_4(%arg0: i32) -> (i32, i32) {
    %c0_i32 = arith.constant 0 : i32
    %c0_i32_0 = arith.constant 0 : i32
    %c0_i32_1 = arith.constant 0 : i32
    return %c0_i32, %c0_i32_0 : i32, i32
  }
  func.func @transform_5(%arg0: i32) -> (i32, i32, i32) {
    %c0_i32 = arith.constant 0 : i32
    %c0_i32_0 = arith.constant 0 : i32
    %c0_i32_1 = arith.constant 0 : i32
    %c0_i32_2 = arith.constant 0 : i32
    return %c0_i32, %c0_i32_0, %c0_i32_1 : i32, i32, i32
  }
  func.func @transform_6(%arg0: i32) -> (i32, i32, i32) {
    %c0_i32 = arith.constant 0 : i32
    %c0_i32_0 = arith.constant 0 : i32
    %c0_i32_1 = arith.constant 0 : i32
    %c0_i32_2 = arith.constant 0 : i32
    return %c0_i32, %c0_i32_0, %c0_i32_1 : i32, i32, i32
  }
  func.func @transform_7(%arg0: i32) -> (i32, i32, i32) {
    %c0_i32 = arith.constant 0 : i32
    %c0_i32_0 = arith.constant 0 : i32
    %c0_i32_1 = arith.constant 0 : i32
    %c0_i32_2 = arith.constant 0 : i32
    return %c0_i32, %c0_i32_0, %c0_i32_1 : i32, i32, i32
  }
  func.func @transform_8(%arg0: i32) -> (i32, i32, i32) {
    %c0_i32 = arith.constant 0 : i32
    %c0_i32_0 = arith.constant 0 : i32
    %c0_i32_1 = arith.constant 0 : i32
    %c0_i32_2 = arith.constant 0 : i32
    return %c0_i32, %c0_i32_0, %c0_i32_1 : i32, i32, i32
  }
  func.func @transform_9(%arg0: i32) -> (i32, i32, i32) {
    %c0_i32 = arith.constant 0 : i32
    %c0_i32_0 = arith.constant 0 : i32
    %c0_i32_1 = arith.constant 0 : i32
    %c0_i32_2 = arith.constant 0 : i32
    return %c0_i32, %c0_i32_0, %c0_i32_1 : i32, i32, i32
  }
  func.func @transform_10(%arg0: i32) -> (i32, i32, i32) {
    %c0_i32 = arith.constant 0 : i32
    %c0_i32_0 = arith.constant 0 : i32
    %c0_i32_1 = arith.constant 0 : i32
    %c0_i32_2 = arith.constant 0 : i32
    return %c0_i32, %c0_i32_0, %c0_i32_1 : i32, i32, i32
  }
  func.func @transform_11(%arg0: i32) -> (i32, i32, i32) {
    %c0_i32 = arith.constant 0 : i32
    %c0_i32_0 = arith.constant 0 : i32
    %c0_i32_1 = arith.constant 0 : i32
    %c0_i32_2 = arith.constant 0 : i32
    return %c0_i32, %c0_i32_0, %c0_i32_1 : i32, i32, i32
  }
  func.func @transform_12(%arg0: i32) -> (i32, i32, i32) {
    %c0_i32 = arith.constant 0 : i32
    %c0_i32_0 = arith.constant 0 : i32
    %c0_i32_1 = arith.constant 0 : i32
    return %arg0, %c0_i32, %c0_i32_0 : i32, i32, i32
  }
}

</mosaic_0001>

<llo_original>
// kernel: tpu_custom_call.1
$region0: #{tpu_custom_call.1}
  #allocation0 [shape = 'u32[]', space=smem, size = 0x4, offset = 0x4, fixed_abs, tag = 'smem constant byte address 0x4 - core index']
  #allocation1 [shape = 'u32[144,128]{1,0:T(1,128)}', space=vmem, size = 0x12000, scoped, tag = 'internal scratch']
  %s0 = inlined_call_operand.vmem [shape: s32[2,16,1], index: 0, kind: input, shape index: {}]
  %s1 = inlined_call_operand.vmem [shape: f32[2,2,1,8], index: 1, kind: input, shape index: {}]
  %s2 = inlined_call_operand.vmem [shape: f32[128,64], index: 2, kind: input, shape index: {}]
  %s3 = inlined_call_operand.vmem [shape: f32[16,64], index: 3, kind: input, shape index: {}]
  %s4 = inlined_call_operand.vmem [shape: f32[2,64], index: 4, kind: input, shape index: {}]
  %s5 = inlined_call_operand.vmem [shape: bf16[2,64,192], index: 5, kind: input, shape index: {}]
  %s6 = inlined_call_operand.vmem [shape: f32[2,1,192], index: 6, kind: input, shape index: {}]
  %s7 = inlined_call_operand.vmem [shape: bf16[2,64,64], index: 7, kind: input, shape index: {}]
  %s8 = inlined_call_operand.vmem [shape: bf16[2,64,128], index: 8, kind: input, shape index: {}]
  %s9 = inlined_call_operand.vmem [shape: f32[2,1,128], index: 9, kind: input, shape index: {}]
  %s10 = inlined_call_operand.vmem [shape: bf16[2,128,64], index: 10, kind: input, shape index: {}]
  %s11 = inlined_call_operand.vmem [shape: f32[2,6,64], index: 11, kind: input, shape index: {}]
  %s12 = inlined_call_operand.hbm [shape: f32[2,2,64], index: 12, kind: output, shape index: {}]
  %s13 = sld [smem:[#allocation0]]
  $region81: #{tpu_custom_call.1} parent=0
    _
  %s15 = ssub.s32 1, %s13
  %s16 = scalar_select 0, %s15, %s13
  $region1: #{tpu_custom_call.1} parent=0
    #allocation2 [shape = 'u8[2048]{0}', space=vmem, size = 0x800, scoped, tag = 'output window, operand 0']
    #allocation3 [shape = 's32[2]{0}', space=sflag, size = 0x8, scoped, tag = 'scoped memory for tpu_custom_call.1']
    %17 = vsyncpa [#allocation3], 0
    %s18 = scalar_lea.sflag [#allocation3], 1
    %19 = vsyncpa %s18, 0
    loop: start=0, step=1, limit=4
    $region2: #{tpu_custom_call.1} parent=1 // loop_pre_header
      _
    $region3: #{tpu_custom_call.1} parent=1 // loop_header
      %s21 = sphi 0, %s25
      %p22 = scmp.ge.s32.totalorder %s21, 4
      %s31 = sphi 0, %s33
      %s34 = sphi 0, %s31
      %s35 = sphi 0, %s34
      %s51 = sphi 0, %s35
      %s57 = sphi 0, %s59
      %s60 = sphi 0, %s57
      %s61 = sphi 0, %s60
      %s77 = sphi 0, %s61
      %s81 = sphi 0, %s81
      %s83 = sphi 0, %s81
      %s84 = sphi 0, %s83
      %s98 = sphi 0, %s84
      %s102 = sphi 0, %s102
      %s104 = sphi 0, %s102
      %s105 = sphi 0, %s104
      %s119 = sphi 0, %s105
      %s123 = sphi 0, %s123
      %s125 = sphi 0, %s123
      %s126 = sphi 0, %s125
      %s140 = sphi 0, %s126
      %s144 = sphi 0, %s144
      %s146 = sphi 0, %s144
      %s147 = sphi 0, %s146
      %s161 = sphi 0, %s147
      %s165 = sphi 0, %s165
      %s167 = sphi 0, %s165
      %s168 = sphi 0, %s167
      %s182 = sphi 0, %s168
      %s186 = sphi 0, %s186
      %s188 = sphi 0, %s186
      %s189 = sphi 0, %s188
      %s203 = sphi 0, %s189
      %s207 = sphi 0, %s207
      %s209 = sphi 0, %s207
      %s210 = sphi 0, %s209
      %s224 = sphi 0, %s210
      %s228 = sphi 0, %s228
      %s230 = sphi 0, %s228
      %s231 = sphi 0, %s230
      %s245 = sphi 0, %s231
      %s249 = sphi 0, %s249
      %s251 = sphi 0, %s249
      %s252 = sphi 0, %s251
      %s266 = sphi 0, %s252
      %s270 = sphi 0, %s270
      %s272 = sphi 0, %s270
      %s273 = sphi 0, %s272
      %s287 = sphi 0, %s273
      %s293 = sphi 0, %s295
      %s296 = sphi 0, %s293
      %s297 = sphi 0, %s296
      %s313 = sphi 0, %s297
    $region4: #{tpu_custom_call.1} parent=1 // loop_header_branch
      %24 = sbr.rel (%p22) target = $region8
    $region5: #{tpu_custom_call.1} parent=1 // loop_body
      %s26 = ssub.s32 %s21, 1
      %s27 = ssub.s32 %s21, 2
      %s28 = sadd.s32 %s21, 1
      %s29 = ssub.s32 %s21, %s28
      %p30 = scmp.eq.s32.totalorder %s29, 0
      %s32 = sadd.s32 %s31, 1
      %s33 = scalar_select %p30, %s31, %s32
      %p36 = pneg %p30
      %p37 = scmp.eq.s32.totalorder %s21, 1
      %p38 = por %p36, %p37
      %p39 = scmp.ne.s32.totalorder %s31, %s34
      %p40 = scmp.eq.s32.totalorder %s21, 0
      %p41 = por %p39, %p40
      %p42 = scmp.ne.s32.totalorder %s31, %s34
      %p43 = scmp.eq.s32.totalorder %s26, 1
      %p44 = por %p42, %p43
      %p45 = scmp.ne.s32.totalorder %s34, %s35
      %p46 = scmp.eq.s32.totalorder %s26, 0
      %p47 = por %p45, %p46
      %p48 = scmp.ne.s32.totalorder %s34, %s35
      %p49 = scmp.eq.s32.totalorder %s27, 1
      %p50 = por %p48, %p49
      %p52 = scmp.ne.s32.totalorder %s35, %s51
      %p53 = scmp.eq.s32.totalorder %s27, 0
      %p54 = por %p52, %p53
      %s55 = ssub.s32 %s21, %s28
      %p56 = scmp.eq.s32.totalorder %s55, 0
      %s58 = sadd.s32 %s57, 1
      %s59 = scalar_select %p56, %s57, %s58
      %p62 = pneg %p56
      %p63 = scmp.eq.s32.totalorder %s21, 1
      %p64 = por %p62, %p63
      %p65 = scmp.ne.s32.totalorder %s57, %s60
      %p66 = scmp.eq.s32.totalorder %s21, 0
      %p67 = por %p65, %p66
      %p68 = scmp.ne.s32.totalorder %s57, %s60
      %p69 = scmp.eq.s32.totalorder %s26, 1
      %p70 = por %p68, %p69
      %p71 = scmp.ne.s32.totalorder %s60, %s61
      %p72 = scmp.eq.s32.totalorder %s26, 0
      %p73 = por %p71, %p72
      %p74 = scmp.ne.s32.totalorder %s60, %s61
      %p75 = scmp.eq.s32.totalorder %s27, 1
      %p76 = por %p74, %p75
      %p78 = scmp.ne.s32.totalorder %s61, %s77
      %p79 = scmp.eq.s32.totalorder %s27, 0
      %p80 = por %p78, %p79
      %s82 = sadd.s32 %s81, 1
      %p85 = scmp.eq.s32.totalorder %s21, 1
      %p86 = scmp.ne.s32.totalorder %s81, %s83
      %p87 = scmp.eq.s32.totalorder %s21, 0
      %p88 = por %p86, %p87
      %p89 = scmp.ne.s32.totalorder %s81, %s83
      %p90 = scmp.eq.s32.totalorder %s26, 1
      %p91 = por %p89, %p90
      %p92 = scmp.ne.s32.totalorder %s83, %s84
      %p93 = scmp.eq.s32.totalorder %s26, 0
      %p94 = por %p92, %p93
      %p95 = scmp.ne.s32.totalorder %s83, %s84
      %p96 = scmp.eq.s32.totalorder %s27, 1
      %p97 = por %p95, %p96
      %p99 = scmp.ne.s32.totalorder %s84, %s98
      %p100 = scmp.eq.s32.totalorder %s27, 0
      %p101 = por %p99, %p100
      %s103 = sadd.s32 %s102, 1
      %p106 = scmp.eq.s32.totalorder %s21, 1
      %p107 = scmp.ne.s32.totalorder %s102, %s104
      %p108 = scmp.eq.s32.totalorder %s21, 0
      %p109 = por %p107, %p108
      %p110 = scmp.ne.s32.totalorder %s102, %s104
      %p111 = scmp.eq.s32.totalorder %s26, 1
      %p112 = por %p110, %p111
      %p113 = scmp.ne.s32.totalorder %s104, %s105
      %p114 = scmp.eq.s32.totalorder %s26, 0
      %p115 = por %p113, %p114
      %p116 = scmp.ne.s32.totalorder %s104, %s105
      %p117 = scmp.eq.s32.totalorder %s27, 1
      %p118 = por %p116, %p117
      %p120 = scmp.ne.s32.totalorder %s105, %s119
      %p121 = scmp.eq.s32.totalorder %s27, 0
      %p122 = por %p120, %p121
      %s124 = sadd.s32 %s123, 1
      %p127 = scmp.eq.s32.totalorder %s21, 1
      %p128 = scmp.ne.s32.totalorder %s123, %s125
      %p129 = scmp.eq.s32.totalorder %s21, 0
      %p130 = por %p128, %p129
      %p131 = scmp.ne.s32.totalorder %s123, %s125
      %p132 = scmp.eq.s32.totalorder %s26, 1
      %p133 = por %p131, %p132
      %p134 = scmp.ne.s32.totalorder %s125, %s126
      %p135 = scmp.eq.s32.totalorder %s26, 0
      %p136 = por %p134, %p135
      %p137 = scmp.ne.s32.totalorder %s125, %s126
      %p138 = scmp.eq.s32.totalorder %s27, 1
      %p139 = por %p137, %p138
      %p141 = scmp.ne.s32.totalorder %s126, %s140
      %p142 = scmp.eq.s32.totalorder %s27, 0
      %p143 = por %p141, %p142
      %s145 = sadd.s32 %s144, 1
      %p148 = scmp.eq.s32.totalorder %s21, 1
      %p149 = scmp.ne.s32.totalorder %s144, %s146
      %p150 = scmp.eq.s32.totalorder %s21, 0
      %p151 = por %p149, %p150
      %p152 = scmp.ne.s32.totalorder %s144, %s146
      %p153 = scmp.eq.s32.totalorder %s26, 1
      %p154 = por %p152, %p153
      %p155 = scmp.ne.s32.totalorder %s146, %s147
      %p156 = scmp.eq.s32.totalorder %s26, 0
      %p157 = por %p155, %p156
      %p158 = scmp.ne.s32.totalorder %s146, %s147
      %p159 = scmp.eq.s32.totalorder %s27, 1
      %p160 = por %p158, %p159
      %p162 = scmp.ne.s32.totalorder %s147, %s161
      %p163 = scmp.eq.s32.totalorder %s27, 0
      %p164 = por %p162, %p163
      %s166 = sadd.s32 %s165, 1
      %p169 = scmp.eq.s32.totalorder %s21, 1
      %p170 = scmp.ne.s32.totalorder %s165, %s167
      %p171 = scmp.eq.s32.totalorder %s21, 0
      %p172 = por %p170, %p171
      %p173 = scmp.ne.s32.totalorder %s165, %s167
      %p174 = scmp.eq.s32.totalorder %s26, 1
      %p175 = por %p173, %p174
      %p176 = scmp.ne.s32.totalorder %s167, %s168
      %p177 = scmp.eq.s32.totalorder %s26, 0
      %p178 = por %p176, %p177
      %p179 = scmp.ne.s32.totalorder %s167, %s168
      %p180 = scmp.eq.s32.totalorder %s27, 1
      %p181 = por %p179, %p180
      %p183 = scmp.ne.s32.totalorder %s168, %s182
      %p184 = scmp.eq.s32.totalorder %s27, 0
      %p185 = por %p183, %p184
      %s187 = sadd.s32 %s186, 1
      %p190 = scmp.eq.s32.totalorder %s21, 1
      %p191 = scmp.ne.s32.totalorder %s186, %s188
      %p192 = scmp.eq.s32.totalorder %s21, 0
      %p193 = por %p191, %p192
      %p194 = scmp.ne.s32.totalorder %s186, %s188
      %p195 = scmp.eq.s32.totalorder %s26, 1
      %p196 = por %p194, %p195
      %p197 = scmp.ne.s32.totalorder %s188, %s189
      %p198 = scmp.eq.s32.totalorder %s26, 0
      %p199 = por %p197, %p198
      %p200 = scmp.ne.s32.totalorder %s188, %s189
      %p201 = scmp.eq.s32.totalorder %s27, 1
      %p202 = por %p200, %p201
      %p204 = scmp.ne.s32.totalorder %s189, %s203
      %p205 = scmp.eq.s32.totalorder %s27, 0
      %p206 = por %p204, %p205
      %s208 = sadd.s32 %s207, 1
      %p211 = scmp.eq.s32.totalorder %s21, 1
      %p212 = scmp.ne.s32.totalorder %s207, %s209
      %p213 = scmp.eq.s32.totalorder %s21, 0
      %p214 = por %p212, %p213
      %p215 = scmp.ne.s32.totalorder %s207, %s209
      %p216 = scmp.eq.s32.totalorder %s26, 1
      %p217 = por %p215, %p216
      %p218 = scmp.ne.s32.totalorder %s209, %s210
      %p219 = scmp.eq.s32.totalorder %s26, 0
      %p220 = por %p218, %p219
      %p221 = scmp.ne.s32.totalorder %s209, %s210
      %p222 = scmp.eq.s32.totalorder %s27, 1
      %p223 = por %p221, %p222
      %p225 = scmp.ne.s32.totalorder %s210, %s224
      %p226 = scmp.eq.s32.totalorder %s27, 0
      %p227 = por %p225, %p226
      %s229 = sadd.s32 %s228, 1
      %p232 = scmp.eq.s32.totalorder %s21, 1
      %p233 = scmp.ne.s32.totalorder %s228, %s230
      %p234 = scmp.eq.s32.totalorder %s21, 0
      %p235 = por %p233, %p234
      %p236 = scmp.ne.s32.totalorder %s228, %s230
      %p237 = scmp.eq.s32.totalorder %s26, 1
      %p238 = por %p236, %p237
      %p239 = scmp.ne.s32.totalorder %s230, %s231
      %p240 = scmp.eq.s32.totalorder %s26, 0
      %p241 = por %p239, %p240
      %p242 = scmp.ne.s32.totalorder %s230, %s231
      %p243 = scmp.eq.s32.totalorder %s27, 1
      %p244 = por %p242, %p243
      %p246 = scmp.ne.s32.totalorder %s231, %s245
      %p247 = scmp.eq.s32.totalorder %s27, 0
      %p248 = por %p246, %p247
      %s250 = sadd.s32 %s249, 1
      %p253 = scmp.eq.s32.totalorder %s21, 1
      %p254 = scmp.ne.s32.totalorder %s249, %s251
      %p255 = scmp.eq.s32.totalorder %s21, 0
      %p256 = por %p254, %p255
      %p257 = scmp.ne.s32.totalorder %s249, %s251
      %p258 = scmp.eq.s32.totalorder %s26, 1
      %p259 = por %p257, %p258
      %p260 = scmp.ne.s32.totalorder %s251, %s252
      %p261 = scmp.eq.s32.totalorder %s26, 0
      %p262 = por %p260, %p261
      %p263 = scmp.ne.s32.totalorder %s251, %s252
      %p264 = scmp.eq.s32.totalorder %s27, 1
      %p265 = por %p263, %p264
      %p267 = scmp.ne.s32.totalorder %s252, %s266
      %p268 = scmp.eq.s32.totalorder %s27, 0
      %p269 = por %p267, %p268
      %s271 = sadd.s32 %s270, 1
      %p274 = scmp.eq.s32.totalorder %s21, 1
      %p275 = scmp.ne.s32.totalorder %s270, %s272
      %p276 = scmp.eq.s32.totalorder %s21, 0
      %p277 = por %p275, %p276
      %p278 = scmp.ne.s32.totalorder %s270, %s272
      %p279 = scmp.eq.s32.totalorder %s26, 1
      %p280 = por %p278, %p279
      %p281 = scmp.ne.s32.totalorder %s272, %s273
      %p282 = scmp.eq.s32.totalorder %s26, 0
      %p283 = por %p281, %p282
      %p284 = scmp.ne.s32.totalorder %s272, %s273
      %p285 = scmp.eq.s32.totalorder %s27, 1
      %p286 = por %p284, %p285
      %p288 = scmp.ne.s32.totalorder %s273, %s287
      %p289 = scmp.eq.s32.totalorder %s27, 0
      %p290 = por %p288, %p289
      %s291 = ssub.s32 %s21, %s28
      %p292 = scmp.eq.s32.totalorder %s291, 0
      %s294 = sadd.s32 %s293, 1
      %s295 = scalar_select %p292, %s293, %s294
      %p298 = pneg %p292
      %p299 = scmp.eq.s32.totalorder %s21, 1
      %p300 = por %p298, %p299
      %p301 = scmp.ne.s32.totalorder %s293, %s296
      %p302 = scmp.eq.s32.totalorder %s21, 0
      %p303 = por %p301, %p302
      %p304 = scmp.ne.s32.totalorder %s293, %s296
      %p305 = scmp.eq.s32.totalorder %s26, 1
      %p306 = por %p304, %p305
      %p307 = scmp.ne.s32.totalorder %s296, %s297
      %p308 = scmp.eq.s32.totalorder %s26, 0
      %p309 = por %p307, %p308
      %p310 = scmp.ne.s32.totalorder %s296, %s297
      %p311 = scmp.eq.s32.totalorder %s27, 1
      %p312 = por %p310, %p311
      %p314 = scmp.ne.s32.totalorder %s297, %s313
      %p315 = scmp.eq.s32.totalorder %s27, 0
      %p316 = por %p314, %p315
      %p317 = scmp.le.s32.totalorder 1, %s21
      %p318 = scmp.lt.s32.totalorder %s21, 3
      %p319 = pnand %p317, %p318
      %p320 = pneg %p319
      // Predicated region
      $region9: #{tpu_custom_call.1} parent=5 // pred_check
        _
      $region10: #{tpu_custom_call.1} parent=5 // pred_check_branch
        %322 = sbr.rel (%p319) target = $region12
      $region11: #{tpu_custom_call.1} parent=5 // pred_region
        %s323 = ssub.s32 %s21, 1
        // Predicated region
        $region13: #{tpu_custom_call.1} parent=11 // pred_check
          %p324 = pneg %p94
        $region14: #{tpu_custom_call.1} parent=11 // pred_check_branch
          %326 = sbr.rel (%p324) target = $region16
        $region15: #{tpu_custom_call.1} parent=11 // pred_region
          _
        $region16: #{tpu_custom_call.1} parent=11 // pred_fallthru
          _
        // Predicated region
        $region17: #{tpu_custom_call.1} parent=11 // pred_check
          %p327 = pneg %p115
        $region18: #{tpu_custom_call.1} parent=11 // pred_check_branch
          %329 = sbr.rel (%p327) target = $region20
        $region19: #{tpu_custom_call.1} parent=11 // pred_region
          _
        $region20: #{tpu_custom_call.1} parent=11 // pred_fallthru
          _
        // Predicated region
        $region21: #{tpu_custom_call.1} parent=11 // pred_check
          %p330 = pneg %p136
        $region22: #{tpu_custom_call.1} parent=11 // pred_check_branch
          %332 = sbr.rel (%p330) target = $region24
        $region23: #{tpu_custom_call.1} parent=11 // pred_region
          _
        $region24: #{tpu_custom_call.1} parent=11 // pred_fallthru
          _
        // Predicated region
        $region25: #{tpu_custom_call.1} parent=11 // pred_check
          %p333 = pneg %p157
        $region26: #{tpu_custom_call.1} parent=11 // pred_check_branch
          %335 = sbr.rel (%p333) target = $region28
        $region27: #{tpu_custom_call.1} parent=11 // pred_region
          _
        $region28: #{tpu_custom_call.1} parent=11 // pred_fallthru
          _
        // Predicated region
        $region29: #{tpu_custom_call.1} parent=11 // pred_check
          %p336 = pneg %p178
        $region30: #{tpu_custom_call.1} parent=11 // pred_check_branch
          %338 = sbr.rel (%p336) target = $region32
        $region31: #{tpu_custom_call.1} parent=11 // pred_region
          _
        $region32: #{tpu_custom_call.1} parent=11 // pred_fallthru
          _
        // Predicated region
        $region33: #{tpu_custom_call.1} parent=11 // pred_check
          %p339 = pneg %p199
        $region34: #{tpu_custom_call.1} parent=11 // pred_check_branch
          %341 = sbr.rel (%p339) target = $region36
        $region35: #{tpu_custom_call.1} parent=11 // pred_region
          _
        $region36: #{tpu_custom_call.1} parent=11 // pred_fallthru
          _
        // Predicated region
        $region37: #{tpu_custom_call.1} parent=11 // pred_check
          %p342 = pneg %p220
        $region38: #{tpu_custom_call.1} parent=11 // pred_check_branch
          %344 = sbr.rel (%p342) target = $region40
        $region39: #{tpu_custom_call.1} parent=11 // pred_region
          _
        $region40: #{tpu_custom_call.1} parent=11 // pred_fallthru
          _
        // Predicated region
        $region41: #{tpu_custom_call.1} parent=11 // pred_check
          %p345 = pneg %p241
        $region42: #{tpu_custom_call.1} parent=11 // pred_check_branch
          %347 = sbr.rel (%p345) target = $region44
        $region43: #{tpu_custom_call.1} parent=11 // pred_region
          _
        $region44: #{tpu_custom_call.1} parent=11 // pred_fallthru
          _
        // Predicated region
        $region45: #{tpu_custom_call.1} parent=11 // pred_check
          %p348 = pneg %p262
        $region46: #{tpu_custom_call.1} parent=11 // pred_check_branch
          %350 = sbr.rel (%p348) target = $region48
        $region47: #{tpu_custom_call.1} parent=11 // pred_region
          _
        $region48: #{tpu_custom_call.1} parent=11 // pred_fallthru
          _
        // Predicated region
        $region49: #{tpu_custom_call.1} parent=11 // pred_check
          %p351 = pneg %p283
        $region50: #{tpu_custom_call.1} parent=11 // pred_check_branch
          %353 = sbr.rel (%p351) target = $region52
        $region51: #{tpu_custom_call.1} parent=11 // pred_region
          _
        $region52: #{tpu_custom_call.1} parent=11 // pred_fallthru
          _
      $region12: #{tpu_custom_call.1} parent=5 // pred_fallthru
        _
      %p354 = scmp.lt.s32.totalorder %s21, 2
      // Predicated region
      $region53: #{tpu_custom_call.1} parent=5 // pred_check
        %p355 = pneg %p354
      $region54: #{tpu_custom_call.1} parent=5 // pred_check_branch
        %357 = sbr.rel (%p355) target = $region56
      $region55: #{tpu_custom_call.1} parent=5 // pred_region
        // Predicated region
        $region57: #{tpu_custom_call.1} parent=55 // pred_check
          %p358 = pneg %p41
        $region58: #{tpu_custom_call.1} parent=55 // pred_check_branch
          %360 = sbr.rel (%p358) target = $region60
        $region59: #{tpu_custom_call.1} parent=55 // pred_region
          %p361 = scmp.lt.s32.totalorder %s21, 1
          %s362 = scalar_select %p361, %s21, 1
          %s363 = smul.addr %s362, 2
          %s364 = smul.addr %s363, 8
          %s365 = scalar_lea.vmem %s0, %s364
        $region60: #{tpu_custom_call.1} parent=55 // pred_fallthru
          _
        // Predicated region
        $region61: #{tpu_custom_call.1} parent=55 // pred_check
          %p366 = pneg %p67
        $region62: #{tpu_custom_call.1} parent=55 // pred_check_branch
          %368 = sbr.rel (%p366) target = $region64
        $region63: #{tpu_custom_call.1} parent=55 // pred_region
          %p369 = scmp.lt.s32.totalorder %s21, 1
          %s370 = scalar_select %p369, %s21, 1
          %s371 = smul.addr %s370, 2
          %s372 = scalar_lea.vmem %s1, %s371
        $region64: #{tpu_custom_call.1} parent=55 // pred_fallthru
          _
      $region56: #{tpu_custom_call.1} parent=5 // pred_fallthru
        _
      %p373 = scmp.le.s32.totalorder 1, %s21
      %p374 = scmp.lt.s32.totalorder %s21, 3
      %p375 = pnand %p373, %p374
      %p376 = pneg %p375
      // Predicated region
      $region65: #{tpu_custom_call.1} parent=5 // pred_check
        _
      $region66: #{tpu_custom_call.1} parent=5 // pred_check_branch
        %378 = sbr.rel (%p375) target = $region68
      $region67: #{tpu_custom_call.1} parent=5 // pred_region
        %s379 = ssub.s32 %s21, 1
        %p380 = scmp.lt.s32.totalorder %s26, 1
        %s381 = scalar_select %p380, %s26, 1
        %s382 = smul.addr %s381, 2
        %s383 = smul.addr %s382, 8
        %s384 = scalar_lea.vmem %s0, %s383
        %p385 = pneg %p47
        %p386 = pneg %p44
        %p387 = scmp.lt.s32.totalorder %s26, 1
        %s388 = scalar_select %p387, %s26, 1
        %s389 = smul.addr %s388, 2
        %s390 = scalar_lea.vmem %s1, %s389
        %p391 = pneg %p73
        %p392 = pneg %p70
        %p393 = pneg %p94
        %p394 = pneg %p91
        %p395 = pneg %p115
        %p396 = pneg %p112
        %p397 = pneg %p136
        %p398 = pneg %p133
        %p399 = pneg %p157
        %p400 = pneg %p154
        %p401 = pneg %p178
        %p402 = pneg %p175
        %p403 = pneg %p199
        %p404 = pneg %p196
        %p405 = pneg %p220
        %p406 = pneg %p217
        %p407 = pneg %p241
        %p408 = pneg %p238
        %p409 = pneg %p262
        %p410 = pneg %p259
        %p411 = pneg %p283
        %p412 = pneg %p280
        %p413 = pneg %p309
        %p414 = pneg %p306
        %s415 = sand.u32 %s296, 1
        %s416 = scalar_lea.sflag [#allocation3], %s415
        %s417 = sand.u32 %s296, 1
        %s418 = smul.addr %s417, 2
        %s419 = scalar_lea.vmem [#allocation2], %s418
        %p420 = scmp.lt.s32.totalorder %s26, 1
        %s421 = scalar_select %p420, %s26, 1
        %s422 = smul.addr %s421, 2
        %s423 = smul.addr %s422, 8
        %s424 = scalar_lea.vmem %s0, %s423
        %p425 = scmp.lt.s32.totalorder %s26, 1
        %s426 = scalar_select %p425, %s26, 1
        %s427 = smul.addr %s426, 2
        %s428 = scalar_lea.vmem %s1, %s427
        %v430 = vld [vmem:[%s424] sm:$0xff]
        %v431 = vld [vmem:[%s424 + $0x8] sm:$0xff]
        %v432 = vld [vmem:[%s428] sm:$0x1]
        %v433 = vld [vmem:[%s428 + $0x1] sm:$0x1]
        %v434 = vlaneseq
        %v435 = vand.u32 %v434, 127
        %436 = vset.pattern.permute.xlu0 0
        %437 = vperm.xlu0 %436, %v430
        %v438 = vpop.permute.xlu0 %437
        %439 = vset.pattern.permute.xlu0 0
        %440 = vperm.xlu0 %439, %v431
        %v441 = vpop.permute.xlu0 %440
        %vm442 = vcmp.eq.s32.totalorder %v438, %v435
        %vm443 = vcmp.eq.s32.totalorder %v441, %v435
        %v444 = vsel %vm442, 1, 0
        %v445 = vsel %vm443, 1, 0
        %v446 = vcvt.s32.f32 %v444
        %v447 = vcvt.s32.f32 %v445
        %v448 = vld [vmem:[%s2] sm:$0xff]
        %v449 = vld [vmem:[%s2 + $0x8] sm:$0xff]
        %v450 = vld [vmem:[%s2 + $0x10] sm:$0xff]
        %v451 = vld [vmem:[%s2 + $0x18] sm:$0xff]
        %v452 = vld [vmem:[%s2 + $0x20] sm:$0xff]
        %v453 = vld [vmem:[%s2 + $0x28] sm:$0xff]
        %v454 = vld [vmem:[%s2 + $0x30] sm:$0xff]
        %v455 = vld [vmem:[%s2 + $0x38] sm:$0xff]
        %v456 = vld [vmem:[%s2 + $0x40] sm:$0xff]
        %v457 = vld [vmem:[%s2 + $0x48] sm:$0xff]
        %v458 = vld [vmem:[%s2 + $0x50] sm:$0xff]
        %v459 = vld [vmem:[%s2 + $0x58] sm:$0xff]
        %v460 = vld [vmem:[%s2 + $0x60] sm:$0xff]
        %v461 = vld [vmem:[%s2 + $0x68] sm:$0xff]
        %v462 = vld [vmem:[%s2 + $0x70] sm:$0xff]
        %v463 = vld [vmem:[%s2 + $0x78] sm:$0xff]
        %v464 = vld [vmem:[%s3] sm:$0xff]
        %v465 = vld [vmem:[%s3 + $0x8] sm:$0xff]
        %466 = vmatprep.subr.mxu0 0.0
        %467 = vmatpush1.msra.mxu0 %v463
        %468 = vmatprep.subr.mxu0 0.0
        %469 = vmatpush1.msra.mxu0 %v462
        %470 = vmatprep.subr.mxu0 0.0
        %471 = vmatpush1.msra.mxu0 %v461
        %472 = vmatprep.subr.mxu0 0.0
        %473 = vmatpush1.msra.mxu0 %v460
        %474 = vmatprep.subr.mxu0 0.0
        %475 = vmatpush1.msra.mxu0 %v459
        %476 = vmatprep.subr.mxu0 0.0
        %477 = vmatpush1.msra.mxu0 %v458
        %478 = vmatprep.subr.mxu0 0.0
        %479 = vmatpush1.msra.mxu0 %v457
        %480 = vmatprep.subr.mxu0 0.0
        %481 = vmatpush1.msra.mxu0 %v456
        %482 = vmatprep.subr.mxu0 0.0
        %483 = vmatpush1.msra.mxu0 %v455
        %484 = vmatprep.subr.mxu0 0.0
        %485 = vmatpush1.msra.mxu0 %v454
        %486 = vmatprep.subr.mxu0 0.0
        %487 = vmatpush1.msra.mxu0 %v453
        %488 = vmatprep.subr.mxu0 0.0
        %489 = vmatpush1.msra.mxu0 %v452
        %490 = vmatprep.subr.mxu0 0.0
        %491 = vmatpush1.msra.mxu0 %v451
        %492 = vmatprep.subr.mxu0 0.0
        %493 = vmatpush1.msra.mxu0 %v450
        %494 = vmatprep.subr.mxu0 0.0
        %495 = vmatpush1.msra.mxu0 %v449
        %496 = vmatprep.subr.mxu0 0.0
        %497 = vmatpush1.msra.mxu0 %v448
        %498 = vmatprep.subr.mxu0 0.0
        %499 = vmatpush2.msra.mxu0 0.0
        %500 = vmatprep.subr.mxu0 0.0
        %501 = vmatpush2.msra.mxu0 0.0
        %502 = vmatprep.subr.mxu0 0.0
        %503 = vmatpush2.msra.mxu0 0.0
        %504 = vmatprep.subr.mxu0 0.0
        %505 = vmatpush2.msra.mxu0 0.0
        %506 = vmatprep.subr.mxu0 0.0
        %507 = vmatpush2.msra.mxu0 0.0
        %508 = vmatprep.subr.mxu0 0.0
        %509 = vmatpush2.msra.mxu0 0.0
        %510 = vmatprep.subr.mxu0 0.0
        %511 = vmatpush2.msra.mxu0 0.0
        %512 = vmatprep.subr.mxu0 0.0
        %513 = vmatpush2.msra.mxu0 0.0
        %514 = vmatprep.subr.mxu0 0.0
        %515 = vmatpush2.msra.mxu0 0.0
        %516 = vmatprep.subr.mxu0 0.0
        %517 = vmatpush2.msra.mxu0 0.0
        %518 = vmatprep.subr.mxu0 0.0
        %519 = vmatpush2.msra.mxu0 0.0
        %520 = vmatprep.subr.mxu0 0.0
        %521 = vmatpush2.msra.mxu0 0.0
        %522 = vmatprep.subr.mxu0 0.0
        %523 = vmatpush2.msra.mxu0 0.0
        %524 = vmatprep.subr.mxu0 0.0
        %525 = vmatpush2.msra.mxu0 0.0
        %526 = vmatprep.subr.mxu0 0.0
        %527 = vmatpush2.msra.mxu0 0.0
        %528 = vmatprep.subr.mxu0 0.0
        %529 = vmatpush2.msra.mxu0 0.0
        %530 = vmatprep.mubr.f32.mxu0 0.0
        %531 = vmatmul.mubr.f32.gmra.mxu0 %v446
        %v532 = vpop.f32.mrf.mxu0
        %v533 = vadd.f32 %v464, %v532
        %v534 = vpop.f32.mrf.mxu0
        %535 = vmatprep.mubr.f32.mxu0 0.0
        %536 = vmatmul.mubr.f32.gmra.mxu0 %v447
        %v537 = vpop.f32.mrf.mxu0
        %v538 = vadd.f32 %v465, %v537
        %v539 = vpop.f32.mrf.mxu0
        %540 = vdwg.mxu0
        %v541 = vld [vmem:[%s4] sm:$0x3]
        %vm542 = vcmask 523264
        %v543 = vsel %vm542, %v533, 0.0
        %544 = vadd.xlane.f32.xlu0 %v543
        %v545 = vpop.xlane.xlu0 %544
        %v546 = vsel %vm542, %v538, 0.0
        %547 = vadd.xlane.f32.xlu0 %v546
        %v548 = vpop.xlane.xlu0 %547
        %v549 = vrcp.pop 64.0
        %v550 = vmul.f32 %v545, %v549
        %v551 = vmul.f32 %v548, %v549
        %v552 = vsub.f32 %v533, %v550
        %v553 = vsub.f32 %v538, %v551
        %v554 = vmul.f32 %v552, %v552
        %v555 = vmul.f32 %v553, %v553
        %v556 = vsel %vm542, %v554, 0.0
        %557 = vadd.xlane.f32.xlu0 %v556
        %v558 = vpop.xlane.xlu0 %557
        %v559 = vsel %vm542, %v555, 0.0
        %560 = vadd.xlane.f32.xlu0 %v559
        %v561 = vpop.xlane.xlu0 %560
        %v562 = vmul.f32 %v558, %v549
        %v563 = vmul.f32 %v561, %v549
        %v564 = vadd.f32 %v562, 1e-12
        %v565 = vadd.f32 %v563, 1e-12
        %v566 = vrsqrt.pop %v564
        %v567 = vrsqrt.pop %v565
        %v568 = vmul.f32 %v552, %v566
        %v569 = vmul.f32 %v553, %v567
        %v570 = vlaneseq
        %v571 = vshrl.u32 %v570, 7
        %v572 = vsub.s32 0, %v571
        %v573 = vrot.slane %v541, %v572
        %v574 = vmul.f32 %v568, %v573
        %v575 = vmul.f32 %v569, %v573
        %v576 = vlaneseq
        %v577 = vshrl.u32 %v576, 7
        %v578 = vsub.s32 1, %v577
        %v579 = vrot.slane %v541, %v578
        %v580 = vadd.f32 %v574, %v579
        %v581 = vadd.f32 %v575, %v579
        %v582 = vld [vmem:[%s11] sm:$0x3f]
        %v583 = vld [vmem:[%s7] sm:$0xf]
        %v584 = vld [vmem:[%s7 + $0x4] sm:$0xf]
        %v585 = vld [vmem:[%s7 + $0x8] sm:$0xf]
        %v586 = vld [vmem:[%s7 + $0xc] sm:$0xf]
        %v587 = vld [vmem:[%s7 + $0x10] sm:$0xf]
        %v588 = vld [vmem:[%s7 + $0x14] sm:$0xf]
        %v589 = vld [vmem:[%s7 + $0x18] sm:$0xf]
        %v590 = vld [vmem:[%s7 + $0x1c] sm:$0xf]
        %v591 = vpack.c.bf16 %v581, %v580
        %v592 = vld [vmem:[%s5] sm:$0xff]
        %v593 = vld [vmem:[%s5 + $0x8] sm:$0xff]
        %v594 = vld [vmem:[%s5 + $0x10] sm:$0xff]
        %v595 = vld [vmem:[%s5 + $0x18] sm:$0xff]
        %v596 = vld [vmem:[%s5 + $0x20] sm:$0xff]
        %v597 = vld [vmem:[%s5 + $0x28] sm:$0xff]
        %v598 = vld [vmem:[%s5 + $0x30] sm:$0xff]
        %v599 = vld [vmem:[%s5 + $0x38] sm:$0xff]
        %v600 = vld [vmem:[%s6] sm:$0x3]
        %v602 = vlaneseq
        %v603 = vshrl.u32 %v602, 7
        %v604 = vsub.s32 0, %v603
        %v605 = vrot.slane %v600, %v604
        %v606 = vlaneseq
        %v607 = vshrl.u32 %v606, 7
        %v608 = vsub.s32 1, %v607
        %v609 = vrot.slane %v600, %v608
        %v620 = vunpack.c.l.b16 %v592
        %v621 = vunpack.c.h.b16 %v592
        %v622 = vunpack.c.l.b16 %v593
        %v623 = vunpack.c.h.b16 %v593
        %v624 = vunpack.c.l.b16 %v594
        %v625 = vunpack.c.h.b16 %v594
        %v626 = vunpack.c.l.b16 %v595
        %v627 = vunpack.c.h.b16 %v595
        %v628 = vunpack.c.l.b16 %v596
        %v629 = vunpack.c.h.b16 %v596
        %v630 = vunpack.c.l.b16 %v597
        %v631 = vunpack.c.h.b16 %v597
        %v632 = vunpack.c.l.b16 %v598
        %v633 = vunpack.c.h.b16 %v598
        %v634 = vunpack.c.l.b16 %v599
        %v635 = vunpack.c.h.b16 %v599
        %v636 = vpack.c.b16 %v622, %v620
        %v637 = vpack.c.b16 %v623, %v621
        %v638 = vpack.c.b16 %v626, %v624
        %v639 = vpack.c.b16 %v627, %v625
        %v640 = vpack.c.b16 %v630, %v628
        %v641 = vpack.c.b16 %v631, %v629
        %v642 = vpack.c.b16 %v634, %v632
        %v643 = vpack.c.b16 %v635, %v633
        %v653 = vsel %vm542, %v591, 0
        %655 = vmatprep.subr.bf16.mxu0 0
        %656 = vmatpush1.bf16.msra.mxu0 0
        %657 = vmatprep.subr.bf16.mxu0 0
        %658 = vmatpush1.bf16.msra.mxu0 0
        %659 = vmatprep.subr.bf16.mxu0 0
        %660 = vmatpush1.bf16.msra.mxu0 0
        %661 = vmatprep.subr.bf16.mxu0 0
        %662 = vmatpush1.bf16.msra.mxu0 0
        %663 = vmatprep.subr.bf16.mxu0 %v643
        %664 = vmatpush1.bf16.msra.mxu0 %v642
        %665 = vmatprep.subr.bf16.mxu0 %v641
        %666 = vmatpush1.bf16.msra.mxu0 %v640
        %667 = vmatprep.subr.bf16.mxu0 %v639
        %668 = vmatpush1.bf16.msra.mxu0 %v638
        %669 = vmatprep.subr.bf16.mxu0 %v637
        %670 = vmatpush1.bf16.msra.mxu0 %v636
        %671 = vmatprep.subr.bf16.mxu0 0
        %672 = vmatpush2.bf16.msra.mxu0 0
        %673 = vmatprep.subr.bf16.mxu0 0
        %674 = vmatpush2.bf16.msra.mxu0 0
        %675 = vmatprep.subr.bf16.mxu0 0
        %676 = vmatpush2.bf16.msra.mxu0 0
        %677 = vmatprep.subr.bf16.mxu0 0
        %678 = vmatpush2.bf16.msra.mxu0 0
        %679 = vmatprep.subr.bf16.mxu0 0
        %680 = vmatpush2.bf16.msra.mxu0 0
        %681 = vmatprep.subr.bf16.mxu0 0
        %682 = vmatpush2.bf16.msra.mxu0 0
        %683 = vmatprep.subr.bf16.mxu0 0
        %684 = vmatpush2.bf16.msra.mxu0 0
        %685 = vmatprep.subr.bf16.mxu0 0
        %686 = vmatpush2.bf16.msra.mxu0 0
        %687 = vmatprep.mubr.bf16.mxu0 0
        %688 = vmatmul.mubr.bf16.gmra.mxu0 %v653
        %v689 = vpop.f32.mrf.mxu0
        %v690 = vadd.f32 %v605, %v689
        %v691 = vpop.f32.mrf.mxu0
        %v692 = vadd.f32 %v609, %v691
        %v693 = vpop.f32.mrf.mxu0
        %v694 = vadd.f32 %v605, %v693
        %v695 = vpop.f32.mrf.mxu0
        %v696 = vadd.f32 %v609, %v695
        %697 = vdwg.mxu0
        %v698 = vpack.c.bf16 %v690, %v690
        %v699 = vpack.c.bf16 %v694, %v694
        %v700 = vpack.c.bf16 %v692, %v692
        %v701 = vpack.c.bf16 %v696, %v696
        %703 = vrot.lane.b32.xlu0 %v698, 64
        %v704 = vpop.permute.xlu0 %703
        %vm705 = vcmask 261120
        %v707 = vsel %vm705, %v698, 0
        %v710 = vsel %vm705, %v704, 0
        %712 = vmatprep.subr.bf16.mxu0 0
        %713 = vmatpush1.bf16.xpose.msra.mxu0 0
        %714 = vmatprep.subr.bf16.mxu0 0
        %715 = vmatpush1.bf16.xpose.msra.mxu0 0
        %716 = vmatprep.subr.bf16.mxu0 0
        %717 = vmatpush1.bf16.xpose.msra.mxu0 0
        %718 = vmatprep.subr.bf16.mxu0 0
        %719 = vmatpush1.bf16.xpose.msra.mxu0 0
        %720 = vmatprep.subr.bf16.mxu0 0
        %721 = vmatpush1.bf16.xpose.msra.mxu0 0
        %722 = vmatprep.subr.bf16.mxu0 0
        %723 = vmatpush1.bf16.xpose.msra.mxu0 0
        %724 = vmatprep.subr.bf16.mxu0 0
        %725 = vmatpush1.bf16.xpose.msra.mxu0 0
        %726 = vmatprep.subr.bf16.mxu0 0
        %727 = vmatpush1.bf16.xpose.msra.mxu0 %v710
        %728 = vmatprep.subr.bf16.mxu0 0
        %729 = vmatpush2.bf16.xpose.msra.mxu0 0
        %730 = vmatprep.subr.bf16.mxu0 0
        %731 = vmatpush2.bf16.xpose.msra.mxu0 0
        %732 = vmatprep.subr.bf16.mxu0 0
        %733 = vmatpush2.bf16.xpose.msra.mxu0 0
        %734 = vmatprep.subr.bf16.mxu0 0
        %735 = vmatpush2.bf16.xpose.msra.mxu0 0
        %736 = vmatprep.subr.bf16.mxu0 0
        %737 = vmatpush2.bf16.xpose.msra.mxu0 0
        %738 = vmatprep.subr.bf16.mxu0 0
        %739 = vmatpush2.bf16.xpose.msra.mxu0 0
        %740 = vmatprep.subr.bf16.mxu0 0
        %741 = vmatpush2.bf16.xpose.msra.mxu0 0
        %742 = vmatprep.subr.bf16.mxu0 0
        %743 = vmatpush2.bf16.xpose.msra.mxu0 0
        %744 = vmatprep.mubr.bf16.mxu0 0
        %745 = vmatmul.mubr.bf16.gmra.mxu0 %v707
        %v746 = vpop.f32.mrf.mxu0
        %v747 = vadd.f32 0.0, %v746
        %v748 = vpop.f32.mrf.mxu0
        %v749 = vpop.f32.mrf.mxu0
        %v750 = vpop.f32.mrf.mxu0
        %751 = vdwg.mxu0
        %753 = vrot.lane.b32.xlu0 %v699, 64
        %v754 = vpop.permute.xlu0 %753
        %v756 = vsel %vm705, %v699, 0
        %v759 = vsel %vm705, %v754, 0
        %761 = vmatprep.subr.bf16.mxu0 0
        %762 = vmatpush1.bf16.xpose.msra.mxu0 0
        %763 = vmatprep.subr.bf16.mxu0 0
        %764 = vmatpush1.bf16.xpose.msra.mxu0 0
        %765 = vmatprep.subr.bf16.mxu0 0
        %766 = vmatpush1.bf16.xpose.msra.mxu0 0
        %767 = vmatprep.subr.bf16.mxu0 0
        %768 = vmatpush1.bf16.xpose.msra.mxu0 0
        %769 = vmatprep.subr.bf16.mxu0 0
        %770 = vmatpush1.bf16.xpose.msra.mxu0 0
        %771 = vmatprep.subr.bf16.mxu0 0
        %772 = vmatpush1.bf16.xpose.msra.mxu0 0
        %773 = vmatprep.subr.bf16.mxu0 0
        %774 = vmatpush1.bf16.xpose.msra.mxu0 0
        %775 = vmatprep.subr.bf16.mxu0 0
        %776 = vmatpush1.bf16.xpose.msra.mxu0 %v759
        %777 = vmatprep.subr.bf16.mxu0 0
        %778 = vmatpush2.bf16.xpose.msra.mxu0 0
        %779 = vmatprep.subr.bf16.mxu0 0
        %780 = vmatpush2.bf16.xpose.msra.mxu0 0
        %781 = vmatprep.subr.bf16.mxu0 0
        %782 = vmatpush2.bf16.xpose.msra.mxu0 0
        %783 = vmatprep.subr.bf16.mxu0 0
        %784 = vmatpush2.bf16.xpose.msra.mxu0 0
        %785 = vmatprep.subr.bf16.mxu0 0
        %786 = vmatpush2.bf16.xpose.msra.mxu0 0
        %787 = vmatprep.subr.bf16.mxu0 0
        %788 = vmatpush2.bf16.xpose.msra.mxu0 0
        %789 = vmatprep.subr.bf16.mxu0 0
        %790 = vmatpush2.bf16.xpose.msra.mxu0 0
        %791 = vmatprep.subr.bf16.mxu0 0
        %792 = vmatpush2.bf16.xpose.msra.mxu0 0
        %793 = vmatprep.mubr.bf16.mxu0 0
        %794 = vmatmul.mubr.bf16.gmra.mxu0 %v756
        %v795 = vpop.f32.mrf.mxu0
        %v796 = vadd.f32 0.0, %v795
        %v797 = vpop.f32.mrf.mxu0
        %v798 = vpop.f32.mrf.mxu0
        %v799 = vpop.f32.mrf.mxu0
        %800 = vdwg.mxu0
        %v801 = vmul.f32 %v747, 0.17677669
        %v802 = vmul.f32 %v796, 0.17677669
        %v805 = vlaneseq
        %v806 = vshrl.u32 %v805, 7
        %v807 = vsub.s32 0, %v806
        %v808 = vrot.slane %v432, %v807
        %v809 = vlaneseq
        %v810 = vshrl.u32 %v809, 7
        %v811 = vsub.s32 0, %v810
        %v812 = vrot.slane %v433, %v811
        %v815 = vadd.f32 %v801, %v808
        %v816 = vadd.f32 %v802, %v812
        %vm817 = vcmask 64512
        %v818 = vsel %vm817, %v815, -inf
        %819 = vmax.xlane.f32.xlu0 %v818
        %v820 = vpop.xlane.xlu0 %819
        %v821 = vsel %vm817, %v816, -inf
        %822 = vmax.xlane.f32.xlu0 %v821
        %v823 = vpop.xlane.xlu0 %822
        %v824 = vsub.f32 %v815, %v820
        %v825 = vsub.f32 %v816, %v823
        %v826 = vmul.f32 %v824, 1.442695
        %v827 = vpow.pop %v826
        %v828 = vmul.f32 %v825, 1.442695
        %v829 = vpow.pop %v828
        %v830 = vsel %vm817, %v827, 0.0
        %831 = vadd.xlane.f32.xlu0 %v830
        %v832 = vpop.xlane.xlu0 %831
        %v833 = vsel %vm817, %v829, 0.0
        %834 = vadd.xlane.f32.xlu0 %v833
        %v835 = vpop.xlane.xlu0 %834
        %v836 = vrcp.pop %v832
        %v837 = vrcp.pop %v835
        %v838 = vmul.f32 %v827, %v836
        %v839 = vmul.f32 %v829, %v837
        %v840 = vpack.c.bf16 %v838, %v838
        %v841 = vpack.c.bf16 %v839, %v839
        %v843 = vsel %vm817, %v840, 0
        %vm845 = vcmask 1043456
        %v847 = vsel %vm845, %v700, 0
        %849 = vmatprep.subr.bf16.mxu0 0
        %850 = vmatpush1.bf16.msra.mxu0 0
        %851 = vmatprep.subr.bf16.mxu0 0
        %852 = vmatpush1.bf16.msra.mxu0 0
        %853 = vmatprep.subr.bf16.mxu0 0
        %854 = vmatpush1.bf16.msra.mxu0 0
        %855 = vmatprep.subr.bf16.mxu0 0
        %856 = vmatpush1.bf16.msra.mxu0 0
        %857 = vmatprep.subr.bf16.mxu0 0
        %858 = vmatpush1.bf16.msra.mxu0 0
        %859 = vmatprep.subr.bf16.mxu0 0
        %860 = vmatpush1.bf16.msra.mxu0 0
        %861 = vmatprep.subr.bf16.mxu0 0
        %862 = vmatpush1.bf16.msra.mxu0 0
        %863 = vmatprep.subr.bf16.mxu0 0
        %864 = vmatpush1.bf16.msra.mxu0 %v847
        %865 = vmatprep.subr.bf16.mxu0 0
        %866 = vmatpush2.bf16.msra.mxu0 0
        %867 = vmatprep.subr.bf16.mxu0 0
        %868 = vmatpush2.bf16.msra.mxu0 0
        %869 = vmatprep.subr.bf16.mxu0 0
        %870 = vmatpush2.bf16.msra.mxu0 0
        %871 = vmatprep.subr.bf16.mxu0 0
        %872 = vmatpush2.bf16.msra.mxu0 0
        %873 = vmatprep.subr.bf16.mxu0 0
        %874 = vmatpush2.bf16.msra.mxu0 0
        %875 = vmatprep.subr.bf16.mxu0 0
        %876 = vmatpush2.bf16.msra.mxu0 0
        %877 = vmatprep.subr.bf16.mxu0 0
        %878 = vmatpush2.bf16.msra.mxu0 0
        %879 = vmatprep.subr.bf16.mxu0 0
        %880 = vmatpush2.bf16.msra.mxu0 0
        %881 = vmatprep.mubr.bf16.mxu0 0
        %882 = vmatmul.mubr.bf16.gmra.mxu0 %v843
        %v883 = vpop.f32.mrf.mxu0
        %v884 = vadd.f32 0.0, %v883
        %v885 = vpop.f32.mrf.mxu0
        %v886 = vpop.f32.mrf.mxu0
        %v887 = vpop.f32.mrf.mxu0
        %888 = vdwg.mxu0
        %v890 = vsel %vm817, %v841, 0
        %v893 = vsel %vm845, %v701, 0
        %895 = vmatprep.subr.bf16.mxu0 0
        %896 = vmatpush1.bf16.msra.mxu0 0
        %897 = vmatprep.subr.bf16.mxu0 0
        %898 = vmatpush1.bf16.msra.mxu0 0
        %899 = vmatprep.subr.bf16.mxu0 0
        %900 = vmatpush1.bf16.msra.mxu0 0
        %901 = vmatprep.subr.bf16.mxu0 0
        %902 = vmatpush1.bf16.msra.mxu0 0
        %903 = vmatprep.subr.bf16.mxu0 0
        %904 = vmatpush1.bf16.msra.mxu0 0
        %905 = vmatprep.subr.bf16.mxu0 0
        %906 = vmatpush1.bf16.msra.mxu0 0
        %907 = vmatprep.subr.bf16.mxu0 0
        %908 = vmatpush1.bf16.msra.mxu0 0
        %909 = vmatprep.subr.bf16.mxu0 0
        %910 = vmatpush1.bf16.msra.mxu0 %v893
        %911 = vmatprep.subr.bf16.mxu0 0
        %912 = vmatpush2.bf16.msra.mxu0 0
        %913 = vmatprep.subr.bf16.mxu0 0
        %914 = vmatpush2.bf16.msra.mxu0 0
        %915 = vmatprep.subr.bf16.mxu0 0
        %916 = vmatpush2.bf16.msra.mxu0 0
        %917 = vmatprep.subr.bf16.mxu0 0
        %918 = vmatpush2.bf16.msra.mxu0 0
        %919 = vmatprep.subr.bf16.mxu0 0
        %920 = vmatpush2.bf16.msra.mxu0 0
        %921 = vmatprep.subr.bf16.mxu0 0
        %922 = vmatpush2.bf16.msra.mxu0 0
        %923 = vmatprep.subr.bf16.mxu0 0
        %924 = vmatpush2.bf16.msra.mxu0 0
        %925 = vmatprep.subr.bf16.mxu0 0
        %926 = vmatpush2.bf16.msra.mxu0 0
        %927 = vmatprep.mubr.bf16.mxu0 0
        %928 = vmatmul.mubr.bf16.gmra.mxu0 %v890
        %v929 = vpop.f32.mrf.mxu0
        %v930 = vadd.f32 0.0, %v929
        %v931 = vpop.f32.mrf.mxu0
        %v932 = vpop.f32.mrf.mxu0
        %v933 = vpop.f32.mrf.mxu0
        %934 = vdwg.mxu0
        %v935 = vpack.c.bf16 %v930, %v884
        %936 = vrot.lane.b32.xlu0 %v698, 96
        %v937 = vpop.permute.xlu0 %936
        %938 = vrot.lane.b32.xlu0 %v698, 32
        %v939 = vpop.permute.xlu0 %938
        %v941 = vsel %vm705, %v937, 0
        %v944 = vsel %vm705, %v939, 0
        %946 = vmatprep.subr.bf16.mxu0 0
        %947 = vmatpush1.bf16.xpose.msra.mxu0 0
        %948 = vmatprep.subr.bf16.mxu0 0
        %949 = vmatpush1.bf16.xpose.msra.mxu0 0
        %950 = vmatprep.subr.bf16.mxu0 0
        %951 = vmatpush1.bf16.xpose.msra.mxu0 0
        %952 = vmatprep.subr.bf16.mxu0 0
        %953 = vmatpush1.bf16.xpose.msra.mxu0 0
        %954 = vmatprep.subr.bf16.mxu0 0
        %955 = vmatpush1.bf16.xpose.msra.mxu0 0
        %956 = vmatprep.subr.bf16.mxu0 0
        %957 = vmatpush1.bf16.xpose.msra.mxu0 0
        %958 = vmatprep.subr.bf16.mxu0 0
        %959 = vmatpush1.bf16.xpose.msra.mxu0 0
        %960 = vmatprep.subr.bf16.mxu0 0
        %961 = vmatpush1.bf16.xpose.msra.mxu0 %v944
        %962 = vmatprep.subr.bf16.mxu0 0
        %963 = vmatpush2.bf16.xpose.msra.mxu0 0
        %964 = vmatprep.subr.bf16.mxu0 0
        %965 = vmatpush2.bf16.xpose.msra.mxu0 0
        %966 = vmatprep.subr.bf16.mxu0 0
        %967 = vmatpush2.bf16.xpose.msra.mxu0 0
        %968 = vmatprep.subr.bf16.mxu0 0
        %969 = vmatpush2.bf16.xpose.msra.mxu0 0
        %970 = vmatprep.subr.bf16.mxu0 0
        %971 = vmatpush2.bf16.xpose.msra.mxu0 0
        %972 = vmatprep.subr.bf16.mxu0 0
        %973 = vmatpush2.bf16.xpose.msra.mxu0 0
        %974 = vmatprep.subr.bf16.mxu0 0
        %975 = vmatpush2.bf16.xpose.msra.mxu0 0
        %976 = vmatprep.subr.bf16.mxu0 0
        %977 = vmatpush2.bf16.xpose.msra.mxu0 0
        %978 = vmatprep.mubr.bf16.mxu0 0
        %979 = vmatmul.mubr.bf16.gmra.mxu0 %v941
        %v980 = vpop.f32.mrf.mxu0
        %v981 = vadd.f32 0.0, %v980
        %v982 = vpop.f32.mrf.mxu0
        %v983 = vpop.f32.mrf.mxu0
        %v984 = vpop.f32.mrf.mxu0
        %985 = vdwg.mxu0
        %986 = vrot.lane.b32.xlu0 %v699, 96
        %v987 = vpop.permute.xlu0 %986
        %988 = vrot.lane.b32.xlu0 %v699, 32
        %v989 = vpop.permute.xlu0 %988
        %v991 = vsel %vm705, %v987, 0
        %v994 = vsel %vm705, %v989, 0
        %996 = vmatprep.subr.bf16.mxu0 0
        %997 = vmatpush1.bf16.xpose.msra.mxu0 0
        %998 = vmatprep.subr.bf16.mxu0 0
        %999 = vmatpush1.bf16.xpose.msra.mxu0 0
        %1000 = vmatprep.subr.bf16.mxu0 0
        %1001 = vmatpush1.bf16.xpose.msra.mxu0 0
        %1002 = vmatprep.subr.bf16.mxu0 0
        %1003 = vmatpush1.bf16.xpose.msra.mxu0 0
        %1004 = vmatprep.subr.bf16.mxu0 0
        %1005 = vmatpush1.bf16.xpose.msra.mxu0 0
        %1006 = vmatprep.subr.bf16.mxu0 0
        %1007 = vmatpush1.bf16.xpose.msra.mxu0 0
        %1008 = vmatprep.subr.bf16.mxu0 0
        %1009 = vmatpush1.bf16.xpose.msra.mxu0 0
        %1010 = vmatprep.subr.bf16.mxu0 0
        %1011 = vmatpush1.bf16.xpose.msra.mxu0 %v994
        %1012 = vmatprep.subr.bf16.mxu0 0
        %1013 = vmatpush2.bf16.xpose.msra.mxu0 0
        %1014 = vmatprep.subr.bf16.mxu0 0
        %1015 = vmatpush2.bf16.xpose.msra.mxu0 0
        %1016 = vmatprep.subr.bf16.mxu0 0
        %1017 = vmatpush2.bf16.xpose.msra.mxu0 0
        %1018 = vmatprep.subr.bf16.mxu0 0
        %1019 = vmatpush2.bf16.xpose.msra.mxu0 0
        %1020 = vmatprep.subr.bf16.mxu0 0
        %1021 = vmatpush2.bf16.xpose.msra.mxu0 0
        %1022 = vmatprep.subr.bf16.mxu0 0
        %1023 = vmatpush2.bf16.xpose.msra.mxu0 0
        %1024 = vmatprep.subr.bf16.mxu0 0
        %1025 = vmatpush2.bf16.xpose.msra.mxu0 0
        %1026 = vmatprep.subr.bf16.mxu0 0
        %1027 = vmatpush2.bf16.xpose.msra.mxu0 0
        %1028 = vmatprep.mubr.bf16.mxu0 0
        %1029 = vmatmul.mubr.bf16.gmra.mxu0 %v991
        %v1030 = vpop.f32.mrf.mxu0
        %v1031 = vadd.f32 0.0, %v1030
        %v1032 = vpop.f32.mrf.mxu0
        %v1033 = vpop.f32.mrf.mxu0
        %v1034 = vpop.f32.mrf.mxu0
        %1035 = vdwg.mxu0
        %v1036 = vmul.f32 %v981, 0.17677669
        %v1037 = vmul.f32 %v1031, 0.17677669
        %v1038 = vadd.f32 %v1036, %v808
        %v1039 = vadd.f32 %v1037, %v812
        %v1040 = vsel %vm817, %v1038, -inf
        %1041 = vmax.xlane.f32.xlu0 %v1040
        %v1042 = vpop.xlane.xlu0 %1041
        %v1043 = vsel %vm817, %v1039, -inf
        %1044 = vmax.xlane.f32.xlu0 %v1043
        %v1045 = vpop.xlane.xlu0 %1044
        %v1046 = vsub.f32 %v1038, %v1042
        %v1047 = vsub.f32 %v1039, %v1045
        %v1048 = vmul.f32 %v1046, 1.442695
        %v1049 = vpow.pop %v1048
        %v1050 = vmul.f32 %v1047, 1.442695
        %v1051 = vpow.pop %v1050
        %v1052 = vsel %vm817, %v1049, 0.0
        %1053 = vadd.xlane.f32.xlu0 %v1052
        %v1054 = vpop.xlane.xlu0 %1053
        %v1055 = vsel %vm817, %v1051, 0.0
        %1056 = vadd.xlane.f32.xlu0 %v1055
        %v1057 = vpop.xlane.xlu0 %1056
        %v1058 = vrcp.pop %v1054
        %v1059 = vrcp.pop %v1057
        %v1060 = vmul.f32 %v1049, %v1058
        %v1061 = vmul.f32 %v1051, %v1059
        %v1062 = vpack.c.bf16 %v1060, %v1060
        %v1063 = vpack.c.bf16 %v1061, %v1061
        %1065 = vrot.lane.b32.xlu0 %v700, 96
        %v1066 = vpop.permute.xlu0 %1065
        %v1068 = vsel %vm817, %v1062, 0
        %v1071 = vsel %vm845, %v1066, 0
        %1073 = vmatprep.subr.bf16.mxu0 0
        %1074 = vmatpush1.bf16.msra.mxu0 0
        %1075 = vmatprep.subr.bf16.mxu0 0
        %1076 = vmatpush1.bf16.msra.mxu0 0
        %1077 = vmatprep.subr.bf16.mxu0 0
        %1078 = vmatpush1.bf16.msra.mxu0 0
        %1079 = vmatprep.subr.bf16.mxu0 0
        %1080 = vmatpush1.bf16.msra.mxu0 0
        %1081 = vmatprep.subr.bf16.mxu0 0
        %1082 = vmatpush1.bf16.msra.mxu0 0
        %1083 = vmatprep.subr.bf16.mxu0 0
        %1084 = vmatpush1.bf16.msra.mxu0 0
        %1085 = vmatprep.subr.bf16.mxu0 0
        %1086 = vmatpush1.bf16.msra.mxu0 0
        %1087 = vmatprep.subr.bf16.mxu0 0
        %1088 = vmatpush1.bf16.msra.mxu0 %v1071
        %1089 = vmatprep.subr.bf16.mxu0 0
        %1090 = vmatpush2.bf16.msra.mxu0 0
        %1091 = vmatprep.subr.bf16.mxu0 0
        %1092 = vmatpush2.bf16.msra.mxu0 0
        %1093 = vmatprep.subr.bf16.mxu0 0
        %1094 = vmatpush2.bf16.msra.mxu0 0
        %1095 = vmatprep.subr.bf16.mxu0 0
        %1096 = vmatpush2.bf16.msra.mxu0 0
        %1097 = vmatprep.subr.bf16.mxu0 0
        %1098 = vmatpush2.bf16.msra.mxu0 0
        %1099 = vmatprep.subr.bf16.mxu0 0
        %1100 = vmatpush2.bf16.msra.mxu0 0
        %1101 = vmatprep.subr.bf16.mxu0 0
        %1102 = vmatpush2.bf16.msra.mxu0 0
        %1103 = vmatprep.subr.bf16.mxu0 0
        %1104 = vmatpush2.bf16.msra.mxu0 0
        %1105 = vmatprep.mubr.bf16.mxu0 0
        %1106 = vmatmul.mubr.bf16.gmra.mxu0 %v1068
        %v1107 = vpop.f32.mrf.mxu0
        %v1108 = vadd.f32 0.0, %v1107
        %v1109 = vpop.f32.mrf.mxu0
        %v1110 = vpop.f32.mrf.mxu0
        %v1111 = vpop.f32.mrf.mxu0
        %1112 = vdwg.mxu0
        %1114 = vrot.lane.b32.xlu0 %v701, 96
        %v1115 = vpop.permute.xlu0 %1114
        %v1117 = vsel %vm817, %v1063, 0
        %v1120 = vsel %vm845, %v1115, 0
        %1122 = vmatprep.subr.bf16.mxu0 0
        %1123 = vmatpush1.bf16.msra.mxu0 0
        %1124 = vmatprep.subr.bf16.mxu0 0
        %1125 = vmatpush1.bf16.msra.mxu0 0
        %1126 = vmatprep.subr.bf16.mxu0 0
        %1127 = vmatpush1.bf16.msra.mxu0 0
        %1128 = vmatprep.subr.bf16.mxu0 0
        %1129 = vmatpush1.bf16.msra.mxu0 0
        %1130 = vmatprep.subr.bf16.mxu0 0
        %1131 = vmatpush1.bf16.msra.mxu0 0
        %1132 = vmatprep.subr.bf16.mxu0 0
        %1133 = vmatpush1.bf16.msra.mxu0 0
        %1134 = vmatprep.subr.bf16.mxu0 0
        %1135 = vmatpush1.bf16.msra.mxu0 0
        %1136 = vmatprep.subr.bf16.mxu0 0
        %1137 = vmatpush1.bf16.msra.mxu0 %v1120
        %1138 = vmatprep.subr.bf16.mxu0 0
        %1139 = vmatpush2.bf16.msra.mxu0 0
        %1140 = vmatprep.subr.bf16.mxu0 0
        %1141 = vmatpush2.bf16.msra.mxu0 0
        %1142 = vmatprep.subr.bf16.mxu0 0
        %1143 = vmatpush2.bf16.msra.mxu0 0
        %1144 = vmatprep.subr.bf16.mxu0 0
        %1145 = vmatpush2.bf16.msra.mxu0 0
        %1146 = vmatprep.subr.bf16.mxu0 0
        %1147 = vmatpush2.bf16.msra.mxu0 0
        %1148 = vmatprep.subr.bf16.mxu0 0
        %1149 = vmatpush2.bf16.msra.mxu0 0
        %1150 = vmatprep.subr.bf16.mxu0 0
        %1151 = vmatpush2.bf16.msra.mxu0 0
        %1152 = vmatprep.subr.bf16.mxu0 0
        %1153 = vmatpush2.bf16.msra.mxu0 0
        %1154 = vmatprep.mubr.bf16.mxu0 0
        %1155 = vmatmul.mubr.bf16.gmra.mxu0 %v1117
        %v1156 = vpop.f32.mrf.mxu0
        %v1157 = vadd.f32 0.0, %v1156
        %v1158 = vpop.f32.mrf.mxu0
        %v1159 = vpop.f32.mrf.mxu0
        %v1160 = vpop.f32.mrf.mxu0
        %1161 = vdwg.mxu0
        %v1162 = vpack.c.bf16 %v1157, %v1108
        %v1167 = vunpack.c.l.b16 %v587
        %v1168 = vunpack.c.l.b16 %v588
        %v1169 = vunpack.c.l.b16 %v589
        %v1170 = vunpack.c.l.b16 %v590
        %v1171 = vpack.c.b16 %v1168, %v1167
        %v1172 = vpack.c.b16 %v1170, %v1169
        %v1176 = vsel %vm705, %v1162, 0
        %1178 = vmatprep.subr.bf16.mxu0 0
        %1179 = vmatpush1.bf16.msra.mxu0 0
        %1180 = vmatprep.subr.bf16.mxu0 0
        %1181 = vmatpush1.bf16.msra.mxu0 0
        %1182 = vmatprep.subr.bf16.mxu0 0
        %1183 = vmatpush1.bf16.msra.mxu0 0
        %1184 = vmatprep.subr.bf16.mxu0 0
        %1185 = vmatpush1.bf16.msra.mxu0 0
        %1186 = vmatprep.subr.bf16.mxu0 0
        %1187 = vmatpush1.bf16.msra.mxu0 0
        %1188 = vmatprep.subr.bf16.mxu0 0
        %1189 = vmatpush1.bf16.msra.mxu0 0
        %1190 = vmatprep.subr.bf16.mxu0 0
        %1191 = vmatpush1.bf16.msra.mxu0 %v1172
        %1192 = vmatprep.subr.bf16.mxu0 0
        %1193 = vmatpush1.bf16.msra.mxu0 %v1171
        %1194 = vmatprep.subr.bf16.mxu0 0
        %1195 = vmatpush2.bf16.msra.mxu0 0
        %1196 = vmatprep.subr.bf16.mxu0 0
        %1197 = vmatpush2.bf16.msra.mxu0 0
        %1198 = vmatprep.subr.bf16.mxu0 0
        %1199 = vmatpush2.bf16.msra.mxu0 0
        %1200 = vmatprep.subr.bf16.mxu0 0
        %1201 = vmatpush2.bf16.msra.mxu0 0
        %1202 = vmatprep.subr.bf16.mxu0 0
        %1203 = vmatpush2.bf16.msra.mxu0 0
        %1204 = vmatprep.subr.bf16.mxu0 0
        %1205 = vmatpush2.bf16.msra.mxu0 0
        %1206 = vmatprep.subr.bf16.mxu0 0
        %1207 = vmatpush2.bf16.msra.mxu0 0
        %1208 = vmatprep.subr.bf16.mxu0 0
        %1209 = vmatpush2.bf16.msra.mxu0 0
        %1210 = vmatprep.mubr.bf16.mxu0 0
        %1211 = vmatmul.mubr.bf16.gmra.mxu0 %v1176
        %v1212 = vpop.f32.mrf.mxu0
        %v1213 = vadd.f32 0.0, %v1212
        %v1214 = vpop.f32.mrf.mxu0
        %v1215 = vpop.f32.mrf.mxu0
        %v1216 = vadd.f32 0.0, %v1215
        %v1217 = vpop.f32.mrf.mxu0
        %1218 = vdwg.mxu0
        %v1223 = vunpack.c.l.b16 %v583
        %v1224 = vunpack.c.l.b16 %v584
        %v1225 = vunpack.c.l.b16 %v585
        %v1226 = vunpack.c.l.b16 %v586
        %v1227 = vpack.c.b16 %v1224, %v1223
        %v1228 = vpack.c.b16 %v1226, %v1225
        %v1232 = vsel %vm705, %v935, 0
        %1234 = vmatprep.subr.bf16.mxu0 0
        %1235 = vmatpush1.bf16.msra.mxu0 0
        %1236 = vmatprep.subr.bf16.mxu0 0
        %1237 = vmatpush1.bf16.msra.mxu0 0
        %1238 = vmatprep.subr.bf16.mxu0 0
        %1239 = vmatpush1.bf16.msra.mxu0 0
        %1240 = vmatprep.subr.bf16.mxu0 0
        %1241 = vmatpush1.bf16.msra.mxu0 0
        %1242 = vmatprep.subr.bf16.mxu0 0
        %1243 = vmatpush1.bf16.msra.mxu0 0
        %1244 = vmatprep.subr.bf16.mxu0 0
        %1245 = vmatpush1.bf16.msra.mxu0 0
        %1246 = vmatprep.subr.bf16.mxu0 0
        %1247 = vmatpush1.bf16.msra.mxu0 %v1228
        %1248 = vmatprep.subr.bf16.mxu0 0
        %1249 = vmatpush1.bf16.msra.mxu0 %v1227
        %1250 = vmatprep.subr.bf16.mxu0 0
        %1251 = vmatpush2.bf16.msra.mxu0 0
        %1252 = vmatprep.subr.bf16.mxu0 0
        %1253 = vmatpush2.bf16.msra.mxu0 0
        %1254 = vmatprep.subr.bf16.mxu0 0
        %1255 = vmatpush2.bf16.msra.mxu0 0
        %1256 = vmatprep.subr.bf16.mxu0 0
        %1257 = vmatpush2.bf16.msra.mxu0 0
        %1258 = vmatprep.subr.bf16.mxu0 0
        %1259 = vmatpush2.bf16.msra.mxu0 0
        %1260 = vmatprep.subr.bf16.mxu0 0
        %1261 = vmatpush2.bf16.msra.mxu0 0
        %1262 = vmatprep.subr.bf16.mxu0 0
        %1263 = vmatpush2.bf16.msra.mxu0 0
        %1264 = vmatprep.subr.bf16.mxu0 0
        %1265 = vmatpush2.bf16.msra.mxu0 0
        %1266 = vmatprep.mubr.bf16.mxu0 0
        %1267 = vmatmul.mubr.bf16.gmra.mxu0 %v1232
        %v1268 = vpop.f32.mrf.mxu0
        %v1269 = vadd.f32 %v1213, %v1268
        %v1270 = vpop.f32.mrf.mxu0
        %v1271 = vpop.f32.mrf.mxu0
        %v1272 = vadd.f32 %v1216, %v1271
        %v1273 = vpop.f32.mrf.mxu0
        %1274 = vdwg.mxu0
        %v1275 = vadd.f32 %v580, %v1269
        %v1276 = vadd.f32 %v581, %v1272
        %v1277 = vlaneseq
        %v1278 = vshrl.u32 %v1277, 7
        %v1279 = vsub.s32 0, %v1278
        %v1280 = vrot.slane %v582, %v1279
        %v1281 = vadd.f32 %v1275, %v1280
        %v1282 = vadd.f32 %v1276, %v1280
        %v1283 = vsel %vm542, %v1281, 0.0
        %1284 = vadd.xlane.f32.xlu0 %v1283
        %v1285 = vpop.xlane.xlu0 %1284
        %v1286 = vsel %vm542, %v1282, 0.0
        %1287 = vadd.xlane.f32.xlu0 %v1286
        %v1288 = vpop.xlane.xlu0 %1287
        %v1289 = vmul.f32 %v1285, %v549
        %v1290 = vmul.f32 %v1288, %v549
        %v1291 = vsub.f32 %v1281, %v1289
        %v1292 = vsub.f32 %v1282, %v1290
        %v1293 = vmul.f32 %v1291, %v1291
        %v1294 = vmul.f32 %v1292, %v1292
        %v1295 = vsel %vm542, %v1293, 0.0
        %1296 = vadd.xlane.f32.xlu0 %v1295
        %v1297 = vpop.xlane.xlu0 %1296
        %v1298 = vsel %vm542, %v1294, 0.0
        %1299 = vadd.xlane.f32.xlu0 %v1298
        %v1300 = vpop.xlane.xlu0 %1299
        %v1301 = vmul.f32 %v1297, %v549
        %v1302 = vmul.f32 %v1300, %v549
        %v1303 = vadd.f32 %v1301, 1e-12
        %v1304 = vadd.f32 %v1302, 1e-12
        %v1305 = vrsqrt.pop %v1303
        %v1306 = vrsqrt.pop %v1304
        %v1307 = vmul.f32 %v1291, %v1305
        %v1308 = vmul.f32 %v1292, %v1306
        %v1309 = vlaneseq
        %v1310 = vshrl.u32 %v1309, 7
        %v1311 = vsub.s32 1, %v1310
        %v1312 = vrot.slane %v582, %v1311
        %v1313 = vmul.f32 %v1307, %v1312
        %v1314 = vmul.f32 %v1308, %v1312
        %v1315 = vlaneseq
        %v1316 = vshrl.u32 %v1315, 7
        %v1317 = vsub.s32 2, %v1316
        %v1318 = vrot.slane %v582, %v1317
        %v1319 = vadd.f32 %v1313, %v1318
        %v1320 = vadd.f32 %v1314, %v1318
        %v1321 = vpack.c.bf16 %v1320, %v1319
        %v1322 = vld [vmem:[%s8] sm:$0xf]
        %v1323 = vld [vmem:[%s8 + $0x4] sm:$0xf]
        %v1324 = vld [vmem:[%s8 + $0x8] sm:$0xf]
        %v1325 = vld [vmem:[%s8 + $0xc] sm:$0xf]
        %v1326 = vld [vmem:[%s8 + $0x10] sm:$0xf]
        %v1327 = vld [vmem:[%s8 + $0x14] sm:$0xf]
        %v1328 = vld [vmem:[%s8 + $0x18] sm:$0xf]
        %v1329 = vld [vmem:[%s8 + $0x1c] sm:$0xf]
        %v1330 = vld [vmem:[%s9] sm:$0x1]
        %v1332 = vlaneseq
        %v1333 = vshrl.u32 %v1332, 7
        %v1334 = vsub.s32 0, %v1333
        %v1335 = vrot.slane %v1330, %v1334
        %v1345 = vunpack.c.l.b16 %v1322
        %v1346 = vunpack.c.l.b16 %v1323
        %v1347 = vunpack.c.l.b16 %v1324
        %v1348 = vunpack.c.l.b16 %v1325
        %v1349 = vunpack.c.l.b16 %v1326
        %v1350 = vunpack.c.l.b16 %v1327
        %v1351 = vunpack.c.l.b16 %v1328
        %v1352 = vunpack.c.l.b16 %v1329
        %v1353 = vpack.c.b16 %v1346, %v1345
        %v1354 = vpack.c.b16 %v1348, %v1347
        %v1355 = vpack.c.b16 %v1350, %v1349
        %v1356 = vpack.c.b16 %v1352, %v1351
        %v1362 = vsel %vm542, %v1321, 0
        %1364 = vmatprep.subr.bf16.mxu0 0
        %1365 = vmatpush1.bf16.msra.mxu0 0
        %1366 = vmatprep.subr.bf16.mxu0 0
        %1367 = vmatpush1.bf16.msra.mxu0 0
        %1368 = vmatprep.subr.bf16.mxu0 0
        %1369 = vmatpush1.bf16.msra.mxu0 0
        %1370 = vmatprep.subr.bf16.mxu0 0
        %1371 = vmatpush1.bf16.msra.mxu0 0
        %1372 = vmatprep.subr.bf16.mxu0 0
        %1373 = vmatpush1.bf16.msra.mxu0 %v1356
        %1374 = vmatprep.subr.bf16.mxu0 0
        %1375 = vmatpush1.bf16.msra.mxu0 %v1355
        %1376 = vmatprep.subr.bf16.mxu0 0
        %1377 = vmatpush1.bf16.msra.mxu0 %v1354
        %1378 = vmatprep.subr.bf16.mxu0 0
        %1379 = vmatpush1.bf16.msra.mxu0 %v1353
        %1380 = vmatprep.subr.bf16.mxu0 0
        %1381 = vmatpush2.bf16.msra.mxu0 0
        %1382 = vmatprep.subr.bf16.mxu0 0
        %1383 = vmatpush2.bf16.msra.mxu0 0
        %1384 = vmatprep.subr.bf16.mxu0 0
        %1385 = vmatpush2.bf16.msra.mxu0 0
        %1386 = vmatprep.subr.bf16.mxu0 0
        %1387 = vmatpush2.bf16.msra.mxu0 0
        %1388 = vmatprep.subr.bf16.mxu0 0
        %1389 = vmatpush2.bf16.msra.mxu0 0
        %1390 = vmatprep.subr.bf16.mxu0 0
        %1391 = vmatpush2.bf16.msra.mxu0 0
        %1392 = vmatprep.subr.bf16.mxu0 0
        %1393 = vmatpush2.bf16.msra.mxu0 0
        %1394 = vmatprep.subr.bf16.mxu0 0
        %1395 = vmatpush2.bf16.msra.mxu0 0
        %1396 = vmatprep.mubr.bf16.mxu0 0
        %1397 = vmatmul.mubr.bf16.gmra.mxu0 %v1362
        %v1398 = vpop.f32.mrf.mxu0
        %v1399 = vadd.f32 %v1335, %v1398
        %v1400 = vpop.f32.mrf.mxu0
        %v1401 = vpop.f32.mrf.mxu0
        %v1402 = vadd.f32 %v1335, %v1401
        %v1403 = vpop.f32.mrf.mxu0
        %1404 = vdwg.mxu0
        %v1405 = vmul.f32 %v1399, %v1399
        %v1406 = vmul.f32 %v1402, %v1402
        %v1407 = vmul.f32 %v1399, %v1405
        %v1408 = vmul.f32 %v1402, %v1406
        %v1409 = vmul.f32 %v1407, 0.044715
        %v1410 = vmul.f32 %v1408, 0.044715
        %v1411 = vadd.f32 %v1399, %v1409
        %v1412 = vadd.f32 %v1402, %v1410
        %v1413 = vmul.f32 %v1411, 0.7978846
        %v1414 = vmul.f32 %v1412, 0.7978846
        %v1415 = vtanh.pop %v1413
        %v1416 = vtanh.pop %v1414
        %v1417 = vadd.f32 %v1415, 1.0
        %v1418 = vadd.f32 %v1416, 1.0
        %v1419 = vmul.f32 %v1417, 0.5
        %v1420 = vmul.f32 %v1418, 0.5
        %v1421 = vmul.f32 %v1399, %v1419
        %v1422 = vmul.f32 %v1402, %v1420
        %v1423 = vpack.c.bf16 %v1422, %v1421
        %v1424 = vld [vmem:[%s10] sm:$0xf]
        %v1425 = vld [vmem:[%s10 + $0x4] sm:$0xf]
        %v1426 = vld [vmem:[%s10 + $0x8] sm:$0xf]
        %v1427 = vld [vmem:[%s10 + $0xc] sm:$0xf]
        %v1428 = vld [vmem:[%s10 + $0x10] sm:$0xf]
        %v1429 = vld [vmem:[%s10 + $0x14] sm:$0xf]
        %v1430 = vld [vmem:[%s10 + $0x18] sm:$0xf]
        %v1431 = vld [vmem:[%s10 + $0x1c] sm:$0xf]
        %v1432 = vld [vmem:[%s10 + $0x20] sm:$0xf]
        %v1433 = vld [vmem:[%s10 + $0x24] sm:$0xf]
        %v1434 = vld [vmem:[%s10 + $0x28] sm:$0xf]
        %v1435 = vld [vmem:[%s10 + $0x2c] sm:$0xf]
        %v1436 = vld [vmem:[%s10 + $0x30] sm:$0xf]
        %v1437 = vld [vmem:[%s10 + $0x34] sm:$0xf]
        %v1438 = vld [vmem:[%s10 + $0x38] sm:$0xf]
        %v1439 = vld [vmem:[%s10 + $0x3c] sm:$0xf]
        %v1440 = vlaneseq
        %v1441 = vshrl.u32 %v1440, 7
        %v1442 = vsub.s32 3, %v1441
        %v1443 = vrot.slane %v582, %v1442
        %v1460 = vunpack.c.l.b16 %v1424
        %v1461 = vunpack.c.l.b16 %v1425
        %v1462 = vunpack.c.l.b16 %v1426
        %v1463 = vunpack.c.l.b16 %v1427
        %v1464 = vunpack.c.l.b16 %v1428
        %v1465 = vunpack.c.l.b16 %v1429
        %v1466 = vunpack.c.l.b16 %v1430
        %v1467 = vunpack.c.l.b16 %v1431
        %v1468 = vunpack.c.l.b16 %v1432
        %v1469 = vunpack.c.l.b16 %v1433
        %v1470 = vunpack.c.l.b16 %v1434
        %v1471 = vunpack.c.l.b16 %v1435
        %v1472 = vunpack.c.l.b16 %v1436
        %v1473 = vunpack.c.l.b16 %v1437
        %v1474 = vunpack.c.l.b16 %v1438
        %v1475 = vunpack.c.l.b16 %v1439
        %v1476 = vpack.c.b16 %v1461, %v1460
        %v1477 = vpack.c.b16 %v1463, %v1462
        %v1478 = vpack.c.b16 %v1465, %v1464
        %v1479 = vpack.c.b16 %v1467, %v1466
        %v1480 = vpack.c.b16 %v1469, %v1468
        %v1481 = vpack.c.b16 %v1471, %v1470
        %v1482 = vpack.c.b16 %v1473, %v1472
        %v1483 = vpack.c.b16 %v1475, %v1474
        %1492 = vmatprep.subr.bf16.mxu0 0
        %1493 = vmatpush1.bf16.msra.mxu0 %v1483
        %1494 = vmatprep.subr.bf16.mxu0 0
        %1495 = vmatpush1.bf16.msra.mxu0 %v1482
        %1496 = vmatprep.subr.bf16.mxu0 0
        %1497 = vmatpush1.bf16.msra.mxu0 %v1481
        %1498 = vmatprep.subr.bf16.mxu0 0
        %1499 = vmatpush1.bf16.msra.mxu0 %v1480
        %1500 = vmatprep.subr.bf16.mxu0 0
        %1501 = vmatpush1.bf16.msra.mxu0 %v1479
        %1502 = vmatprep.subr.bf16.mxu0 0
        %1503 = vmatpush1.bf16.msra.mxu0 %v1478
        %1504 = vmatprep.subr.bf16.mxu0 0
        %1505 = vmatpush1.bf16.msra.mxu0 %v1477
        %1506 = vmatprep.subr.bf16.mxu0 0
        %1507 = vmatpush1.bf16.msra.mxu0 %v1476
        %1508 = vmatprep.subr.bf16.mxu0 0
        %1509 = vmatpush2.bf16.msra.mxu0 0
        %1510 = vmatprep.subr.bf16.mxu0 0
        %1511 = vmatpush2.bf16.msra.mxu0 0
        %1512 = vmatprep.subr.bf16.mxu0 0
        %1513 = vmatpush2.bf16.msra.mxu0 0
        %1514 = vmatprep.subr.bf16.mxu0 0
        %1515 = vmatpush2.bf16.msra.mxu0 0
        %1516 = vmatprep.subr.bf16.mxu0 0
        %1517 = vmatpush2.bf16.msra.mxu0 0
        %1518 = vmatprep.subr.bf16.mxu0 0
        %1519 = vmatpush2.bf16.msra.mxu0 0
        %1520 = vmatprep.subr.bf16.mxu0 0
        %1521 = vmatpush2.bf16.msra.mxu0 0
        %1522 = vmatprep.subr.bf16.mxu0 0
        %1523 = vmatpush2.bf16.msra.mxu0 0
        %1524 = vmatprep.mubr.bf16.mxu0 0
        %1525 = vmatmul.mubr.bf16.gmra.mxu0 %v1423
        %v1526 = vpop.f32.mrf.mxu0
        %v1527 = vadd.f32 %v1443, %v1526
        %v1528 = vpop.f32.mrf.mxu0
        %v1529 = vpop.f32.mrf.mxu0
        %v1530 = vadd.f32 %v1443, %v1529
        %v1531 = vpop.f32.mrf.mxu0
        %1532 = vdwg.mxu0
        %v1533 = vadd.f32 %v1319, %v1527
        %v1534 = vadd.f32 %v1320, %v1530
        %v1535 = vsel %vm542, %v1533, 0.0
        %1536 = vadd.xlane.f32.xlu0 %v1535
        %v1537 = vpop.xlane.xlu0 %1536
        %v1538 = vsel %vm542, %v1534, 0.0
        %1539 = vadd.xlane.f32.xlu0 %v1538
        %v1540 = vpop.xlane.xlu0 %1539
        %v1541 = vmul.f32 %v1537, %v549
        %v1542 = vmul.f32 %v1540, %v549
        %v1543 = vsub.f32 %v1533, %v1541
        %v1544 = vsub.f32 %v1534, %v1542
        %v1545 = vmul.f32 %v1543, %v1543
        %v1546 = vmul.f32 %v1544, %v1544
        %v1547 = vsel %vm542, %v1545, 0.0
        %1548 = vadd.xlane.f32.xlu0 %v1547
        %v1549 = vpop.xlane.xlu0 %1548
        %v1550 = vsel %vm542, %v1546, 0.0
        %1551 = vadd.xlane.f32.xlu0 %v1550
        %v1552 = vpop.xlane.xlu0 %1551
        %v1553 = vmul.f32 %v1549, %v549
        %v1554 = vmul.f32 %v1552, %v549
        %v1555 = vadd.f32 %v1553, 1e-12
        %v1556 = vadd.f32 %v1554, 1e-12
        %v1557 = vrsqrt.pop %v1555
        %v1558 = vrsqrt.pop %v1556
        %v1559 = vmul.f32 %v1543, %v1557
        %v1560 = vmul.f32 %v1544, %v1558
        %v1561 = vlaneseq
        %v1562 = vshrl.u32 %v1561, 7
        %v1563 = vsub.s32 4, %v1562
        %v1564 = vrot.slane %v582, %v1563
        %v1565 = vmul.f32 %v1559, %v1564
        %v1566 = vmul.f32 %v1560, %v1564
        %v1567 = vlaneseq
        %v1568 = vshrl.u32 %v1567, 7
        %v1569 = vsub.s32 5, %v1568
        %v1570 = vrot.slane %v582, %v1569
        %v1571 = vadd.f32 %v1565, %v1570
        %v1572 = vadd.f32 %v1566, %v1570
        %s1573 = scalar_lea.vmem %s11, 8
        %v1574 = vld [vmem:[%s1573] sm:$0x3f]
        %s1575 = scalar_lea.vmem %s7, 32
        %v1576 = vld [vmem:[%s1575] sm:$0xf]
        %v1577 = vld [vmem:[%s1575 + $0x4] sm:$0xf]
        %v1578 = vld [vmem:[%s1575 + $0x8] sm:$0xf]
        %v1579 = vld [vmem:[%s1575 + $0xc] sm:$0xf]
        %v1580 = vld [vmem:[%s1575 + $0x10] sm:$0xf]
        %v1581 = vld [vmem:[%s1575 + $0x14] sm:$0xf]
        %v1582 = vld [vmem:[%s1575 + $0x18] sm:$0xf]
        %v1583 = vld [vmem:[%s1575 + $0x1c] sm:$0xf]
        %v1584 = vpack.c.bf16 %v1572, %v1571
        %s1585 = scalar_lea.vmem %s5, 64
        %v1586 = vld [vmem:[%s1585] sm:$0xff]
        %v1587 = vld [vmem:[%s1585 + $0x8] sm:$0xff]
        %v1588 = vld [vmem:[%s1585 + $0x10] sm:$0xff]
        %v1589 = vld [vmem:[%s1585 + $0x18] sm:$0xff]
        %v1590 = vld [vmem:[%s1585 + $0x20] sm:$0xff]
        %v1591 = vld [vmem:[%s1585 + $0x28] sm:$0xff]
        %v1592 = vld [vmem:[%s1585 + $0x30] sm:$0xff]
        %v1593 = vld [vmem:[%s1585 + $0x38] sm:$0xff]
        %s1594 = scalar_lea.vmem %s6, 2
        %v1595 = vld [vmem:[%s1594] sm:$0x3]
        %v1597 = vlaneseq
        %v1598 = vshrl.u32 %v1597, 7
        %v1599 = vsub.s32 0, %v1598
        %v1600 = vrot.slane %v1595, %v1599
        %v1601 = vlaneseq
        %v1602 = vshrl.u32 %v1601, 7
        %v1603 = vsub.s32 1, %v1602
        %v1604 = vrot.slane %v1595, %v1603
        %v1615 = vunpack.c.l.b16 %v1586
        %v1616 = vunpack.c.h.b16 %v1586
        %v1617 = vunpack.c.l.b16 %v1587
        %v1618 = vunpack.c.h.b16 %v1587
        %v1619 = vunpack.c.l.b16 %v1588
        %v1620 = vunpack.c.h.b16 %v1588
        %v1621 = vunpack.c.l.b16 %v1589
        %v1622 = vunpack.c.h.b16 %v1589
        %v1623 = vunpack.c.l.b16 %v1590
        %v1624 = vunpack.c.h.b16 %v1590
        %v1625 = vunpack.c.l.b16 %v1591
        %v1626 = vunpack.c.h.b16 %v1591
        %v1627 = vunpack.c.l.b16 %v1592
        %v1628 = vunpack.c.h.b16 %v1592
        %v1629 = vunpack.c.l.b16 %v1593
        %v1630 = vunpack.c.h.b16 %v1593
        %v1631 = vpack.c.b16 %v1617, %v1615
        %v1632 = vpack.c.b16 %v1618, %v1616
        %v1633 = vpack.c.b16 %v1621, %v1619
        %v1634 = vpack.c.b16 %v1622, %v1620
        %v1635 = vpack.c.b16 %v1625, %v1623
        %v1636 = vpack.c.b16 %v1626, %v1624
        %v1637 = vpack.c.b16 %v1629, %v1627
        %v1638 = vpack.c.b16 %v1630, %v1628
        %v1648 = vsel %vm542, %v1584, 0
        %1650 = vmatprep.subr.bf16.mxu0 0
        %1651 = vmatpush1.bf16.msra.mxu0 0
        %1652 = vmatprep.subr.bf16.mxu0 0
        %1653 = vmatpush1.bf16.msra.mxu0 0
        %1654 = vmatprep.subr.bf16.mxu0 0
        %1655 = vmatpush1.bf16.msra.mxu0 0
        %1656 = vmatprep.subr.bf16.mxu0 0
        %1657 = vmatpush1.bf16.msra.mxu0 0
        %1658 = vmatprep.subr.bf16.mxu0 %v1638
        %1659 = vmatpush1.bf16.msra.mxu0 %v1637
        %1660 = vmatprep.subr.bf16.mxu0 %v1636
        %1661 = vmatpush1.bf16.msra.mxu0 %v1635
        %1662 = vmatprep.subr.bf16.mxu0 %v1634
        %1663 = vmatpush1.bf16.msra.mxu0 %v1633
        %1664 = vmatprep.subr.bf16.mxu0 %v1632
        %1665 = vmatpush1.bf16.msra.mxu0 %v1631
        %1666 = vmatprep.subr.bf16.mxu0 0
        %1667 = vmatpush2.bf16.msra.mxu0 0
        %1668 = vmatprep.subr.bf16.mxu0 0
        %1669 = vmatpush2.bf16.msra.mxu0 0
        %1670 = vmatprep.subr.bf16.mxu0 0
        %1671 = vmatpush2.bf16.msra.mxu0 0
        %1672 = vmatprep.subr.bf16.mxu0 0
        %1673 = vmatpush2.bf16.msra.mxu0 0
        %1674 = vmatprep.subr.bf16.mxu0 0
        %1675 = vmatpush2.bf16.msra.mxu0 0
        %1676 = vmatprep.subr.bf16.mxu0 0
        %1677 = vmatpush2.bf16.msra.mxu0 0
        %1678 = vmatprep.subr.bf16.mxu0 0
        %1679 = vmatpush2.bf16.msra.mxu0 0
        %1680 = vmatprep.subr.bf16.mxu0 0
        %1681 = vmatpush2.bf16.msra.mxu0 0
        %1682 = vmatprep.mubr.bf16.mxu0 0
        %1683 = vmatmul.mubr.bf16.gmra.mxu0 %v1648
        %v1684 = vpop.f32.mrf.mxu0
        %v1685 = vadd.f32 %v1600, %v1684
        %v1686 = vpop.f32.mrf.mxu0
        %v1687 = vadd.f32 %v1604, %v1686
        %v1688 = vpop.f32.mrf.mxu0
        %v1689 = vadd.f32 %v1600, %v1688
        %v1690 = vpop.f32.mrf.mxu0
        %v1691 = vadd.f32 %v1604, %v1690
        %1692 = vdwg.mxu0
        %v1693 = vpack.c.bf16 %v1685, %v1685
        %v1694 = vpack.c.bf16 %v1689, %v1689
        %v1695 = vpack.c.bf16 %v1687, %v1687
        %v1696 = vpack.c.bf16 %v1691, %v1691
        %1698 = vrot.lane.b32.xlu0 %v1693, 64
        %v1699 = vpop.permute.xlu0 %1698
        %v1701 = vsel %vm705, %v1693, 0
        %v1704 = vsel %vm705, %v1699, 0
        %1706 = vmatprep.subr.bf16.mxu0 0
        %1707 = vmatpush1.bf16.xpose.msra.mxu0 0
        %1708 = vmatprep.subr.bf16.mxu0 0
        %1709 = vmatpush1.bf16.xpose.msra.mxu0 0
        %1710 = vmatprep.subr.bf16.mxu0 0
        %1711 = vmatpush1.bf16.xpose.msra.mxu0 0
        %1712 = vmatprep.subr.bf16.mxu0 0
        %1713 = vmatpush1.bf16.xpose.msra.mxu0 0
        %1714 = vmatprep.subr.bf16.mxu0 0
        %1715 = vmatpush1.bf16.xpose.msra.mxu0 0
        %1716 = vmatprep.subr.bf16.mxu0 0
        %1717 = vmatpush1.bf16.xpose.msra.mxu0 0
        %1718 = vmatprep.subr.bf16.mxu0 0
        %1719 = vmatpush1.bf16.xpose.msra.mxu0 0
        %1720 = vmatprep.subr.bf16.mxu0 0
        %1721 = vmatpush1.bf16.xpose.msra.mxu0 %v1704
        %1722 = vmatprep.subr.bf16.mxu0 0
        %1723 = vmatpush2.bf16.xpose.msra.mxu0 0
        %1724 = vmatprep.subr.bf16.mxu0 0
        %1725 = vmatpush2.bf16.xpose.msra.mxu0 0
        %1726 = vmatprep.subr.bf16.mxu0 0
        %1727 = vmatpush2.bf16.xpose.msra.mxu0 0
        %1728 = vmatprep.subr.bf16.mxu0 0
        %1729 = vmatpush2.bf16.xpose.msra.mxu0 0
        %1730 = vmatprep.subr.bf16.mxu0 0
        %1731 = vmatpush2.bf16.xpose.msra.mxu0 0
        %1732 = vmatprep.subr.bf16.mxu0 0
        %1733 = vmatpush2.bf16.xpose.msra.mxu0 0
        %1734 = vmatprep.subr.bf16.mxu0 0
        %1735 = vmatpush2.bf16.xpose.msra.mxu0 0
        %1736 = vmatprep.subr.bf16.mxu0 0
        %1737 = vmatpush2.bf16.xpose.msra.mxu0 0
        %1738 = vmatprep.mubr.bf16.mxu0 0
        %1739 = vmatmul.mubr.bf16.gmra.mxu0 %v1701
        %v1740 = vpop.f32.mrf.mxu0
        %v1741 = vadd.f32 0.0, %v1740
        %v1742 = vpop.f32.mrf.mxu0
        %v1743 = vpop.f32.mrf.mxu0
        %v1744 = vpop.f32.mrf.mxu0
        %1745 = vdwg.mxu0
        %1747 = vrot.lane.b32.xlu0 %v1694, 64
        %v1748 = vpop.permute.xlu0 %1747
        %v1750 = vsel %vm705, %v1694, 0
        %v1753 = vsel %vm705, %v1748, 0
        %1755 = vmatprep.subr.bf16.mxu0 0
        %1756 = vmatpush1.bf16.xpose.msra.mxu0 0
        %1757 = vmatprep.subr.bf16.mxu0 0
        %1758 = vmatpush1.bf16.xpose.msra.mxu0 0
        %1759 = vmatprep.subr.bf16.mxu0 0
        %1760 = vmatpush1.bf16.xpose.msra.mxu0 0
        %1761 = vmatprep.subr.bf16.mxu0 0
        %1762 = vmatpush1.bf16.xpose.msra.mxu0 0
        %1763 = vmatprep.subr.bf16.mxu0 0
        %1764 = vmatpush1.bf16.xpose.msra.mxu0 0
        %1765 = vmatprep.subr.bf16.mxu0 0
        %1766 = vmatpush1.bf16.xpose.msra.mxu0 0
        %1767 = vmatprep.subr.bf16.mxu0 0
        %1768 = vmatpush1.bf16.xpose.msra.mxu0 0
        %1769 = vmatprep.subr.bf16.mxu0 0
        %1770 = vmatpush1.bf16.xpose.msra.mxu0 %v1753
        %1771 = vmatprep.subr.bf16.mxu0 0
        %1772 = vmatpush2.bf16.xpose.msra.mxu0 0
        %1773 = vmatprep.subr.bf16.mxu0 0
        %1774 = vmatpush2.bf16.xpose.msra.mxu0 0
        %1775 = vmatprep.subr.bf16.mxu0 0
        %1776 = vmatpush2.bf16.xpose.msra.mxu0 0
        %1777 = vmatprep.subr.bf16.mxu0 0
        %1778 = vmatpush2.bf16.xpose.msra.mxu0 0
        %1779 = vmatprep.subr.bf16.mxu0 0
        %1780 = vmatpush2.bf16.xpose.msra.mxu0 0
        %1781 = vmatprep.subr.bf16.mxu0 0
        %1782 = vmatpush2.bf16.xpose.msra.mxu0 0
        %1783 = vmatprep.subr.bf16.mxu0 0
        %1784 = vmatpush2.bf16.xpose.msra.mxu0 0
        %1785 = vmatprep.subr.bf16.mxu0 0
        %1786 = vmatpush2.bf16.xpose.msra.mxu0 0
        %1787 = vmatprep.mubr.bf16.mxu0 0
        %1788 = vmatmul.mubr.bf16.gmra.mxu0 %v1750
        %v1789 = vpop.f32.mrf.mxu0
        %v1790 = vadd.f32 0.0, %v1789
        %v1791 = vpop.f32.mrf.mxu0
        %v1792 = vpop.f32.mrf.mxu0
        %v1793 = vpop.f32.mrf.mxu0
        %1794 = vdwg.mxu0
        %v1795 = vmul.f32 %v1741, 0.17677669
        %v1796 = vmul.f32 %v1790, 0.17677669
        %v1797 = vadd.f32 %v1795, %v808
        %v1798 = vadd.f32 %v1796, %v812
        %v1799 = vsel %vm817, %v1797, -inf
        %1800 = vmax.xlane.f32.xlu0 %v1799
        %v1801 = vpop.xlane.xlu0 %1800
        %v1802 = vsel %vm817, %v1798, -inf
        %1803 = vmax.xlane.f32.xlu0 %v1802
        %v1804 = vpop.xlane.xlu0 %1803
        %v1805 = vsub.f32 %v1797, %v1801
        %v1806 = vsub.f32 %v1798, %v1804
        %v1807 = vmul.f32 %v1805, 1.442695
        %v1808 = vpow.pop %v1807
        %v1809 = vmul.f32 %v1806, 1.442695
        %v1810 = vpow.pop %v1809
        %v1811 = vsel %vm817, %v1808, 0.0
        %1812 = vadd.xlane.f32.xlu0 %v1811
        %v1813 = vpop.xlane.xlu0 %1812
        %v1814 = vsel %vm817, %v1810, 0.0
        %1815 = vadd.xlane.f32.xlu0 %v1814
        %v1816 = vpop.xlane.xlu0 %1815
        %v1817 = vrcp.pop %v1813
        %v1818 = vrcp.pop %v1816
        %v1819 = vmul.f32 %v1808, %v1817
        %v1820 = vmul.f32 %v1810, %v1818
        %v1821 = vpack.c.bf16 %v1819, %v1819
        %v1822 = vpack.c.bf16 %v1820, %v1820
        %v1824 = vsel %vm817, %v1821, 0
        %v1827 = vsel %vm845, %v1695, 0
        %1829 = vmatprep.subr.bf16.mxu0 0
        %1830 = vmatpush1.bf16.msra.mxu0 0
        %1831 = vmatprep.subr.bf16.mxu0 0
        %1832 = vmatpush1.bf16.msra.mxu0 0
        %1833 = vmatprep.subr.bf16.mxu0 0
        %1834 = vmatpush1.bf16.msra.mxu0 0
        %1835 = vmatprep.subr.bf16.mxu0 0
        %1836 = vmatpush1.bf16.msra.mxu0 0
        %1837 = vmatprep.subr.bf16.mxu0 0
        %1838 = vmatpush1.bf16.msra.mxu0 0
        %1839 = vmatprep.subr.bf16.mxu0 0
        %1840 = vmatpush1.bf16.msra.mxu0 0
        %1841 = vmatprep.subr.bf16.mxu0 0
        %1842 = vmatpush1.bf16.msra.mxu0 0
        %1843 = vmatprep.subr.bf16.mxu0 0
        %1844 = vmatpush1.bf16.msra.mxu0 %v1827
        %1845 = vmatprep.subr.bf16.mxu0 0
        %1846 = vmatpush2.bf16.msra.mxu0 0
        %1847 = vmatprep.subr.bf16.mxu0 0
        %1848 = vmatpush2.bf16.msra.mxu0 0
        %1849 = vmatprep.subr.bf16.mxu0 0
        %1850 = vmatpush2.bf16.msra.mxu0 0
        %1851 = vmatprep.subr.bf16.mxu0 0
        %1852 = vmatpush2.bf16.msra.mxu0 0
        %1853 = vmatprep.subr.bf16.mxu0 0
        %1854 = vmatpush2.bf16.msra.mxu0 0
        %1855 = vmatprep.subr.bf16.mxu0 0
        %1856 = vmatpush2.bf16.msra.mxu0 0
        %1857 = vmatprep.subr.bf16.mxu0 0
        %1858 = vmatpush2.bf16.msra.mxu0 0
        %1859 = vmatprep.subr.bf16.mxu0 0
        %1860 = vmatpush2.bf16.msra.mxu0 0
        %1861 = vmatprep.mubr.bf16.mxu0 0
        %1862 = vmatmul.mubr.bf16.gmra.mxu0 %v1824
        %v1863 = vpop.f32.mrf.mxu0
        %v1864 = vadd.f32 0.0, %v1863
        %v1865 = vpop.f32.mrf.mxu0
        %v1866 = vpop.f32.mrf.mxu0
        %v1867 = vpop.f32.mrf.mxu0
        %1868 = vdwg.mxu0
        %v1870 = vsel %vm817, %v1822, 0
        %v1873 = vsel %vm845, %v1696, 0
        %1875 = vmatprep.subr.bf16.mxu0 0
        %1876 = vmatpush1.bf16.msra.mxu0 0
        %1877 = vmatprep.subr.bf16.mxu0 0
        %1878 = vmatpush1.bf16.msra.mxu0 0
        %1879 = vmatprep.subr.bf16.mxu0 0
        %1880 = vmatpush1.bf16.msra.mxu0 0
        %1881 = vmatprep.subr.bf16.mxu0 0
        %1882 = vmatpush1.bf16.msra.mxu0 0
        %1883 = vmatprep.subr.bf16.mxu0 0
        %1884 = vmatpush1.bf16.msra.mxu0 0
        %1885 = vmatprep.subr.bf16.mxu0 0
        %1886 = vmatpush1.bf16.msra.mxu0 0
        %1887 = vmatprep.subr.bf16.mxu0 0
        %1888 = vmatpush1.bf16.msra.mxu0 0
        %1889 = vmatprep.subr.bf16.mxu0 0
        %1890 = vmatpush1.bf16.msra.mxu0 %v1873
        %1891 = vmatprep.subr.bf16.mxu0 0
        %1892 = vmatpush2.bf16.msra.mxu0 0
        %1893 = vmatprep.subr.bf16.mxu0 0
        %1894 = vmatpush2.bf16.msra.mxu0 0
        %1895 = vmatprep.subr.bf16.mxu0 0
        %1896 = vmatpush2.bf16.msra.mxu0 0
        %1897 = vmatprep.subr.bf16.mxu0 0
        %1898 = vmatpush2.bf16.msra.mxu0 0
        %1899 = vmatprep.subr.bf16.mxu0 0
        %1900 = vmatpush2.bf16.msra.mxu0 0
        %1901 = vmatprep.subr.bf16.mxu0 0
        %1902 = vmatpush2.bf16.msra.mxu0 0
        %1903 = vmatprep.subr.bf16.mxu0 0
        %1904 = vmatpush2.bf16.msra.mxu0 0
        %1905 = vmatprep.subr.bf16.mxu0 0
        %1906 = vmatpush2.bf16.msra.mxu0 0
        %1907 = vmatprep.mubr.bf16.mxu0 0
        %1908 = vmatmul.mubr.bf16.gmra.mxu0 %v1870
        %v1909 = vpop.f32.mrf.mxu0
        %v1910 = vadd.f32 0.0, %v1909
        %v1911 = vpop.f32.mrf.mxu0
        %v1912 = vpop.f32.mrf.mxu0
        %v1913 = vpop.f32.mrf.mxu0
        %1914 = vdwg.mxu0
        %v1915 = vpack.c.bf16 %v1910, %v1864
        %1916 = vrot.lane.b32.xlu0 %v1693, 96
        %v1917 = vpop.permute.xlu0 %1916
        %1918 = vrot.lane.b32.xlu0 %v1693, 32
        %v1919 = vpop.permute.xlu0 %1918
        %v1921 = vsel %vm705, %v1917, 0
        %v1924 = vsel %vm705, %v1919, 0
        %1926 = vmatprep.subr.bf16.mxu0 0
        %1927 = vmatpush1.bf16.xpose.msra.mxu0 0
        %1928 = vmatprep.subr.bf16.mxu0 0
        %1929 = vmatpush1.bf16.xpose.msra.mxu0 0
        %1930 = vmatprep.subr.bf16.mxu0 0
        %1931 = vmatpush1.bf16.xpose.msra.mxu0 0
        %1932 = vmatprep.subr.bf16.mxu0 0
        %1933 = vmatpush1.bf16.xpose.msra.mxu0 0
        %1934 = vmatprep.subr.bf16.mxu0 0
        %1935 = vmatpush1.bf16.xpose.msra.mxu0 0
        %1936 = vmatprep.subr.bf16.mxu0 0
        %1937 = vmatpush1.bf16.xpose.msra.mxu0 0
        %1938 = vmatprep.subr.bf16.mxu0 0
        %1939 = vmatpush1.bf16.xpose.msra.mxu0 0
        %1940 = vmatprep.subr.bf16.mxu0 0
        %1941 = vmatpush1.bf16.xpose.msra.mxu0 %v1924
        %1942 = vmatprep.subr.bf16.mxu0 0
        %1943 = vmatpush2.bf16.xpose.msra.mxu0 0
        %1944 = vmatprep.subr.bf16.mxu0 0
        %1945 = vmatpush2.bf16.xpose.msra.mxu0 0
        %1946 = vmatprep.subr.bf16.mxu0 0
        %1947 = vmatpush2.bf16.xpose.msra.mxu0 0
        %1948 = vmatprep.subr.bf16.mxu0 0
        %1949 = vmatpush2.bf16.xpose.msra.mxu0 0
        %1950 = vmatprep.subr.bf16.mxu0 0
        %1951 = vmatpush2.bf16.xpose.msra.mxu0 0
        %1952 = vmatprep.subr.bf16.mxu0 0
        %1953 = vmatpush2.bf16.xpose.msra.mxu0 0
        %1954 = vmatprep.subr.bf16.mxu0 0
        %1955 = vmatpush2.bf16.xpose.msra.mxu0 0
        %1956 = vmatprep.subr.bf16.mxu0 0
        %1957 = vmatpush2.bf16.xpose.msra.mxu0 0
        %1958 = vmatprep.mubr.bf16.mxu0 0
        %1959 = vmatmul.mubr.bf16.gmra.mxu0 %v1921
        %v1960 = vpop.f32.mrf.mxu0
        %v1961 = vadd.f32 0.0, %v1960
        %v1962 = vpop.f32.mrf.mxu0
        %v1963 = vpop.f32.mrf.mxu0
        %v1964 = vpop.f32.mrf.mxu0
        %1965 = vdwg.mxu0
        %1966 = vrot.lane.b32.xlu0 %v1694, 96
        %v1967 = vpop.permute.xlu0 %1966
        %1968 = vrot.lane.b32.xlu0 %v1694, 32
        %v1969 = vpop.permute.xlu0 %1968
        %v1971 = vsel %vm705, %v1967, 0
        %v1974 = vsel %vm705, %v1969, 0
        %1976 = vmatprep.subr.bf16.mxu0 0
        %1977 = vmatpush1.bf16.xpose.msra.mxu0 0
        %1978 = vmatprep.subr.bf16.mxu0 0
        %1979 = vmatpush1.bf16.xpose.msra.mxu0 0
        %1980 = vmatprep.subr.bf16.mxu0 0
        %1981 = vmatpush1.bf16.xpose.msra.mxu0 0
        %1982 = vmatprep.subr.bf16.mxu0 0
        %1983 = vmatpush1.bf16.xpose.msra.mxu0 0
        %1984 = vmatprep.subr.bf16.mxu0 0
        %1985 = vmatpush1.bf16.xpose.msra.mxu0 0
        %1986 = vmatprep.subr.bf16.mxu0 0
        %1987 = vmatpush1.bf16.xpose.msra.mxu0 0
        %1988 = vmatprep.subr.bf16.mxu0 0
        %1989 = vmatpush1.bf16.xpose.msra.mxu0 0
        %1990 = vmatprep.subr.bf16.mxu0 0
        %1991 = vmatpush1.bf16.xpose.msra.mxu0 %v1974
        %1992 = vmatprep.subr.bf16.mxu0 0
        %1993 = vmatpush2.bf16.xpose.msra.mxu0 0
        %1994 = vmatprep.subr.bf16.mxu0 0
        %1995 = vmatpush2.bf16.xpose.msra.mxu0 0
        %1996 = vmatprep.subr.bf16.mxu0 0
        %1997 = vmatpush2.bf16.xpose.msra.mxu0 0
        %1998 = vmatprep.subr.bf16.mxu0 0
        %1999 = vmatpush2.bf16.xpose.msra.mxu0 0
        %2000 = vmatprep.subr.bf16.mxu0 0
        %2001 = vmatpush2.bf16.xpose.msra.mxu0 0
        %2002 = vmatprep.subr.bf16.mxu0 0
        %2003 = vmatpush2.bf16.xpose.msra.mxu0 0
        %2004 = vmatprep.subr.bf16.mxu0 0
        %2005 = vmatpush2.bf16.xpose.msra.mxu0 0
        %2006 = vmatprep.subr.bf16.mxu0 0
        %2007 = vmatpush2.bf16.xpose.msra.mxu0 0
        %2008 = vmatprep.mubr.bf16.mxu0 0
        %2009 = vmatmul.mubr.bf16.gmra.mxu0 %v1971
        %v2010 = vpop.f32.mrf.mxu0
        %v2011 = vadd.f32 0.0, %v2010
        %v2012 = vpop.f32.mrf.mxu0
        %v2013 = vpop.f32.mrf.mxu0
        %v2014 = vpop.f32.mrf.mxu0
        %2015 = vdwg.mxu0
        %v2016 = vmul.f32 %v1961, 0.17677669
        %v2017 = vmul.f32 %v2011, 0.17677669
        %v2018 = vadd.f32 %v2016, %v808
        %v2019 = vadd.f32 %v2017, %v812
        %v2020 = vsel %vm817, %v2018, -inf
        %2021 = vmax.xlane.f32.xlu0 %v2020
        %v2022 = vpop.xlane.xlu0 %2021
        %v2023 = vsel %vm817, %v2019, -inf
        %2024 = vmax.xlane.f32.xlu0 %v2023
        %v2025 = vpop.xlane.xlu0 %2024
        %v2026 = vsub.f32 %v2018, %v2022
        %v2027 = vsub.f32 %v2019, %v2025
        %v2028 = vmul.f32 %v2026, 1.442695
        %v2029 = vpow.pop %v2028
        %v2030 = vmul.f32 %v2027, 1.442695
        %v2031 = vpow.pop %v2030
        %v2032 = vsel %vm817, %v2029, 0.0
        %2033 = vadd.xlane.f32.xlu0 %v2032
        %v2034 = vpop.xlane.xlu0 %2033
        %v2035 = vsel %vm817, %v2031, 0.0
        %2036 = vadd.xlane.f32.xlu0 %v2035
        %v2037 = vpop.xlane.xlu0 %2036
        %v2038 = vrcp.pop %v2034
        %v2039 = vrcp.pop %v2037
        %v2040 = vmul.f32 %v2029, %v2038
        %v2041 = vmul.f32 %v2031, %v2039
        %v2042 = vpack.c.bf16 %v2040, %v2040
        %v2043 = vpack.c.bf16 %v2041, %v2041
        %2045 = vrot.lane.b32.xlu0 %v1695, 96
        %v2046 = vpop.permute.xlu0 %2045
        %v2048 = vsel %vm817, %v2042, 0
        %v2051 = vsel %vm845, %v2046, 0
        %2053 = vmatprep.subr.bf16.mxu0 0
        %2054 = vmatpush1.bf16.msra.mxu0 0
        %2055 = vmatprep.subr.bf16.mxu0 0
        %2056 = vmatpush1.bf16.msra.mxu0 0
        %2057 = vmatprep.subr.bf16.mxu0 0
        %2058 = vmatpush1.bf16.msra.mxu0 0
        %2059 = vmatprep.subr.bf16.mxu0 0
        %2060 = vmatpush1.bf16.msra.mxu0 0
        %2061 = vmatprep.subr.bf16.mxu0 0
        %2062 = vmatpush1.bf16.msra.mxu0 0
        %2063 = vmatprep.subr.bf16.mxu0 0
        %2064 = vmatpush1.bf16.msra.mxu0 0
        %2065 = vmatprep.subr.bf16.mxu0 0
        %2066 = vmatpush1.bf16.msra.mxu0 0
        %2067 = vmatprep.subr.bf16.mxu0 0
        %2068 = vmatpush1.bf16.msra.mxu0 %v2051
        %2069 = vmatprep.subr.bf16.mxu0 0
        %2070 = vmatpush2.bf16.msra.mxu0 0
        %2071 = vmatprep.subr.bf16.mxu0 0
        %2072 = vmatpush2.bf16.msra.mxu0 0
        %2073 = vmatprep.subr.bf16.mxu0 0
        %2074 = vmatpush2.bf16.msra.mxu0 0
        %2075 = vmatprep.subr.bf16.mxu0 0
        %2076 = vmatpush2.bf16.msra.mxu0 0
        %2077 = vmatprep.subr.bf16.mxu0 0
        %2078 = vmatpush2.bf16.msra.mxu0 0
        %2079 = vmatprep.subr.bf16.mxu0 0
        %2080 = vmatpush2.bf16.msra.mxu0 0
        %2081 = vmatprep.subr.bf16.mxu0 0
        %2082 = vmatpush2.bf16.msra.mxu0 0
        %2083 = vmatprep.subr.bf16.mxu0 0
        %2084 = vmatpush2.bf16.msra.mxu0 0
        %2085 = vmatprep.mubr.bf16.mxu0 0
        %2086 = vmatmul.mubr.bf16.gmra.mxu0 %v2048
        %v2087 = vpop.f32.mrf.mxu0
        %v2088 = vadd.f32 0.0, %v2087
        %v2089 = vpop.f32.mrf.mxu0
        %v2090 = vpop.f32.mrf.mxu0
        %v2091 = vpop.f32.mrf.mxu0
        %2092 = vdwg.mxu0
        %2094 = vrot.lane.b32.xlu0 %v1696, 96
        %v2095 = vpop.permute.xlu0 %2094
        %v2097 = vsel %vm817, %v2043, 0
        %v2100 = vsel %vm845, %v2095, 0
        %2102 = vmatprep.subr.bf16.mxu0 0
        %2103 = vmatpush1.bf16.msra.mxu0 0
        %2104 = vmatprep.subr.bf16.mxu0 0
        %2105 = vmatpush1.bf16.msra.mxu0 0
        %2106 = vmatprep.subr.bf16.mxu0 0
        %2107 = vmatpush1.bf16.msra.mxu0 0
        %2108 = vmatprep.subr.bf16.mxu0 0
        %2109 = vmatpush1.bf16.msra.mxu0 0
        %2110 = vmatprep.subr.bf16.mxu0 0
        %2111 = vmatpush1.bf16.msra.mxu0 0
        %2112 = vmatprep.subr.bf16.mxu0 0
        %2113 = vmatpush1.bf16.msra.mxu0 0
        %2114 = vmatprep.subr.bf16.mxu0 0
        %2115 = vmatpush1.bf16.msra.mxu0 0
        %2116 = vmatprep.subr.bf16.mxu0 0
        %2117 = vmatpush1.bf16.msra.mxu0 %v2100
        %2118 = vmatprep.subr.bf16.mxu0 0
        %2119 = vmatpush2.bf16.msra.mxu0 0
        %2120 = vmatprep.subr.bf16.mxu0 0
        %2121 = vmatpush2.bf16.msra.mxu0 0
        %2122 = vmatprep.subr.bf16.mxu0 0
        %2123 = vmatpush2.bf16.msra.mxu0 0
        %2124 = vmatprep.subr.bf16.mxu0 0
        %2125 = vmatpush2.bf16.msra.mxu0 0
        %2126 = vmatprep.subr.bf16.mxu0 0
        %2127 = vmatpush2.bf16.msra.mxu0 0
        %2128 = vmatprep.subr.bf16.mxu0 0
        %2129 = vmatpush2.bf16.msra.mxu0 0
        %2130 = vmatprep.subr.bf16.mxu0 0
        %2131 = vmatpush2.bf16.msra.mxu0 0
        %2132 = vmatprep.subr.bf16.mxu0 0
        %2133 = vmatpush2.bf16.msra.mxu0 0
        %2134 = vmatprep.mubr.bf16.mxu0 0
        %2135 = vmatmul.mubr.bf16.gmra.mxu0 %v2097
        %v2136 = vpop.f32.mrf.mxu0
        %v2137 = vadd.f32 0.0, %v2136
        %v2138 = vpop.f32.mrf.mxu0
        %v2139 = vpop.f32.mrf.mxu0
        %v2140 = vpop.f32.mrf.mxu0
        %2141 = vdwg.mxu0
        %v2142 = vpack.c.bf16 %v2137, %v2088
        %v2147 = vunpack.c.l.b16 %v1580
        %v2148 = vunpack.c.l.b16 %v1581
        %v2149 = vunpack.c.l.b16 %v1582
        %v2150 = vunpack.c.l.b16 %v1583
        %v2151 = vpack.c.b16 %v2148, %v2147
        %v2152 = vpack.c.b16 %v2150, %v2149
        %v2156 = vsel %vm705, %v2142, 0
        %2158 = vmatprep.subr.bf16.mxu0 0
        %2159 = vmatpush1.bf16.msra.mxu0 0
        %2160 = vmatprep.subr.bf16.mxu0 0
        %2161 = vmatpush1.bf16.msra.mxu0 0
        %2162 = vmatprep.subr.bf16.mxu0 0
        %2163 = vmatpush1.bf16.msra.mxu0 0
        %2164 = vmatprep.subr.bf16.mxu0 0
        %2165 = vmatpush1.bf16.msra.mxu0 0
        %2166 = vmatprep.subr.bf16.mxu0 0
        %2167 = vmatpush1.bf16.msra.mxu0 0
        %2168 = vmatprep.subr.bf16.mxu0 0
        %2169 = vmatpush1.bf16.msra.mxu0 0
        %2170 = vmatprep.subr.bf16.mxu0 0
        %2171 = vmatpush1.bf16.msra.mxu0 %v2152
        %2172 = vmatprep.subr.bf16.mxu0 0
        %2173 = vmatpush1.bf16.msra.mxu0 %v2151
        %2174 = vmatprep.subr.bf16.mxu0 0
        %2175 = vmatpush2.bf16.msra.mxu0 0
        %2176 = vmatprep.subr.bf16.mxu0 0
        %2177 = vmatpush2.bf16.msra.mxu0 0
        %2178 = vmatprep.subr.bf16.mxu0 0
        %2179 = vmatpush2.bf16.msra.mxu0 0
        %2180 = vmatprep.subr.bf16.mxu0 0
        %2181 = vmatpush2.bf16.msra.mxu0 0
        %2182 = vmatprep.subr.bf16.mxu0 0
        %2183 = vmatpush2.bf16.msra.mxu0 0
        %2184 = vmatprep.subr.bf16.mxu0 0
        %2185 = vmatpush2.bf16.msra.mxu0 0
        %2186 = vmatprep.subr.bf16.mxu0 0
        %2187 = vmatpush2.bf16.msra.mxu0 0
        %2188 = vmatprep.subr.bf16.mxu0 0
        %2189 = vmatpush2.bf16.msra.mxu0 0
        %2190 = vmatprep.mubr.bf16.mxu0 0
        %2191 = vmatmul.mubr.bf16.gmra.mxu0 %v2156
        %v2192 = vpop.f32.mrf.mxu0
        %v2193 = vadd.f32 0.0, %v2192
        %v2194 = vpop.f32.mrf.mxu0
        %v2195 = vpop.f32.mrf.mxu0
        %v2196 = vadd.f32 0.0, %v2195
        %v2197 = vpop.f32.mrf.mxu0
        %2198 = vdwg.mxu0
        %v2203 = vunpack.c.l.b16 %v1576
        %v2204 = vunpack.c.l.b16 %v1577
        %v2205 = vunpack.c.l.b16 %v1578
        %v2206 = vunpack.c.l.b16 %v1579
        %v2207 = vpack.c.b16 %v2204, %v2203
        %v2208 = vpack.c.b16 %v2206, %v2205
        %v2212 = vsel %vm705, %v1915, 0
        %2214 = vmatprep.subr.bf16.mxu0 0
        %2215 = vmatpush1.bf16.msra.mxu0 0
        %2216 = vmatprep.subr.bf16.mxu0 0
        %2217 = vmatpush1.bf16.msra.mxu0 0
        %2218 = vmatprep.subr.bf16.mxu0 0
        %2219 = vmatpush1.bf16.msra.mxu0 0
        %2220 = vmatprep.subr.bf16.mxu0 0
        %2221 = vmatpush1.bf16.msra.mxu0 0
        %2222 = vmatprep.subr.bf16.mxu0 0
        %2223 = vmatpush1.bf16.msra.mxu0 0
        %2224 = vmatprep.subr.bf16.mxu0 0
        %2225 = vmatpush1.bf16.msra.mxu0 0
        %2226 = vmatprep.subr.bf16.mxu0 0
        %2227 = vmatpush1.bf16.msra.mxu0 %v2208
        %2228 = vmatprep.subr.bf16.mxu0 0
        %2229 = vmatpush1.bf16.msra.mxu0 %v2207
        %2230 = vmatprep.subr.bf16.mxu0 0
        %2231 = vmatpush2.bf16.msra.mxu0 0
        %2232 = vmatprep.subr.bf16.mxu0 0
        %2233 = vmatpush2.bf16.msra.mxu0 0
        %2234 = vmatprep.subr.bf16.mxu0 0
        %2235 = vmatpush2.bf16.msra.mxu0 0
        %2236 = vmatprep.subr.bf16.mxu0 0
        %2237 = vmatpush2.bf16.msra.mxu0 0
        %2238 = vmatprep.subr.bf16.mxu0 0
        %2239 = vmatpush2.bf16.msra.mxu0 0
        %2240 = vmatprep.subr.bf16.mxu0 0
        %2241 = vmatpush2.bf16.msra.mxu0 0
        %2242 = vmatprep.subr.bf16.mxu0 0
        %2243 = vmatpush2.bf16.msra.mxu0 0
        %2244 = vmatprep.subr.bf16.mxu0 0
        %2245 = vmatpush2.bf16.msra.mxu0 0
        %2246 = vmatprep.mubr.bf16.mxu0 0
        %2247 = vmatmul.mubr.bf16.gmra.mxu0 %v2212
        %v2248 = vpop.f32.mrf.mxu0
        %v2249 = vadd.f32 %v2193, %v2248
        %v2250 = vpop.f32.mrf.mxu0
        %v2251 = vpop.f32.mrf.mxu0
        %v2252 = vadd.f32 %v2196, %v2251
        %v2253 = vpop.f32.mrf.mxu0
        %2254 = vdwg.mxu0
        %v2255 = vadd.f32 %v1571, %v2249
        %v2256 = vadd.f32 %v1572, %v2252
        %v2257 = vlaneseq
        %v2258 = vshrl.u32 %v2257, 7
        %v2259 = vsub.s32 0, %v2258
        %v2260 = vrot.slane %v1574, %v2259
        %v2261 = vadd.f32 %v2255, %v2260
        %v2262 = vadd.f32 %v2256, %v2260
        %v2263 = vsel %vm542, %v2261, 0.0
        %2264 = vadd.xlane.f32.xlu0 %v2263
        %v2265 = vpop.xlane.xlu0 %2264
        %v2266 = vsel %vm542, %v2262, 0.0
        %2267 = vadd.xlane.f32.xlu0 %v2266
        %v2268 = vpop.xlane.xlu0 %2267
        %v2269 = vmul.f32 %v2265, %v549
        %v2270 = vmul.f32 %v2268, %v549
        %v2271 = vsub.f32 %v2261, %v2269
        %v2272 = vsub.f32 %v2262, %v2270
        %v2273 = vmul.f32 %v2271, %v2271
        %v2274 = vmul.f32 %v2272, %v2272
        %v2275 = vsel %vm542, %v2273, 0.0
        %2276 = vadd.xlane.f32.xlu0 %v2275
        %v2277 = vpop.xlane.xlu0 %2276
        %v2278 = vsel %vm542, %v2274, 0.0
        %2279 = vadd.xlane.f32.xlu0 %v2278
        %v2280 = vpop.xlane.xlu0 %2279
        %v2281 = vmul.f32 %v2277, %v549
        %v2282 = vmul.f32 %v2280, %v549
        %v2283 = vadd.f32 %v2281, 1e-12
        %v2284 = vadd.f32 %v2282, 1e-12
        %v2285 = vrsqrt.pop %v2283
        %v2286 = vrsqrt.pop %v2284
        %v2287 = vmul.f32 %v2271, %v2285
        %v2288 = vmul.f32 %v2272, %v2286
        %v2289 = vlaneseq
        %v2290 = vshrl.u32 %v2289, 7
        %v2291 = vsub.s32 1, %v2290
        %v2292 = vrot.slane %v1574, %v2291
        %v2293 = vmul.f32 %v2287, %v2292
        %v2294 = vmul.f32 %v2288, %v2292
        %v2295 = vlaneseq
        %v2296 = vshrl.u32 %v2295, 7
        %v2297 = vsub.s32 2, %v2296
        %v2298 = vrot.slane %v1574, %v2297
        %v2299 = vadd.f32 %v2293, %v2298
        %v2300 = vadd.f32 %v2294, %v2298
        %v2301 = vpack.c.bf16 %v2300, %v2299
        %s2302 = scalar_lea.vmem %s8, 32
        %v2303 = vld [vmem:[%s2302] sm:$0xf]
        %v2304 = vld [vmem:[%s2302 + $0x4] sm:$0xf]
        %v2305 = vld [vmem:[%s2302 + $0x8] sm:$0xf]
        %v2306 = vld [vmem:[%s2302 + $0xc] sm:$0xf]
        %v2307 = vld [vmem:[%s2302 + $0x10] sm:$0xf]
        %v2308 = vld [vmem:[%s2302 + $0x14] sm:$0xf]
        %v2309 = vld [vmem:[%s2302 + $0x18] sm:$0xf]
        %v2310 = vld [vmem:[%s2302 + $0x1c] sm:$0xf]
        %s2311 = scalar_lea.vmem %s9, 1
        %v2312 = vld [vmem:[%s2311] sm:$0x1]
        %v2314 = vlaneseq
        %v2315 = vshrl.u32 %v2314, 7
        %v2316 = vsub.s32 0, %v2315
        %v2317 = vrot.slane %v2312, %v2316
        %v2327 = vunpack.c.l.b16 %v2303
        %v2328 = vunpack.c.l.b16 %v2304
        %v2329 = vunpack.c.l.b16 %v2305
        %v2330 = vunpack.c.l.b16 %v2306
        %v2331 = vunpack.c.l.b16 %v2307
        %v2332 = vunpack.c.l.b16 %v2308
        %v2333 = vunpack.c.l.b16 %v2309
        %v2334 = vunpack.c.l.b16 %v2310
        %v2335 = vpack.c.b16 %v2328, %v2327
        %v2336 = vpack.c.b16 %v2330, %v2329
        %v2337 = vpack.c.b16 %v2332, %v2331
        %v2338 = vpack.c.b16 %v2334, %v2333
        %v2344 = vsel %vm542, %v2301, 0
        %2346 = vmatprep.subr.bf16.mxu0 0
        %2347 = vmatpush1.bf16.msra.mxu0 0
        %2348 = vmatprep.subr.bf16.mxu0 0
        %2349 = vmatpush1.bf16.msra.mxu0 0
        %2350 = vmatprep.subr.bf16.mxu0 0
        %2351 = vmatpush1.bf16.msra.mxu0 0
        %2352 = vmatprep.subr.bf16.mxu0 0
        %2353 = vmatpush1.bf16.msra.mxu0 0
        %2354 = vmatprep.subr.bf16.mxu0 0
        %2355 = vmatpush1.bf16.msra.mxu0 %v2338
        %2356 = vmatprep.subr.bf16.mxu0 0
        %2357 = vmatpush1.bf16.msra.mxu0 %v2337
        %2358 = vmatprep.subr.bf16.mxu0 0
        %2359 = vmatpush1.bf16.msra.mxu0 %v2336
        %2360 = vmatprep.subr.bf16.mxu0 0
        %2361 = vmatpush1.bf16.msra.mxu0 %v2335
        %2362 = vmatprep.subr.bf16.mxu0 0
        %2363 = vmatpush2.bf16.msra.mxu0 0
        %2364 = vmatprep.subr.bf16.mxu0 0
        %2365 = vmatpush2.bf16.msra.mxu0 0
        %2366 = vmatprep.subr.bf16.mxu0 0
        %2367 = vmatpush2.bf16.msra.mxu0 0
        %2368 = vmatprep.subr.bf16.mxu0 0
        %2369 = vmatpush2.bf16.msra.mxu0 0
        %2370 = vmatprep.subr.bf16.mxu0 0
        %2371 = vmatpush2.bf16.msra.mxu0 0
        %2372 = vmatprep.subr.bf16.mxu0 0
        %2373 = vmatpush2.bf16.msra.mxu0 0
        %2374 = vmatprep.subr.bf16.mxu0 0
        %2375 = vmatpush2.bf16.msra.mxu0 0
        %2376 = vmatprep.subr.bf16.mxu0 0
        %2377 = vmatpush2.bf16.msra.mxu0 0
        %2378 = vmatprep.mubr.bf16.mxu0 0
        %2379 = vmatmul.mubr.bf16.gmra.mxu0 %v2344
        %v2380 = vpop.f32.mrf.mxu0
        %v2381 = vadd.f32 %v2317, %v2380
        %v2382 = vpop.f32.mrf.mxu0
        %v2383 = vpop.f32.mrf.mxu0
        %v2384 = vadd.f32 %v2317, %v2383
        %v2385 = vpop.f32.mrf.mxu0
        %2386 = vdwg.mxu0
        %v2387 = vmul.f32 %v2381, %v2381
        %v2388 = vmul.f32 %v2384, %v2384
        %v2389 = vmul.f32 %v2381, %v2387
        %v2390 = vmul.f32 %v2384, %v2388
        %v2391 = vmul.f32 %v2389, 0.044715
        %v2392 = vmul.f32 %v2390, 0.044715
        %v2393 = vadd.f32 %v2381, %v2391
        %v2394 = vadd.f32 %v2384, %v2392
        %v2395 = vmul.f32 %v2393, 0.7978846
        %v2396 = vmul.f32 %v2394, 0.7978846
        %v2397 = vtanh.pop %v2395
        %v2398 = vtanh.pop %v2396
        %v2399 = vadd.f32 %v2397, 1.0
        %v2400 = vadd.f32 %v2398, 1.0
        %v2401 = vmul.f32 %v2399, 0.5
        %v2402 = vmul.f32 %v2400, 0.5
        %v2403 = vmul.f32 %v2381, %v2401
        %v2404 = vmul.f32 %v2384, %v2402
        %v2405 = vpack.c.bf16 %v2404, %v2403
        %s2406 = scalar_lea.vmem %s10, 64
        %v2407 = vld [vmem:[%s2406] sm:$0xf]
        %v2408 = vld [vmem:[%s2406 + $0x4] sm:$0xf]
        %v2409 = vld [vmem:[%s2406 + $0x8] sm:$0xf]
        %v2410 = vld [vmem:[%s2406 + $0xc] sm:$0xf]
        %v2411 = vld [vmem:[%s2406 + $0x10] sm:$0xf]
        %v2412 = vld [vmem:[%s2406 + $0x14] sm:$0xf]
        %v2413 = vld [vmem:[%s2406 + $0x18] sm:$0xf]
        %v2414 = vld [vmem:[%s2406 + $0x1c] sm:$0xf]
        %v2415 = vld [vmem:[%s2406 + $0x20] sm:$0xf]
        %v2416 = vld [vmem:[%s2406 + $0x24] sm:$0xf]
        %v2417 = vld [vmem:[%s2406 + $0x28] sm:$0xf]
        %v2418 = vld [vmem:[%s2406 + $0x2c] sm:$0xf]
        %v2419 = vld [vmem:[%s2406 + $0x30] sm:$0xf]
        %v2420 = vld [vmem:[%s2406 + $0x34] sm:$0xf]
        %v2421 = vld [vmem:[%s2406 + $0x38] sm:$0xf]
        %v2422 = vld [vmem:[%s2406 + $0x3c] sm:$0xf]
        %v2423 = vlaneseq
        %v2424 = vshrl.u32 %v2423, 7
        %v2425 = vsub.s32 3, %v2424
        %v2426 = vrot.slane %v1574, %v2425
        %v2443 = vunpack.c.l.b16 %v2407
        %v2444 = vunpack.c.l.b16 %v2408
        %v2445 = vunpack.c.l.b16 %v2409
        %v2446 = vunpack.c.l.b16 %v2410
        %v2447 = vunpack.c.l.b16 %v2411
        %v2448 = vunpack.c.l.b16 %v2412
        %v2449 = vunpack.c.l.b16 %v2413
        %v2450 = vunpack.c.l.b16 %v2414
        %v2451 = vunpack.c.l.b16 %v2415
        %v2452 = vunpack.c.l.b16 %v2416
        %v2453 = vunpack.c.l.b16 %v2417
        %v2454 = vunpack.c.l.b16 %v2418
        %v2455 = vunpack.c.l.b16 %v2419
        %v2456 = vunpack.c.l.b16 %v2420
        %v2457 = vunpack.c.l.b16 %v2421
        %v2458 = vunpack.c.l.b16 %v2422
        %v2459 = vpack.c.b16 %v2444, %v2443
        %v2460 = vpack.c.b16 %v2446, %v2445
        %v2461 = vpack.c.b16 %v2448, %v2447
        %v2462 = vpack.c.b16 %v2450, %v2449
        %v2463 = vpack.c.b16 %v2452, %v2451
        %v2464 = vpack.c.b16 %v2454, %v2453
        %v2465 = vpack.c.b16 %v2456, %v2455
        %v2466 = vpack.c.b16 %v2458, %v2457
        %2475 = vmatprep.subr.bf16.mxu0 0
        %2476 = vmatpush1.bf16.msra.mxu0 %v2466
        %2477 = vmatprep.subr.bf16.mxu0 0
        %2478 = vmatpush1.bf16.msra.mxu0 %v2465
        %2479 = vmatprep.subr.bf16.mxu0 0
        %2480 = vmatpush1.bf16.msra.mxu0 %v2464
        %2481 = vmatprep.subr.bf16.mxu0 0
        %2482 = vmatpush1.bf16.msra.mxu0 %v2463
        %2483 = vmatprep.subr.bf16.mxu0 0
        %2484 = vmatpush1.bf16.msra.mxu0 %v2462
        %2485 = vmatprep.subr.bf16.mxu0 0
        %2486 = vmatpush1.bf16.msra.mxu0 %v2461
        %2487 = vmatprep.subr.bf16.mxu0 0
        %2488 = vmatpush1.bf16.msra.mxu0 %v2460
        %2489 = vmatprep.subr.bf16.mxu0 0
        %2490 = vmatpush1.bf16.msra.mxu0 %v2459
        %2491 = vmatprep.subr.bf16.mxu0 0
        %2492 = vmatpush2.bf16.msra.mxu0 0
        %2493 = vmatprep.subr.bf16.mxu0 0
        %2494 = vmatpush2.bf16.msra.mxu0 0
        %2495 = vmatprep.subr.bf16.mxu0 0
        %2496 = vmatpush2.bf16.msra.mxu0 0
        %2497 = vmatprep.subr.bf16.mxu0 0
        %2498 = vmatpush2.bf16.msra.mxu0 0
        %2499 = vmatprep.subr.bf16.mxu0 0
        %2500 = vmatpush2.bf16.msra.mxu0 0
        %2501 = vmatprep.subr.bf16.mxu0 0
        %2502 = vmatpush2.bf16.msra.mxu0 0
        %2503 = vmatprep.subr.bf16.mxu0 0
        %2504 = vmatpush2.bf16.msra.mxu0 0
        %2505 = vmatprep.subr.bf16.mxu0 0
        %2506 = vmatpush2.bf16.msra.mxu0 0
        %2507 = vmatprep.mubr.bf16.mxu0 0
        %2508 = vmatmul.mubr.bf16.gmra.mxu0 %v2405
        %v2509 = vpop.f32.mrf.mxu0
        %v2510 = vadd.f32 %v2426, %v2509
        %v2511 = vpop.f32.mrf.mxu0
        %v2512 = vpop.f32.mrf.mxu0
        %v2513 = vadd.f32 %v2426, %v2512
        %v2514 = vpop.f32.mrf.mxu0
        %2515 = vdwg.mxu0
        %v2516 = vadd.f32 %v2299, %v2510
        %v2517 = vadd.f32 %v2300, %v2513
        %v2518 = vsel %vm542, %v2516, 0.0
        %2519 = vadd.xlane.f32.xlu0 %v2518
        %v2520 = vpop.xlane.xlu0 %2519
        %v2521 = vsel %vm542, %v2517, 0.0
        %2522 = vadd.xlane.f32.xlu0 %v2521
        %v2523 = vpop.xlane.xlu0 %2522
        %v2524 = vmul.f32 %v2520, %v549
        %v2525 = vmul.f32 %v2523, %v549
        %v2526 = vsub.f32 %v2516, %v2524
        %v2527 = vsub.f32 %v2517, %v2525
        %v2528 = vmul.f32 %v2526, %v2526
        %v2529 = vmul.f32 %v2527, %v2527
        %v2530 = vsel %vm542, %v2528, 0.0
        %2531 = vadd.xlane.f32.xlu0 %v2530
        %v2532 = vpop.xlane.xlu0 %2531
        %v2533 = vsel %vm542, %v2529, 0.0
        %2534 = vadd.xlane.f32.xlu0 %v2533
        %v2535 = vpop.xlane.xlu0 %2534
        %v2536 = vmul.f32 %v2532, %v549
        %v2537 = vmul.f32 %v2535, %v549
        %v2538 = vadd.f32 %v2536, 1e-12
        %v2539 = vadd.f32 %v2537, 1e-12
        %v2540 = vrsqrt.pop %v2538
        %v2541 = vrsqrt.pop %v2539
        %v2542 = vmul.f32 %v2526, %v2540
        %v2543 = vmul.f32 %v2527, %v2541
        %v2544 = vlaneseq
        %v2545 = vshrl.u32 %v2544, 7
        %v2546 = vsub.s32 4, %v2545
        %v2547 = vrot.slane %v1574, %v2546
        %v2548 = vmul.f32 %v2542, %v2547
        %v2549 = vmul.f32 %v2543, %v2547
        %v2550 = vlaneseq
        %v2551 = vshrl.u32 %v2550, 7
        %v2552 = vsub.s32 5, %v2551
        %v2553 = vrot.slane %v1574, %v2552
        %v2554 = vadd.f32 %v2548, %v2553
        %v2555 = vadd.f32 %v2549, %v2553
        %v2556 = vsel %vm542, %v2554, 0.0
        %v2557 = vrot.slane %v2556, 4
        %v2558 = vadd.f32 %v2556, %v2557
        %v2559 = vrot.slane %v2558, 2
        %v2560 = vadd.f32 %v2558, %v2559
        %v2561 = vrot.slane %v2560, 1
        %v2562 = vadd.f32 %v2560, %v2561
        %v2563 = vsel %vm542, %v2555, 0.0
        %v2564 = vrot.slane %v2563, 4
        %v2565 = vadd.f32 %v2563, %v2564
        %v2566 = vrot.slane %v2565, 2
        %v2567 = vadd.f32 %v2565, %v2566
        %v2568 = vrot.slane %v2567, 1
        %v2569 = vadd.f32 %v2567, %v2568
        %v2570 = vrcp.pop 8.0
        %v2571 = vmul.f32 %v2562, %v2570
        %v2572 = vmul.f32 %v2569, %v2570
        %vm2575 = vcmask 1041409
        %v2576 = vsel %vm2575, %v2572, %v2571
        %vm2578 = vcmask 517120
        %2579 = vst.msk [vmem:[%s419] sm:$0x3] %vm2578, %v2576
        %s2580 = sand.u32 %s296, 1
        %s2581 = scalar_lea.sflag [#allocation3], %s2580
        %s2582 = sand.u32 %s296, 1
        %s2583 = smul.addr %s2582, 2
        %s2584 = scalar_lea.vmem [#allocation2], %s2583
        // Predicated region
        $region69: #{tpu_custom_call.1} parent=67 // pred_check
          %p2585 = pneg %p306
        $region70: #{tpu_custom_call.1} parent=67 // pred_check_branch
          %2587 = sbr.rel (%p2585) target = $region72
        $region71: #{tpu_custom_call.1} parent=67 // pred_region
          %s2589 = ssub.s32 32, 32
          %2590 = vsyncadd %s2581, %s2589
          %s2591 = smul.addr %s26, 32
          %s2592 = scalar_lea.hbm %s12, %s2591
          %s2594 = sshll.u32 %s2584, 4
          %s2595 = int_to_ptr.vmem [resolvable:$true] %s2594
          %2597 = dma.vmem_to_hbm [thread:$0]  %s2595, 32, %s2592, %s2581
        $region72: #{tpu_custom_call.1} parent=67 // pred_fallthru
          _
      $region68: #{tpu_custom_call.1} parent=5 // pred_fallthru
        _
      %p2598 = scmp.le.s32.totalorder 2, %s21
      // Predicated region
      $region73: #{tpu_custom_call.1} parent=5 // pred_check
        %p2599 = pneg %p2598
      $region74: #{tpu_custom_call.1} parent=5 // pred_check_branch
        %2601 = sbr.rel (%p2599) target = $region76
      $region75: #{tpu_custom_call.1} parent=5 // pred_region
        %s2602 = ssub.s32 %s21, 2
        // Predicated region
        $region77: #{tpu_custom_call.1} parent=75 // pred_check
          %p2603 = pneg %p312
        $region78: #{tpu_custom_call.1} parent=75 // pred_check_branch
          %2605 = sbr.rel (%p2603) target = $region80
        $region79: #{tpu_custom_call.1} parent=75 // pred_region
          %s2606 = sand.u32 %s297, 1
          %s2607 = scalar_lea.sflag [#allocation3], %s2606
          %s2608 = sand.u32 %s297, 1
          %s2609 = smul.addr %s2608, 2
          %s2610 = scalar_lea.vmem [#allocation2], %s2609
          %2611 = dma.done %s2607, 32
        $region80: #{tpu_custom_call.1} parent=75 // pred_fallthru
          _
      $region76: #{tpu_custom_call.1} parent=5 // pred_fallthru
        _
    $region6: #{tpu_custom_call.1} parent=1 // loop_footer
      %s25 = sadd.s32 1, %s21
    $region7: #{tpu_custom_call.1} parent=1 // loop_footer_branch
      %20 = sbr.rel target = $region3
    $region8: #{tpu_custom_call.1} parent=1 // loop_exit
      _
    %2612 = vsyncpa [#allocation3], 1
    %s2613 = scalar_lea.sflag [#allocation3], 1
    %2614 = vsyncpa %s2613, 1

</llo_original>
